<compile_context>
chip_gen: v6e
topology: v6e:2x2x1
jax: 0.10.0
libtpu: 0.0.40
codegen_flags: <defaults>
</compile_context>

<pallas_src>
import math
import functools

import jax
import jax.numpy as jnp
from jax import lax
from jax.experimental import pallas as pl
from jax.experimental.pallas import tpu as pltpu


_SQRT_HALF = 0.7071067811865476
_LN_EPS = 1e-5


def _vmem_limit_bytes():
    # ~48 MiB on v7x (64 MiB physical VMEM), ~96 MiB on v5e/v6e (128 MiB physical).
    cap = 128 * 1024 * 1024
    try:
        cap = int(pltpu.get_tpu_info().vmem_capacity_bytes)
    except Exception:
        pass
    return min((cap * 3) // 4, 100 * 1024 * 1024)


# ----------------------------------------------------------------------------
# Kernel 1/2: fused attention block (per batch element)
#   q  = x_q  @ Wq  + bq
#   kv = x_kv @ Wkv + bkv                     (fused K|V projection, single matmul)
#   per head: softmax(q_h k_h^T / sqrt(hd)) v_h  -> out-projection
#   out = LayerNorm(x_q + attn_out @ Wo + bo)
#   optionally emits head-averaged attention probabilities (cross-attn only).
# ----------------------------------------------------------------------------
def _attn_block_kernel(xq_ref, xkv_ref, wq_ref, bq_ref, wkv_ref, bkv_ref,
                       wo_ref, bo_ref, g_ref, be_ref, *refs,
                       n_heads, scale, with_probs, fused_out_proj):
    if with_probs:
        o_ref, p_ref, proj_scr = refs
    else:
        (o_ref, proj_scr), p_ref = refs, None

    f32 = jnp.float32
    bf16 = jnp.bfloat16

    xq = xq_ref[...]                                    # (Lq, E) f32 (also residual)
    Lq, E = xq.shape
    hd = E // n_heads

    # fused projections: bf16 weights (passed pre-cast), bf16 activations, f32 accum
    q = jnp.dot(xq.astype(bf16), wq_ref[...],
                preferred_element_type=f32) + bq_ref[...]            # (Lq, E)
    kv = jnp.dot(xkv_ref[...].astype(bf16), wkv_ref[...],
                 preferred_element_type=f32) + bkv_ref[...]          # (Lk, 2E)

    # accumulators live in VMEM (proj_scr) / the output block (p_ref), not in vregs
    if with_probs:
        p_ref[...] = jnp.zeros_like(p_ref)
    if not fused_out_proj:
        proj_scr[...] = jnp.zeros_like(proj_scr)

    inv_heads = 1.0 / n_heads
    # static unroll: n_heads is small; for large n_heads switch to lax.fori_loop
    for h in range(n_heads):
        lo, hi = h * hd, (h + 1) * hd
        qh = q[:, lo:hi]                                # (Lq, hd)
        kh = kv[:, lo:hi]                               # (Lk, hd)
        vh = kv[:, E + lo:E + hi]                       # (Lk, hd)

        # contract last dims directly -> no explicit K transpose (saves XLU work)
        s = lax.dot_general(qh.astype(bf16), kh.astype(bf16),
                            dimension_numbers=(((1,), (1,)), ((), ())),
                            preferred_element_type=f32) * scale      # (Lq, Lk)
        m = jnp.max(s, axis=-1, keepdims=True)
        e = jnp.exp(s - m)
        denom = jnp.sum(e, axis=-1, keepdims=True)
        p = e * pl.reciprocal(denom, approx=True)       # EUP divide, f32 probs

        if with_probs:
            p_ref[...] += p * inv_heads

        oh = jnp.dot(p.astype(bf16), vh.astype(bf16),
                     preferred_element_type=f32)                      # (Lq, hd)
        if fused_out_proj:
            # lane-aligned column write (hd % 128 == 0); one big out-proj after the loop
            proj_scr[:, lo:hi] = oh
        else:
            # fold the out-projection into per-head row blocks of Wo
            proj_scr[...] += jnp.dot(oh.astype(bf16), wo_ref[lo:hi, :],
                                     preferred_element_type=f32)      # (Lq, E)

    if fused_out_proj:
        proj = jnp.dot(proj_scr[...].astype(bf16), wo_ref[...],
                       preferred_element_type=f32) + bo_ref[...]
    else:
        proj = proj_scr[...] + bo_ref[...]

    # residual (dropout = identity) + LayerNorm epilogue, all in f32
    y = xq + proj
    mu = jnp.mean(y, axis=-1, keepdims=True)
    var = jnp.mean(jnp.square(y - mu), axis=-1, keepdims=True)
    o_ref[...] = ((y - mu) * lax.rsqrt(var + _LN_EPS) * g_ref[...] + be_ref[...]
                  ).astype(o_ref.dtype)


def attention_block(x_q, x_kv, prm, gamma, beta, n_heads, with_probs=True):
    B, Lq, E = x_q.shape
    Lk = x_kv.shape[1]
    hd = E // n_heads
    scale = 1.0 / math.sqrt(hd)
    fused_out_proj = (hd % 128 == 0)
    bf16 = jnp.bfloat16

    kernel = functools.partial(_attn_block_kernel, n_heads=n_heads, scale=scale,
                               with_probs=with_probs, fused_out_proj=fused_out_proj)

    out_shape = [jax.ShapeDtypeStruct((B, Lq, E), jnp.float32)]
    out_specs = [pl.BlockSpec((None, Lq, E), lambda b: (b, 0, 0))]
    if with_probs:
        out_shape.append(jax.ShapeDtypeStruct((B, Lq, Lk), jnp.float32))
        out_specs.append(pl.BlockSpec((None, Lq, Lk), lambda b: (b, 0, 0)))

    res = pl.pallas_call(
        kernel,
        out_shape=tuple(out_shape),
        grid=(B,),
        in_specs=[
            pl.BlockSpec((None, Lq, E), lambda b: (b, 0, 0)),   # x_q (also residual)
            pl.BlockSpec((None, Lk, E), lambda b: (b, 0, 0)),   # x_kv
            pl.BlockSpec((E, E), lambda b: (0, 0)),             # Wq (bf16)
            pl.BlockSpec((1, E), lambda b: (0, 0)),             # bq
            pl.BlockSpec((E, 2 * E), lambda b: (0, 0)),         # Wkv (bf16, fused K|V)
            pl.BlockSpec((1, 2 * E), lambda b: (0, 0)),         # bkv
            pl.BlockSpec((E, E), lambda b: (0, 0)),             # Wo (bf16)
            pl.BlockSpec((1, E), lambda b: (0, 0)),             # bo
            pl.BlockSpec((1, E), lambda b: (0, 0)),             # LN gamma
            pl.BlockSpec((1, E), lambda b: (0, 0)),             # LN beta
        ],
        out_specs=tuple(out_specs),
        scratch_shapes=[pltpu.VMEM((Lq, E), jnp.float32)],      # proj / attn staging
        compiler_params=pltpu.CompilerParams(
            dimension_semantics=("parallel",),
            vmem_limit_bytes=_vmem_limit_bytes(),
        ),
    )(
        x_q, x_kv,
        prm["wq"].astype(bf16), prm["bq"].reshape(1, E),
        prm["wkv"].astype(bf16), prm["bkv"].reshape(1, 2 * E),
        prm["wo"].astype(bf16), prm["bo"].reshape(1, E),
        gamma.reshape(1, E), beta.reshape(1, E),
    )
    if with_probs:
        return res[0], res[1]
    return res[0], None


# ----------------------------------------------------------------------------
# Kernel 3: fused positionwise feed-forward block (per batch element)
#   SamePadConv(H->P, k=3, d=2) -> GELU -> SamePadConv(P->H, k=3, d=2)
#   -> +residual -> LayerNorm
# No XLA-side pad: zero padding is staged in small bf16 VMEM scratch buffers so the
# activation is read from HBM exactly once.  Each conv is K shifted MXU matmuls.
# ----------------------------------------------------------------------------
def _ffn_ln_kernel(x_ref, w1_ref, b1_ref, w2_ref, b2_ref, g_ref, be_ref, o_ref,
                   xpad_scr, hpad_scr, *, ksize, dilation, pad):
    f32 = jnp.float32
    bf16 = jnp.bfloat16

    L, H = x_ref.shape
    P = w1_ref.shape[-1]

    x = x_ref[...]                                      # (L, H) f32 (also residual)

    # stage zero-padded bf16 input for conv1
    xpad_scr[...] = jnp.zeros_like(xpad_scr)
    xpad_scr[pad:pad + L, :] = x.astype(bf16)

    # ---- conv1: K shifted reads, K matmuls (bf16 weights, f32 accum) ----
    h = jnp.zeros((L, P), f32) + b1_ref[...]
    for k in range(ksize):
        h = h + jnp.dot(xpad_scr[pl.ds(k * dilation, L), :], w1_ref[k],
                        preferred_element_type=f32)
    # exact (erf) GELU — matches torch.nn.functional.gelu default
    h = 0.5 * h * (1.0 + lax.erf(h * _SQRT_HALF))

    # stage zero-padded bf16 activation for conv2 (bf16 halves the largest scratch)
    hpad_scr[...] = jnp.zeros_like(hpad_scr)
    hpad_scr[pad:pad + L, :] = h.astype(bf16)

    # ---- conv2 + residual + LayerNorm ----
    y = jnp.zeros((L, H), f32) + b2_ref[...]
    for k in range(ksize):
        y = y + jnp.dot(hpad_scr[pl.ds(k * dilation, L), :], w2_ref[k],
                        preferred_element_type=f32)

    y = x + y                                           # dropout = identity
    mu = jnp.mean(y, axis=-1, keepdims=True)
    var = jnp.mean(jnp.square(y - mu), axis=-1, keepdims=True)
    o_ref[...] = ((y - mu) * lax.rsqrt(var + _LN_EPS) * g_ref[...] + be_ref[...]
                  ).astype(o_ref.dtype)


def positionwise_ffn(x, prm, gamma, beta, *, ksize=3, dilation=2):
    B, L, H = x.shape
    P = prm["ff_w1"].shape[-1]
    receptive = (ksize - 1) * dilation + 1
    pad = receptive // 2
    # the module only uses kernel_size=3, dilation=2 (odd receptive field, no trim)
    assert receptive % 2 == 1
    bf16 = jnp.bfloat16

    kernel = functools.partial(_ffn_ln_kernel, ksize=ksize, dilation=dilation, pad=pad)
    return pl.pallas_call(
        kernel,
        out_shape=jax.ShapeDtypeStruct((B, L, H), jnp.float32),
        grid=(B,),
        in_specs=[
            pl.BlockSpec((None, L, H), lambda b: (b, 0, 0)),       # x (unpadded)
            pl.BlockSpec((ksize, H, P), lambda b: (0, 0, 0)),      # conv1 weight (bf16)
            pl.BlockSpec((1, P), lambda b: (0, 0)),                # conv1 bias
            pl.BlockSpec((ksize, P, H), lambda b: (0, 0, 0)),      # conv2 weight (bf16)
            pl.BlockSpec((1, H), lambda b: (0, 0)),                # conv2 bias
            pl.BlockSpec((1, H), lambda b: (0, 0)),                # LN gamma
            pl.BlockSpec((1, H), lambda b: (0, 0)),                # LN beta
        ],
        out_specs=pl.BlockSpec((None, L, H), lambda b: (b, 0, 0)),
        scratch_shapes=[
            pltpu.VMEM((L + 2 * pad, H), bf16),                    # padded input
            pltpu.VMEM((L + 2 * pad, P), bf16),                    # padded GELU output
        ],
        compiler_params=pltpu.CompilerParams(
            dimension_semantics=("parallel",),
            vmem_limit_bytes=_vmem_limit_bytes(),
        ),
    )(x, prm["ff_w1"].astype(bf16), prm["ff_b1"].reshape(1, P),
      prm["ff_w2"].astype(bf16), prm["ff_b2"].reshape(1, H),
      gamma.reshape(1, H), beta.reshape(1, H))


# ----------------------------------------------------------------------------
# DecoderLayer forward: 3 fused pallas_calls per layer
# ----------------------------------------------------------------------------
def decoder_layer(trg, enc_src, params, n_heads):
    # self-attention: attention weights are discarded -> skip the O(L^2) probs path
    trg, _ = attention_block(trg, trg, params["self_attn"],
                             params["ln1_g"], params["ln1_b"], n_heads,
                             with_probs=False)
    trg, attention = attention_block(trg, enc_src, params["cross_attn"],
                                     params["ln2_g"], params["ln2_b"], n_heads,
                                     with_probs=True)
    trg = positionwise_ffn(trg, params, params["ln3_g"], params["ln3_b"])
    return trg, attention


def init_params(key, hidden, pf_dim, ksize=3):
    ks = jax.random.split(key, 16)
    sH = 1.0 / math.sqrt(hidden)
    sC1 = 1.0 / math.sqrt(hidden * ksize)
    sC2 = 1.0 / math.sqrt(pf_dim * ksize)
    bf16 = jnp.bfloat16

    def n(i, shape, s, dtype=jnp.float32):
        return (jax.random.normal(ks[i], shape, jnp.float32) * s).astype(dtype)

    def attn_params(i0):
        # matmul weights stored as bf16 (cast once here, not per grid step in-kernel)
        return {
            "wq": n(i0 + 0, (hidden, hidden), sH, bf16),
            "bq": n(i0 + 1, (hidden,), 0.02),
            "wkv": n(i0 + 2, (hidden, 2 * hidden), sH, bf16),   # fused K|V projection
            "bkv": n(i0 + 3, (2 * hidden,), 0.02),
            "wo": n(i0 + 4, (hidden, hidden), sH, bf16),
            "bo": n(i0 + 5, (hidden,), 0.02),
        }

    return {
        "self_attn": attn_params(0),
        "cross_attn": attn_params(6),
        "ln1_g": jnp.ones((hidden,), jnp.float32), "ln1_b": jnp.zeros((hidden,), jnp.float32),
        "ln2_g": jnp.ones((hidden,), jnp.float32), "ln2_b": jnp.zeros((hidden,), jnp.float32),
        "ln3_g": jnp.ones((hidden,), jnp.float32), "ln3_b": jnp.zeros((hidden,), jnp.float32),
        "ff_w1": n(12, (ksize, hidden, pf_dim), sC1, bf16), "ff_b1": n(13, (pf_dim,), 0.02),
        "ff_w2": n(14, (ksize, pf_dim, hidden), sC2, bf16), "ff_b2": n(15, (hidden,), 0.02),
    }


if __name__ == "__main__":
    # lane-dense small demo shapes: E multiple of 128 so projections/outputs fill lanes
    B, L_trg, L_src = 2, 8, 16
    hidden, n_heads, pf_dim = 128, 4, 256

    key = jax.random.PRNGKey(0)
    k1, k2, k3 = jax.random.split(key, 3)
    trg = jax.random.normal(k1, (B, L_trg, hidden), jnp.float32)
    enc_src = jax.random.normal(k2, (B, L_src, hidden), jnp.float32)
    params = init_params(k3, hidden, pf_dim)

    fwd = jax.jit(functools.partial(decoder_layer, n_heads=n_heads))
    out, attn = fwd(trg, enc_src, params)
    jax.block_until_ready((out, attn))

    assert out.shape == (B, L_trg, hidden)
    assert attn.shape == (B, L_trg, L_src)
    assert bool(jnp.all(jnp.isfinite(out))) and bool(jnp.all(jnp.isfinite(attn)))
    print("KERNEL_OK")
</pallas_src>

<mosaic_0001>
module attributes {stable_mosaic.version = 11 : i64} {
  func.func @_attn_block_kernel(%arg0: i32, %arg1: memref<1x8x128xf32, #tpu.memory_space<vmem>>, %arg2: memref<1x8x128xf32, #tpu.memory_space<vmem>>, %arg3: memref<128x128xbf16, #tpu.memory_space<vmem>>, %arg4: memref<1x128xf32, #tpu.memory_space<vmem>>, %arg5: memref<128x256xbf16, #tpu.memory_space<vmem>>, %arg6: memref<1x256xf32, #tpu.memory_space<vmem>>, %arg7: memref<128x128xbf16, #tpu.memory_space<vmem>>, %arg8: memref<1x128xf32, #tpu.memory_space<vmem>>, %arg9: memref<1x128xf32, #tpu.memory_space<vmem>>, %arg10: memref<1x128xf32, #tpu.memory_space<vmem>>, %arg11: memref<1x8x128xf32, #tpu.memory_space<vmem>>, %arg12: memref<8x128xf32, #tpu.memory_space<vmem>>) attributes {dimension_semantics = [#tpu.dimension_semantics<parallel>], iteration_bounds = array<i64: 2>, scalar_prefetch = 0 : i64, scratch_operands = 1 : i64, tpu.core_type = #tpu.core_type<tc>, window_params = [{transform_indices = @transform_0, window_bounds = array<i64: 1, 8, 128>}, {transform_indices = @transform_1, window_bounds = array<i64: 1, 8, 128>}, {pipeline_mode = #tpu.pipeline_mode<synchronous>, transform_indices = @transform_2, window_bounds = array<i64: 128, 128>}, {pipeline_mode = #tpu.pipeline_mode<synchronous>, transform_indices = @transform_3, window_bounds = array<i64: 1, 128>}, {pipeline_mode = #tpu.pipeline_mode<synchronous>, transform_indices = @transform_4, window_bounds = array<i64: 128, 256>}, {pipeline_mode = #tpu.pipeline_mode<synchronous>, transform_indices = @transform_5, window_bounds = array<i64: 1, 256>}, {pipeline_mode = #tpu.pipeline_mode<synchronous>, transform_indices = @transform_6, window_bounds = array<i64: 128, 128>}, {pipeline_mode = #tpu.pipeline_mode<synchronous>, transform_indices = @transform_7, window_bounds = array<i64: 1, 128>}, {pipeline_mode = #tpu.pipeline_mode<synchronous>, transform_indices = @transform_8, window_bounds = array<i64: 1, 128>}, {pipeline_mode = #tpu.pipeline_mode<synchronous>, transform_indices = @transform_9, window_bounds = array<i64: 1, 128>}, {transform_indices = @transform_10, window_bounds = array<i64: 1, 8, 128>}]} {
    %c0 = arith.constant 0 : index
    %c0_0 = arith.constant 0 : index
    %c0_1 = arith.constant 0 : index
    %0 = vector.load %arg1[%c0, %c0_0, %c0_1] : memref<1x8x128xf32, #tpu.memory_space<vmem>>, vector<1x8x128xf32>
    %1 = vector.shape_cast %0 : vector<1x8x128xf32> to vector<8x128xf32>
    %2 = arith.truncf %1 : vector<8x128xf32> to vector<8x128xbf16>
    %c0_2 = arith.constant 0 : index
    %c0_3 = arith.constant 0 : index
    %3 = vector.load %arg3[%c0_2, %c0_3] : memref<128x128xbf16, #tpu.memory_space<vmem>>, vector<128x128xbf16>
    %cst = arith.constant dense<0.000000e+00> : vector<8x128xf32>
    %4 = tpu.matmul %2, %3, %cst {dimension_numbers = #tpu.dot_dimension_numbers<[1], [0], [0], [1], [0, 0, 1, 1], [], []>} : vector<8x128xbf16>, vector<128x128xbf16>, vector<8x128xf32> -> vector<8x128xf32>
    %c0_4 = arith.constant 0 : index
    %c0_5 = arith.constant 0 : index
    %5 = vector.load %arg4[%c0_4, %c0_5] : memref<1x128xf32, #tpu.memory_space<vmem>>, vector<1x128xf32>
    %6 = vector.broadcast %5 : vector<1x128xf32> to vector<8x128xf32>
    %7 = arith.addf %4, %6 : vector<8x128xf32>
    %c0_6 = arith.constant 0 : index
    %c0_7 = arith.constant 0 : index
    %c0_8 = arith.constant 0 : index
    %8 = vector.load %arg2[%c0_6, %c0_7, %c0_8] : memref<1x8x128xf32, #tpu.memory_space<vmem>>, vector<1x8x128xf32>
    %9 = vector.shape_cast %8 : vector<1x8x128xf32> to vector<8x128xf32>
    %10 = arith.truncf %9 : vector<8x128xf32> to vector<8x128xbf16>
    %c0_9 = arith.constant 0 : index
    %c0_10 = arith.constant 0 : index
    %11 = vector.load %arg5[%c0_9, %c0_10] : memref<128x256xbf16, #tpu.memory_space<vmem>>, vector<128x256xbf16>
    %cst_11 = arith.constant dense<0.000000e+00> : vector<8x256xf32>
    %12 = tpu.matmul %10, %11, %cst_11 {dimension_numbers = #tpu.dot_dimension_numbers<[1], [0], [0], [1], [0, 0, 1, 1], [], []>} : vector<8x128xbf16>, vector<128x256xbf16>, vector<8x256xf32> -> vector<8x256xf32>
    %c0_12 = arith.constant 0 : index
    %c0_13 = arith.constant 0 : index
    %13 = vector.load %arg6[%c0_12, %c0_13] : memref<1x256xf32, #tpu.memory_space<vmem>>, vector<1x256xf32>
    %14 = vector.broadcast %13 : vector<1x256xf32> to vector<8x256xf32>
    %15 = arith.addf %12, %14 : vector<8x256xf32>
    %cst_14 = arith.constant 0.000000e+00 : f32
    %16 = vector.broadcast %cst_14 : f32 to vector<8x128xf32>
    %c0_15 = arith.constant 0 : index
    %c0_16 = arith.constant 0 : index
    %17 = vector.load %arg12[%c0_15, %c0_16] : memref<8x128xf32, #tpu.memory_space<vmem>>, vector<8x128xf32>
    tpu.vector_store %arg12[%c0_15, %c0_16], %16 {strides = array<i32>} : memref<8x128xf32, #tpu.memory_space<vmem>>, vector<8x128xf32>,
    %18 = vector.extract_strided_slice %7 {offsets = [0, 0], sizes = [8, 32], strides = [1, 1]} : vector<8x128xf32> to vector<8x32xf32>
    %19 = vector.extract_strided_slice %15 {offsets = [0, 0], sizes = [8, 32], strides = [1, 1]} : vector<8x256xf32> to vector<8x32xf32>
    %20 = vector.extract_strided_slice %15 {offsets = [0, 128], sizes = [8, 32], strides = [1, 1]} : vector<8x256xf32> to vector<8x32xf32>
    %21 = arith.truncf %18 : vector<8x32xf32> to vector<8x32xbf16>
    %22 = arith.truncf %19 : vector<8x32xf32> to vector<8x32xbf16>
    %cst_17 = arith.constant dense<0.000000e+00> : vector<8x8xf32>
    %23 = tpu.matmul %21, %22, %cst_17 {dimension_numbers = #tpu.dot_dimension_numbers<[1], [1], [0], [0], [0, 0, 1, 0], [], []>} : vector<8x32xbf16>, vector<8x32xbf16>, vector<8x8xf32> -> vector<8x8xf32>
    %cst_18 = arith.constant 0.176776692 : f32
    %24 = vector.broadcast %cst_18 : f32 to vector<8x8xf32>
    %25 = arith.mulf %23, %24 : vector<8x8xf32>
    %cst_19 = arith.constant dense<0xFF800000> : vector<8xf32>
    %26 = vector.multi_reduction <maximumf>, %25, %cst_19 [1] : vector<8x8xf32> to vector<8xf32>
    %27 = vector.shape_cast %26 : vector<8xf32> to vector<8x1xf32>
    %28 = vector.broadcast %27 : vector<8x1xf32> to vector<8x8xf32>
    %29 = arith.subf %25, %28 : vector<8x8xf32>
    %30 = math.exp %29 : vector<8x8xf32>
    %cst_20 = arith.constant dense<0.000000e+00> : vector<8xf32>
    %31 = vector.multi_reduction <add>, %30, %cst_20 [1] : vector<8x8xf32> to vector<8xf32>
    %32 = vector.shape_cast %31 : vector<8xf32> to vector<8x1xf32>
    %33 = tpu.reciprocal %32 {approx = true} : vector<8x1xf32> -> vector<8x1xf32>
    %34 = vector.broadcast %33 : vector<8x1xf32> to vector<8x8xf32>
    %35 = arith.mulf %30, %34 : vector<8x8xf32>
    %36 = arith.truncf %35 : vector<8x8xf32> to vector<8x8xbf16>
    %37 = arith.truncf %20 : vector<8x32xf32> to vector<8x32xbf16>
    %cst_21 = arith.constant dense<0.000000e+00> : vector<8x32xf32>
    %38 = tpu.matmul %36, %37, %cst_21 {dimension_numbers = #tpu.dot_dimension_numbers<[1], [0], [0], [1], [0, 0, 1, 1], [], []>} : vector<8x8xbf16>, vector<8x32xbf16>, vector<8x32xf32> -> vector<8x32xf32>
    %c0_22 = arith.constant 0 : index
    %c0_23 = arith.constant 0 : index
    %39 = vector.load %arg12[%c0_22, %c0_23] : memref<8x128xf32, #tpu.memory_space<vmem>>, vector<8x128xf32>
    %40 = arith.truncf %38 : vector<8x32xf32> to vector<8x32xbf16>
    %c0_24 = arith.constant 0 : index
    %c0_25 = arith.constant 0 : index
    %41 = vector.load %arg7[%c0_24, %c0_25] : memref<128x128xbf16, #tpu.memory_space<vmem>>, vector<32x128xbf16>
    %cst_26 = arith.constant dense<0.000000e+00> : vector<8x128xf32>
    %42 = tpu.matmul %40, %41, %cst_26 {dimension_numbers = #tpu.dot_dimension_numbers<[1], [0], [0], [1], [0, 0, 1, 1], [], []>} : vector<8x32xbf16>, vector<32x128xbf16>, vector<8x128xf32> -> vector<8x128xf32>
    %43 = arith.addf %39, %42 : vector<8x128xf32>
    %c0_27 = arith.constant 0 : index
    %c0_28 = arith.constant 0 : index
    %44 = vector.load %arg12[%c0_27, %c0_28] : memref<8x128xf32, #tpu.memory_space<vmem>>, vector<8x128xf32>
    tpu.vector_store %arg12[%c0_27, %c0_28], %43 {strides = array<i32>} : memref<8x128xf32, #tpu.memory_space<vmem>>, vector<8x128xf32>,
    %45 = vector.extract_strided_slice %7 {offsets = [0, 32], sizes = [8, 32], strides = [1, 1]} : vector<8x128xf32> to vector<8x32xf32>
    %46 = vector.extract_strided_slice %15 {offsets = [0, 32], sizes = [8, 32], strides = [1, 1]} : vector<8x256xf32> to vector<8x32xf32>
    %47 = vector.extract_strided_slice %15 {offsets = [0, 160], sizes = [8, 32], strides = [1, 1]} : vector<8x256xf32> to vector<8x32xf32>
    %48 = arith.truncf %45 : vector<8x32xf32> to vector<8x32xbf16>
    %49 = arith.truncf %46 : vector<8x32xf32> to vector<8x32xbf16>
    %cst_29 = arith.constant dense<0.000000e+00> : vector<8x8xf32>
    %50 = tpu.matmul %48, %49, %cst_29 {dimension_numbers = #tpu.dot_dimension_numbers<[1], [1], [0], [0], [0, 0, 1, 0], [], []>} : vector<8x32xbf16>, vector<8x32xbf16>, vector<8x8xf32> -> vector<8x8xf32>
    %cst_30 = arith.constant 0.176776692 : f32
    %51 = vector.broadcast %cst_30 : f32 to vector<8x8xf32>
    %52 = arith.mulf %50, %51 : vector<8x8xf32>
    %cst_31 = arith.constant dense<0xFF800000> : vector<8xf32>
    %53 = vector.multi_reduction <maximumf>, %52, %cst_31 [1] : vector<8x8xf32> to vector<8xf32>
    %54 = vector.shape_cast %53 : vector<8xf32> to vector<8x1xf32>
    %55 = vector.broadcast %54 : vector<8x1xf32> to vector<8x8xf32>
    %56 = arith.subf %52, %55 : vector<8x8xf32>
    %57 = math.exp %56 : vector<8x8xf32>
    %cst_32 = arith.constant dense<0.000000e+00> : vector<8xf32>
    %58 = vector.multi_reduction <add>, %57, %cst_32 [1] : vector<8x8xf32> to vector<8xf32>
    %59 = vector.shape_cast %58 : vector<8xf32> to vector<8x1xf32>
    %60 = tpu.reciprocal %59 {approx = true} : vector<8x1xf32> -> vector<8x1xf32>
    %61 = vector.broadcast %60 : vector<8x1xf32> to vector<8x8xf32>
    %62 = arith.mulf %57, %61 : vector<8x8xf32>
    %63 = arith.truncf %62 : vector<8x8xf32> to vector<8x8xbf16>
    %64 = arith.truncf %47 : vector<8x32xf32> to vector<8x32xbf16>
    %cst_33 = arith.constant dense<0.000000e+00> : vector<8x32xf32>
    %65 = tpu.matmul %63, %64, %cst_33 {dimension_numbers = #tpu.dot_dimension_numbers<[1], [0], [0], [1], [0, 0, 1, 1], [], []>} : vector<8x8xbf16>, vector<8x32xbf16>, vector<8x32xf32> -> vector<8x32xf32>
    %c0_34 = arith.constant 0 : index
    %c0_35 = arith.constant 0 : index
    %66 = vector.load %arg12[%c0_34, %c0_35] : memref<8x128xf32, #tpu.memory_space<vmem>>, vector<8x128xf32>
    %67 = arith.truncf %65 : vector<8x32xf32> to vector<8x32xbf16>
    %c32 = arith.constant 32 : index
    %c0_36 = arith.constant 0 : index
    %68 = vector.load %arg7[%c32, %c0_36] : memref<128x128xbf16, #tpu.memory_space<vmem>>, vector<32x128xbf16>
    %cst_37 = arith.constant dense<0.000000e+00> : vector<8x128xf32>
    %69 = tpu.matmul %67, %68, %cst_37 {dimension_numbers = #tpu.dot_dimension_numbers<[1], [0], [0], [1], [0, 0, 1, 1], [], []>} : vector<8x32xbf16>, vector<32x128xbf16>, vector<8x128xf32> -> vector<8x128xf32>
    %70 = arith.addf %66, %69 : vector<8x128xf32>
    %c0_38 = arith.constant 0 : index
    %c0_39 = arith.constant 0 : index
    %71 = vector.load %arg12[%c0_38, %c0_39] : memref<8x128xf32, #tpu.memory_space<vmem>>, vector<8x128xf32>
    tpu.vector_store %arg12[%c0_38, %c0_39], %70 {strides = array<i32>} : memref<8x128xf32, #tpu.memory_space<vmem>>, vector<8x128xf32>,
    %72 = vector.extract_strided_slice %7 {offsets = [0, 64], sizes = [8, 32], strides = [1, 1]} : vector<8x128xf32> to vector<8x32xf32>
    %73 = vector.extract_strided_slice %15 {offsets = [0, 64], sizes = [8, 32], strides = [1, 1]} : vector<8x256xf32> to vector<8x32xf32>
    %74 = vector.extract_strided_slice %15 {offsets = [0, 192], sizes = [8, 32], strides = [1, 1]} : vector<8x256xf32> to vector<8x32xf32>
    %75 = arith.truncf %72 : vector<8x32xf32> to vector<8x32xbf16>
    %76 = arith.truncf %73 : vector<8x32xf32> to vector<8x32xbf16>
    %cst_40 = arith.constant dense<0.000000e+00> : vector<8x8xf32>
    %77 = tpu.matmul %75, %76, %cst_40 {dimension_numbers = #tpu.dot_dimension_numbers<[1], [1], [0], [0], [0, 0, 1, 0], [], []>} : vector<8x32xbf16>, vector<8x32xbf16>, vector<8x8xf32> -> vector<8x8xf32>
    %cst_41 = arith.constant 0.176776692 : f32
    %78 = vector.broadcast %cst_41 : f32 to vector<8x8xf32>
    %79 = arith.mulf %77, %78 : vector<8x8xf32>
    %cst_42 = arith.constant dense<0xFF800000> : vector<8xf32>
    %80 = vector.multi_reduction <maximumf>, %79, %cst_42 [1] : vector<8x8xf32> to vector<8xf32>
    %81 = vector.shape_cast %80 : vector<8xf32> to vector<8x1xf32>
    %82 = vector.broadcast %81 : vector<8x1xf32> to vector<8x8xf32>
    %83 = arith.subf %79, %82 : vector<8x8xf32>
    %84 = math.exp %83 : vector<8x8xf32>
    %cst_43 = arith.constant dense<0.000000e+00> : vector<8xf32>
    %85 = vector.multi_reduction <add>, %84, %cst_43 [1] : vector<8x8xf32> to vector<8xf32>
    %86 = vector.shape_cast %85 : vector<8xf32> to vector<8x1xf32>
    %87 = tpu.reciprocal %86 {approx = true} : vector<8x1xf32> -> vector<8x1xf32>
    %88 = vector.broadcast %87 : vector<8x1xf32> to vector<8x8xf32>
    %89 = arith.mulf %84, %88 : vector<8x8xf32>
    %90 = arith.truncf %89 : vector<8x8xf32> to vector<8x8xbf16>
    %91 = arith.truncf %74 : vector<8x32xf32> to vector<8x32xbf16>
    %cst_44 = arith.constant dense<0.000000e+00> : vector<8x32xf32>
    %92 = tpu.matmul %90, %91, %cst_44 {dimension_numbers = #tpu.dot_dimension_numbers<[1], [0], [0], [1], [0, 0, 1, 1], [], []>} : vector<8x8xbf16>, vector<8x32xbf16>, vector<8x32xf32> -> vector<8x32xf32>
    %c0_45 = arith.constant 0 : index
    %c0_46 = arith.constant 0 : index
    %93 = vector.load %arg12[%c0_45, %c0_46] : memref<8x128xf32, #tpu.memory_space<vmem>>, vector<8x128xf32>
    %94 = arith.truncf %92 : vector<8x32xf32> to vector<8x32xbf16>
    %c64 = arith.constant 64 : index
    %c0_47 = arith.constant 0 : index
    %95 = vector.load %arg7[%c64, %c0_47] : memref<128x128xbf16, #tpu.memory_space<vmem>>, vector<32x128xbf16>
    %cst_48 = arith.constant dense<0.000000e+00> : vector<8x128xf32>
    %96 = tpu.matmul %94, %95, %cst_48 {dimension_numbers = #tpu.dot_dimension_numbers<[1], [0], [0], [1], [0, 0, 1, 1], [], []>} : vector<8x32xbf16>, vector<32x128xbf16>, vector<8x128xf32> -> vector<8x128xf32>
    %97 = arith.addf %93, %96 : vector<8x128xf32>
    %c0_49 = arith.constant 0 : index
    %c0_50 = arith.constant 0 : index
    %98 = vector.load %arg12[%c0_49, %c0_50] : memref<8x128xf32, #tpu.memory_space<vmem>>, vector<8x128xf32>
    tpu.vector_store %arg12[%c0_49, %c0_50], %97 {strides = array<i32>} : memref<8x128xf32, #tpu.memory_space<vmem>>, vector<8x128xf32>,
    %99 = vector.extract_strided_slice %7 {offsets = [0, 96], sizes = [8, 32], strides = [1, 1]} : vector<8x128xf32> to vector<8x32xf32>
    %100 = vector.extract_strided_slice %15 {offsets = [0, 96], sizes = [8, 32], strides = [1, 1]} : vector<8x256xf32> to vector<8x32xf32>
    %101 = vector.extract_strided_slice %15 {offsets = [0, 224], sizes = [8, 32], strides = [1, 1]} : vector<8x256xf32> to vector<8x32xf32>
    %102 = arith.truncf %99 : vector<8x32xf32> to vector<8x32xbf16>
    %103 = arith.truncf %100 : vector<8x32xf32> to vector<8x32xbf16>
    %cst_51 = arith.constant dense<0.000000e+00> : vector<8x8xf32>
    %104 = tpu.matmul %102, %103, %cst_51 {dimension_numbers = #tpu.dot_dimension_numbers<[1], [1], [0], [0], [0, 0, 1, 0], [], []>} : vector<8x32xbf16>, vector<8x32xbf16>, vector<8x8xf32> -> vector<8x8xf32>
    %cst_52 = arith.constant 0.176776692 : f32
    %105 = vector.broadcast %cst_52 : f32 to vector<8x8xf32>
    %106 = arith.mulf %104, %105 : vector<8x8xf32>
    %cst_53 = arith.constant dense<0xFF800000> : vector<8xf32>
    %107 = vector.multi_reduction <maximumf>, %106, %cst_53 [1] : vector<8x8xf32> to vector<8xf32>
    %108 = vector.shape_cast %107 : vector<8xf32> to vector<8x1xf32>
    %109 = vector.broadcast %108 : vector<8x1xf32> to vector<8x8xf32>
    %110 = arith.subf %106, %109 : vector<8x8xf32>
    %111 = math.exp %110 : vector<8x8xf32>
    %cst_54 = arith.constant dense<0.000000e+00> : vector<8xf32>
    %112 = vector.multi_reduction <add>, %111, %cst_54 [1] : vector<8x8xf32> to vector<8xf32>
    %113 = vector.shape_cast %112 : vector<8xf32> to vector<8x1xf32>
    %114 = tpu.reciprocal %113 {approx = true} : vector<8x1xf32> -> vector<8x1xf32>
    %115 = vector.broadcast %114 : vector<8x1xf32> to vector<8x8xf32>
    %116 = arith.mulf %111, %115 : vector<8x8xf32>
    %117 = arith.truncf %116 : vector<8x8xf32> to vector<8x8xbf16>
    %118 = arith.truncf %101 : vector<8x32xf32> to vector<8x32xbf16>
    %cst_55 = arith.constant dense<0.000000e+00> : vector<8x32xf32>
    %119 = tpu.matmul %117, %118, %cst_55 {dimension_numbers = #tpu.dot_dimension_numbers<[1], [0], [0], [1], [0, 0, 1, 1], [], []>} : vector<8x8xbf16>, vector<8x32xbf16>, vector<8x32xf32> -> vector<8x32xf32>
    %c0_56 = arith.constant 0 : index
    %c0_57 = arith.constant 0 : index
    %120 = vector.load %arg12[%c0_56, %c0_57] : memref<8x128xf32, #tpu.memory_space<vmem>>, vector<8x128xf32>
    %121 = arith.truncf %119 : vector<8x32xf32> to vector<8x32xbf16>
    %c96 = arith.constant 96 : index
    %c0_58 = arith.constant 0 : index
    %122 = vector.load %arg7[%c96, %c0_58] : memref<128x128xbf16, #tpu.memory_space<vmem>>, vector<32x128xbf16>
    %cst_59 = arith.constant dense<0.000000e+00> : vector<8x128xf32>
    %123 = tpu.matmul %121, %122, %cst_59 {dimension_numbers = #tpu.dot_dimension_numbers<[1], [0], [0], [1], [0, 0, 1, 1], [], []>} : vector<8x32xbf16>, vector<32x128xbf16>, vector<8x128xf32> -> vector<8x128xf32>
    %124 = arith.addf %120, %123 : vector<8x128xf32>
    %c0_60 = arith.constant 0 : index
    %c0_61 = arith.constant 0 : index
    %125 = vector.load %arg12[%c0_60, %c0_61] : memref<8x128xf32, #tpu.memory_space<vmem>>, vector<8x128xf32>
    tpu.vector_store %arg12[%c0_60, %c0_61], %124 {strides = array<i32>} : memref<8x128xf32, #tpu.memory_space<vmem>>, vector<8x128xf32>,
    %c0_62 = arith.constant 0 : index
    %c0_63 = arith.constant 0 : index
    %126 = vector.load %arg12[%c0_62, %c0_63] : memref<8x128xf32, #tpu.memory_space<vmem>>, vector<8x128xf32>
    %c0_64 = arith.constant 0 : index
    %c0_65 = arith.constant 0 : index
    %127 = vector.load %arg8[%c0_64, %c0_65] : memref<1x128xf32, #tpu.memory_space<vmem>>, vector<1x128xf32>
    %128 = vector.broadcast %127 : vector<1x128xf32> to vector<8x128xf32>
    %129 = arith.addf %126, %128 : vector<8x128xf32>
    %130 = arith.addf %1, %129 : vector<8x128xf32>
    %cst_66 = arith.constant dense<0.000000e+00> : vector<8xf32>
    %131 = vector.multi_reduction <add>, %130, %cst_66 [1] : vector<8x128xf32> to vector<8xf32>
    %132 = vector.shape_cast %131 : vector<8xf32> to vector<8x1xf32>
    %cst_67 = arith.constant 1.280000e+02 : f32
    %133 = vector.broadcast %cst_67 : f32 to vector<8x1xf32>
    %134 = arith.divf %132, %133 : vector<8x1xf32>
    %135 = vector.broadcast %134 : vector<8x1xf32> to vector<8x128xf32>
    %136 = arith.subf %130, %135 : vector<8x128xf32>
    %137 = arith.mulf %136, %136 : vector<8x128xf32>
    %cst_68 = arith.constant dense<0.000000e+00> : vector<8xf32>
    %138 = vector.multi_reduction <add>, %137, %cst_68 [1] : vector<8x128xf32> to vector<8xf32>
    %139 = vector.shape_cast %138 : vector<8xf32> to vector<8x1xf32>
    %cst_69 = arith.constant 1.280000e+02 : f32
    %140 = vector.broadcast %cst_69 : f32 to vector<8x1xf32>
    %141 = arith.divf %139, %140 : vector<8x1xf32>
    %142 = vector.broadcast %134 : vector<8x1xf32> to vector<8x128xf32>
    %143 = arith.subf %130, %142 : vector<8x128xf32>
    %cst_70 = arith.constant 9.99999974E-6 : f32
    %144 = vector.broadcast %cst_70 : f32 to vector<8x1xf32>
    %145 = arith.addf %141, %144 : vector<8x1xf32>
    %146 = math.rsqrt %145 : vector<8x1xf32>
    %147 = vector.broadcast %146 : vector<8x1xf32> to vector<8x128xf32>
    %148 = arith.mulf %143, %147 : vector<8x128xf32>
    %c0_71 = arith.constant 0 : index
    %c0_72 = arith.constant 0 : index
    %149 = vector.load %arg9[%c0_71, %c0_72] : memref<1x128xf32, #tpu.memory_space<vmem>>, vector<1x128xf32>
    %150 = vector.broadcast %149 : vector<1x128xf32> to vector<8x128xf32>
    %151 = arith.mulf %148, %150 : vector<8x128xf32>
    %c0_73 = arith.constant 0 : index
    %c0_74 = arith.constant 0 : index
    %152 = vector.load %arg10[%c0_73, %c0_74] : memref<1x128xf32, #tpu.memory_space<vmem>>, vector<1x128xf32>
    %153 = vector.broadcast %152 : vector<1x128xf32> to vector<8x128xf32>
    %154 = arith.addf %151, %153 : vector<8x128xf32>
    %c0_75 = arith.constant 0 : index
    %c0_76 = arith.constant 0 : index
    %c0_77 = arith.constant 0 : index
    %155 = vector.load %arg11[%c0_75, %c0_76, %c0_77] : memref<1x8x128xf32, #tpu.memory_space<vmem>>, vector<1x8x128xf32>
    %156 = vector.shape_cast %155 : vector<1x8x128xf32> to vector<8x128xf32>
    %157 = vector.shape_cast %154 : vector<8x128xf32> to vector<1x8x128xf32>
    tpu.vector_store %arg11[%c0_75, %c0_76, %c0_77], %157 {strides = array<i32>} : memref<1x8x128xf32, #tpu.memory_space<vmem>>, vector<1x8x128xf32>,
    return
  }
  func.func @transform_0(%arg0: i32) -> (i32, i32, i32) {
    %c0_i32 = arith.constant 0 : i32
    %c0_i32_0 = arith.constant 0 : i32
    %c0_i32_1 = arith.constant 0 : i32
    return %arg0, %c0_i32, %c0_i32_0 : i32, i32, i32
  }
  func.func @transform_1(%arg0: i32) -> (i32, i32, i32) {
    %c0_i32 = arith.constant 0 : i32
    %c0_i32_0 = arith.constant 0 : i32
    %c0_i32_1 = arith.constant 0 : i32
    return %arg0, %c0_i32, %c0_i32_0 : i32, i32, i32
  }
  func.func @transform_2(%arg0: i32) -> (i32, i32) {
    %c0_i32 = arith.constant 0 : i32
    %c0_i32_0 = arith.constant 0 : i32
    %c0_i32_1 = arith.constant 0 : i32
    return %c0_i32, %c0_i32_0 : i32, i32
  }
  func.func @transform_3(%arg0: i32) -> (i32, i32) {
    %c0_i32 = arith.constant 0 : i32
    %c0_i32_0 = arith.constant 0 : i32
    %c0_i32_1 = arith.constant 0 : i32
    return %c0_i32, %c0_i32_0 : i32, i32
  }
  func.func @transform_4(%arg0: i32) -> (i32, i32) {
    %c0_i32 = arith.constant 0 : i32
    %c0_i32_0 = arith.constant 0 : i32
    %c0_i32_1 = arith.constant 0 : i32
    return %c0_i32, %c0_i32_0 : i32, i32
  }
  func.func @transform_5(%arg0: i32) -> (i32, i32) {
    %c0_i32 = arith.constant 0 : i32
    %c0_i32_0 = arith.constant 0 : i32
    %c0_i32_1 = arith.constant 0 : i32
    return %c0_i32, %c0_i32_0 : i32, i32
  }
  func.func @transform_6(%arg0: i32) -> (i32, i32) {
    %c0_i32 = arith.constant 0 : i32
    %c0_i32_0 = arith.constant 0 : i32
    %c0_i32_1 = arith.constant 0 : i32
    return %c0_i32, %c0_i32_0 : i32, i32
  }
  func.func @transform_7(%arg0: i32) -> (i32, i32) {
    %c0_i32 = arith.constant 0 : i32
    %c0_i32_0 = arith.constant 0 : i32
    %c0_i32_1 = arith.constant 0 : i32
    return %c0_i32, %c0_i32_0 : i32, i32
  }
  func.func @transform_8(%arg0: i32) -> (i32, i32) {
    %c0_i32 = arith.constant 0 : i32
    %c0_i32_0 = arith.constant 0 : i32
    %c0_i32_1 = arith.constant 0 : i32
    return %c0_i32, %c0_i32_0 : i32, i32
  }
  func.func @transform_9(%arg0: i32) -> (i32, i32) {
    %c0_i32 = arith.constant 0 : i32
    %c0_i32_0 = arith.constant 0 : i32
    %c0_i32_1 = arith.constant 0 : i32
    return %c0_i32, %c0_i32_0 : i32, i32
  }
  func.func @transform_10(%arg0: i32) -> (i32, i32, i32) {
    %c0_i32 = arith.constant 0 : i32
    %c0_i32_0 = arith.constant 0 : i32
    %c0_i32_1 = arith.constant 0 : i32
    return %arg0, %c0_i32, %c0_i32_0 : i32, i32, i32
  }
}

module attributes {stable_mosaic.version = 11 : i64} {
  func.func @_attn_block_kernel(%arg0: i32, %arg1: memref<1x8x128xf32, #tpu.memory_space<vmem>>, %arg2: memref<1x16x128xf32, #tpu.memory_space<vmem>>, %arg3: memref<128x128xbf16, #tpu.memory_space<vmem>>, %arg4: memref<1x128xf32, #tpu.memory_space<vmem>>, %arg5: memref<128x256xbf16, #tpu.memory_space<vmem>>, %arg6: memref<1x256xf32, #tpu.memory_space<vmem>>, %arg7: memref<128x128xbf16, #tpu.memory_space<vmem>>, %arg8: memref<1x128xf32, #tpu.memory_space<vmem>>, %arg9: memref<1x128xf32, #tpu.memory_space<vmem>>, %arg10: memref<1x128xf32, #tpu.memory_space<vmem>>, %arg11: memref<1x8x128xf32, #tpu.memory_space<vmem>>, %arg12: memref<1x8x16xf32, #tpu.memory_space<vmem>>, %arg13: memref<8x128xf32, #tpu.memory_space<vmem>>) attributes {dimension_semantics = [#tpu.dimension_semantics<parallel>], iteration_bounds = array<i64: 2>, scalar_prefetch = 0 : i64, scratch_operands = 1 : i64, tpu.core_type = #tpu.core_type<tc>, window_params = [{transform_indices = @transform_0, window_bounds = array<i64: 1, 8, 128>}, {transform_indices = @transform_1, window_bounds = array<i64: 1, 16, 128>}, {pipeline_mode = #tpu.pipeline_mode<synchronous>, transform_indices = @transform_2, window_bounds = array<i64: 128, 128>}, {pipeline_mode = #tpu.pipeline_mode<synchronous>, transform_indices = @transform_3, window_bounds = array<i64: 1, 128>}, {pipeline_mode = #tpu.pipeline_mode<synchronous>, transform_indices = @transform_4, window_bounds = array<i64: 128, 256>}, {pipeline_mode = #tpu.pipeline_mode<synchronous>, transform_indices = @transform_5, window_bounds = array<i64: 1, 256>}, {pipeline_mode = #tpu.pipeline_mode<synchronous>, transform_indices = @transform_6, window_bounds = array<i64: 128, 128>}, {pipeline_mode = #tpu.pipeline_mode<synchronous>, transform_indices = @transform_7, window_bounds = array<i64: 1, 128>}, {pipeline_mode = #tpu.pipeline_mode<synchronous>, transform_indices = @transform_8, window_bounds = array<i64: 1, 128>}, {pipeline_mode = #tpu.pipeline_mode<synchronous>, transform_indices = @transform_9, window_bounds = array<i64: 1, 128>}, {transform_indices = @transform_10, window_bounds = array<i64: 1, 8, 128>}, {transform_indices = @transform_11, window_bounds = array<i64: 1, 8, 16>}]} {
    %c0 = arith.constant 0 : index
    %c0_0 = arith.constant 0 : index
    %c0_1 = arith.constant 0 : index
    %0 = vector.load %arg1[%c0, %c0_0, %c0_1] : memref<1x8x128xf32, #tpu.memory_space<vmem>>, vector<1x8x128xf32>
    %1 = vector.shape_cast %0 : vector<1x8x128xf32> to vector<8x128xf32>
    %2 = arith.truncf %1 : vector<8x128xf32> to vector<8x128xbf16>
    %c0_2 = arith.constant 0 : index
    %c0_3 = arith.constant 0 : index
    %3 = vector.load %arg3[%c0_2, %c0_3] : memref<128x128xbf16, #tpu.memory_space<vmem>>, vector<128x128xbf16>
    %cst = arith.constant dense<0.000000e+00> : vector<8x128xf32>
    %4 = tpu.matmul %2, %3, %cst {dimension_numbers = #tpu.dot_dimension_numbers<[1], [0], [0], [1], [0, 0, 1, 1], [], []>} : vector<8x128xbf16>, vector<128x128xbf16>, vector<8x128xf32> -> vector<8x128xf32>
    %c0_4 = arith.constant 0 : index
    %c0_5 = arith.constant 0 : index
    %5 = vector.load %arg4[%c0_4, %c0_5] : memref<1x128xf32, #tpu.memory_space<vmem>>, vector<1x128xf32>
    %6 = vector.broadcast %5 : vector<1x128xf32> to vector<8x128xf32>
    %7 = arith.addf %4, %6 : vector<8x128xf32>
    %c0_6 = arith.constant 0 : index
    %c0_7 = arith.constant 0 : index
    %c0_8 = arith.constant 0 : index
    %8 = vector.load %arg2[%c0_6, %c0_7, %c0_8] : memref<1x16x128xf32, #tpu.memory_space<vmem>>, vector<1x16x128xf32>
    %9 = vector.shape_cast %8 : vector<1x16x128xf32> to vector<16x128xf32>
    %10 = arith.truncf %9 : vector<16x128xf32> to vector<16x128xbf16>
    %c0_9 = arith.constant 0 : index
    %c0_10 = arith.constant 0 : index
    %11 = vector.load %arg5[%c0_9, %c0_10] : memref<128x256xbf16, #tpu.memory_space<vmem>>, vector<128x256xbf16>
    %cst_11 = arith.constant dense<0.000000e+00> : vector<16x256xf32>
    %12 = tpu.matmul %10, %11, %cst_11 {dimension_numbers = #tpu.dot_dimension_numbers<[1], [0], [0], [1], [0, 0, 1, 1], [], []>} : vector<16x128xbf16>, vector<128x256xbf16>, vector<16x256xf32> -> vector<16x256xf32>
    %c0_12 = arith.constant 0 : index
    %c0_13 = arith.constant 0 : index
    %13 = vector.load %arg6[%c0_12, %c0_13] : memref<1x256xf32, #tpu.memory_space<vmem>>, vector<1x256xf32>
    %14 = vector.broadcast %13 : vector<1x256xf32> to vector<16x256xf32>
    %15 = arith.addf %12, %14 : vector<16x256xf32>
    %cst_14 = arith.constant 0.000000e+00 : f32
    %16 = vector.broadcast %cst_14 : f32 to vector<8x16xf32>
    %c0_15 = arith.constant 0 : index
    %c0_16 = arith.constant 0 : index
    %c0_17 = arith.constant 0 : index
    %17 = vector.load %arg12[%c0_15, %c0_16, %c0_17] : memref<1x8x16xf32, #tpu.memory_space<vmem>>, vector<1x8x16xf32>
    %18 = vector.shape_cast %17 : vector<1x8x16xf32> to vector<8x16xf32>
    %19 = vector.shape_cast %16 : vector<8x16xf32> to vector<1x8x16xf32>
    tpu.vector_store %arg12[%c0_15, %c0_16, %c0_17], %19 {strides = array<i32>} : memref<1x8x16xf32, #tpu.memory_space<vmem>>, vector<1x8x16xf32>,
    %cst_18 = arith.constant 0.000000e+00 : f32
    %20 = vector.broadcast %cst_18 : f32 to vector<8x128xf32>
    %c0_19 = arith.constant 0 : index
    %c0_20 = arith.constant 0 : index
    %21 = vector.load %arg13[%c0_19, %c0_20] : memref<8x128xf32, #tpu.memory_space<vmem>>, vector<8x128xf32>
    tpu.vector_store %arg13[%c0_19, %c0_20], %20 {strides = array<i32>} : memref<8x128xf32, #tpu.memory_space<vmem>>, vector<8x128xf32>,
    %22 = vector.extract_strided_slice %7 {offsets = [0, 0], sizes = [8, 32], strides = [1, 1]} : vector<8x128xf32> to vector<8x32xf32>
    %23 = vector.extract_strided_slice %15 {offsets = [0, 0], sizes = [16, 32], strides = [1, 1]} : vector<16x256xf32> to vector<16x32xf32>
    %24 = vector.extract_strided_slice %15 {offsets = [0, 128], sizes = [16, 32], strides = [1, 1]} : vector<16x256xf32> to vector<16x32xf32>
    %25 = arith.truncf %22 : vector<8x32xf32> to vector<8x32xbf16>
    %26 = arith.truncf %23 : vector<16x32xf32> to vector<16x32xbf16>
    %cst_21 = arith.constant dense<0.000000e+00> : vector<8x16xf32>
    %27 = tpu.matmul %25, %26, %cst_21 {dimension_numbers = #tpu.dot_dimension_numbers<[1], [1], [0], [0], [0, 0, 1, 0], [], []>} : vector<8x32xbf16>, vector<16x32xbf16>, vector<8x16xf32> -> vector<8x16xf32>
    %cst_22 = arith.constant 0.176776692 : f32
    %28 = vector.broadcast %cst_22 : f32 to vector<8x16xf32>
    %29 = arith.mulf %27, %28 : vector<8x16xf32>
    %cst_23 = arith.constant dense<0xFF800000> : vector<8xf32>
    %30 = vector.multi_reduction <maximumf>, %29, %cst_23 [1] : vector<8x16xf32> to vector<8xf32>
    %31 = vector.shape_cast %30 : vector<8xf32> to vector<8x1xf32>
    %32 = vector.broadcast %31 : vector<8x1xf32> to vector<8x16xf32>
    %33 = arith.subf %29, %32 : vector<8x16xf32>
    %34 = math.exp %33 : vector<8x16xf32>
    %cst_24 = arith.constant dense<0.000000e+00> : vector<8xf32>
    %35 = vector.multi_reduction <add>, %34, %cst_24 [1] : vector<8x16xf32> to vector<8xf32>
    %36 = vector.shape_cast %35 : vector<8xf32> to vector<8x1xf32>
    %37 = tpu.reciprocal %36 {approx = true} : vector<8x1xf32> -> vector<8x1xf32>
    %38 = vector.broadcast %37 : vector<8x1xf32> to vector<8x16xf32>
    %39 = arith.mulf %34, %38 : vector<8x16xf32>
    %c0_25 = arith.constant 0 : index
    %c0_26 = arith.constant 0 : index
    %c0_27 = arith.constant 0 : index
    %40 = vector.load %arg12[%c0_25, %c0_26, %c0_27] : memref<1x8x16xf32, #tpu.memory_space<vmem>>, vector<1x8x16xf32>
    %41 = vector.shape_cast %40 : vector<1x8x16xf32> to vector<8x16xf32>
    %cst_28 = arith.constant 2.500000e-01 : f32
    %42 = vector.broadcast %cst_28 : f32 to vector<8x16xf32>
    %43 = arith.mulf %39, %42 : vector<8x16xf32>
    %44 = arith.addf %41, %43 : vector<8x16xf32>
    %c0_29 = arith.constant 0 : index
    %c0_30 = arith.constant 0 : index
    %c0_31 = arith.constant 0 : index
    %45 = vector.load %arg12[%c0_29, %c0_30, %c0_31] : memref<1x8x16xf32, #tpu.memory_space<vmem>>, vector<1x8x16xf32>
    %46 = vector.shape_cast %45 : vector<1x8x16xf32> to vector<8x16xf32>
    %47 = vector.shape_cast %44 : vector<8x16xf32> to vector<1x8x16xf32>
    tpu.vector_store %arg12[%c0_29, %c0_30, %c0_31], %47 {strides = array<i32>} : memref<1x8x16xf32, #tpu.memory_space<vmem>>, vector<1x8x16xf32>,
    %48 = arith.truncf %39 : vector<8x16xf32> to vector<8x16xbf16>
    %49 = arith.truncf %24 : vector<16x32xf32> to vector<16x32xbf16>
    %cst_32 = arith.constant dense<0.000000e+00> : vector<8x32xf32>
    %50 = tpu.matmul %48, %49, %cst_32 {dimension_numbers = #tpu.dot_dimension_numbers<[1], [0], [0], [1], [0, 0, 1, 1], [], []>} : vector<8x16xbf16>, vector<16x32xbf16>, vector<8x32xf32> -> vector<8x32xf32>
    %c0_33 = arith.constant 0 : index
    %c0_34 = arith.constant 0 : index
    %51 = vector.load %arg13[%c0_33, %c0_34] : memref<8x128xf32, #tpu.memory_space<vmem>>, vector<8x128xf32>
    %52 = arith.truncf %50 : vector<8x32xf32> to vector<8x32xbf16>
    %c0_35 = arith.constant 0 : index
    %c0_36 = arith.constant 0 : index
    %53 = vector.load %arg7[%c0_35, %c0_36] : memref<128x128xbf16, #tpu.memory_space<vmem>>, vector<32x128xbf16>
    %cst_37 = arith.constant dense<0.000000e+00> : vector<8x128xf32>
    %54 = tpu.matmul %52, %53, %cst_37 {dimension_numbers = #tpu.dot_dimension_numbers<[1], [0], [0], [1], [0, 0, 1, 1], [], []>} : vector<8x32xbf16>, vector<32x128xbf16>, vector<8x128xf32> -> vector<8x128xf32>
    %55 = arith.addf %51, %54 : vector<8x128xf32>
    %c0_38 = arith.constant 0 : index
    %c0_39 = arith.constant 0 : index
    %56 = vector.load %arg13[%c0_38, %c0_39] : memref<8x128xf32, #tpu.memory_space<vmem>>, vector<8x128xf32>
    tpu.vector_store %arg13[%c0_38, %c0_39], %55 {strides = array<i32>} : memref<8x128xf32, #tpu.memory_space<vmem>>, vector<8x128xf32>,
    %57 = vector.extract_strided_slice %7 {offsets = [0, 32], sizes = [8, 32], strides = [1, 1]} : vector<8x128xf32> to vector<8x32xf32>
    %58 = vector.extract_strided_slice %15 {offsets = [0, 32], sizes = [16, 32], strides = [1, 1]} : vector<16x256xf32> to vector<16x32xf32>
    %59 = vector.extract_strided_slice %15 {offsets = [0, 160], sizes = [16, 32], strides = [1, 1]} : vector<16x256xf32> to vector<16x32xf32>
    %60 = arith.truncf %57 : vector<8x32xf32> to vector<8x32xbf16>
    %61 = arith.truncf %58 : vector<16x32xf32> to vector<16x32xbf16>
    %cst_40 = arith.constant dense<0.000000e+00> : vector<8x16xf32>
    %62 = tpu.matmul %60, %61, %cst_40 {dimension_numbers = #tpu.dot_dimension_numbers<[1], [1], [0], [0], [0, 0, 1, 0], [], []>} : vector<8x32xbf16>, vector<16x32xbf16>, vector<8x16xf32> -> vector<8x16xf32>
    %cst_41 = arith.constant 0.176776692 : f32
    %63 = vector.broadcast %cst_41 : f32 to vector<8x16xf32>
    %64 = arith.mulf %62, %63 : vector<8x16xf32>
    %cst_42 = arith.constant dense<0xFF800000> : vector<8xf32>
    %65 = vector.multi_reduction <maximumf>, %64, %cst_42 [1] : vector<8x16xf32> to vector<8xf32>
    %66 = vector.shape_cast %65 : vector<8xf32> to vector<8x1xf32>
    %67 = vector.broadcast %66 : vector<8x1xf32> to vector<8x16xf32>
    %68 = arith.subf %64, %67 : vector<8x16xf32>
    %69 = math.exp %68 : vector<8x16xf32>
    %cst_43 = arith.constant dense<0.000000e+00> : vector<8xf32>
    %70 = vector.multi_reduction <add>, %69, %cst_43 [1] : vector<8x16xf32> to vector<8xf32>
    %71 = vector.shape_cast %70 : vector<8xf32> to vector<8x1xf32>
    %72 = tpu.reciprocal %71 {approx = true} : vector<8x1xf32> -> vector<8x1xf32>
    %73 = vector.broadcast %72 : vector<8x1xf32> to vector<8x16xf32>
    %74 = arith.mulf %69, %73 : vector<8x16xf32>
    %c0_44 = arith.constant 0 : index
    %c0_45 = arith.constant 0 : index
    %c0_46 = arith.constant 0 : index
    %75 = vector.load %arg12[%c0_44, %c0_45, %c0_46] : memref<1x8x16xf32, #tpu.memory_space<vmem>>, vector<1x8x16xf32>
    %76 = vector.shape_cast %75 : vector<1x8x16xf32> to vector<8x16xf32>
    %cst_47 = arith.constant 2.500000e-01 : f32
    %77 = vector.broadcast %cst_47 : f32 to vector<8x16xf32>
    %78 = arith.mulf %74, %77 : vector<8x16xf32>
    %79 = arith.addf %76, %78 : vector<8x16xf32>
    %c0_48 = arith.constant 0 : index
    %c0_49 = arith.constant 0 : index
    %c0_50 = arith.constant 0 : index
    %80 = vector.load %arg12[%c0_48, %c0_49, %c0_50] : memref<1x8x16xf32, #tpu.memory_space<vmem>>, vector<1x8x16xf32>
    %81 = vector.shape_cast %80 : vector<1x8x16xf32> to vector<8x16xf32>
    %82 = vector.shape_cast %79 : vector<8x16xf32> to vector<1x8x16xf32>
    tpu.vector_store %arg12[%c0_48, %c0_49, %c0_50], %82 {strides = array<i32>} : memref<1x8x16xf32, #tpu.memory_space<vmem>>, vector<1x8x16xf32>,
    %83 = arith.truncf %74 : vector<8x16xf32> to vector<8x16xbf16>
    %84 = arith.truncf %59 : vector<16x32xf32> to vector<16x32xbf16>
    %cst_51 = arith.constant dense<0.000000e+00> : vector<8x32xf32>
    %85 = tpu.matmul %83, %84, %cst_51 {dimension_numbers = #tpu.dot_dimension_numbers<[1], [0], [0], [1], [0, 0, 1, 1], [], []>} : vector<8x16xbf16>, vector<16x32xbf16>, vector<8x32xf32> -> vector<8x32xf32>
    %c0_52 = arith.constant 0 : index
    %c0_53 = arith.constant 0 : index
    %86 = vector.load %arg13[%c0_52, %c0_53] : memref<8x128xf32, #tpu.memory_space<vmem>>, vector<8x128xf32>
    %87 = arith.truncf %85 : vector<8x32xf32> to vector<8x32xbf16>
    %c32 = arith.constant 32 : index
    %c0_54 = arith.constant 0 : index
    %88 = vector.load %arg7[%c32, %c0_54] : memref<128x128xbf16, #tpu.memory_space<vmem>>, vector<32x128xbf16>
    %cst_55 = arith.constant dense<0.000000e+00> : vector<8x128xf32>
    %89 = tpu.matmul %87, %88, %cst_55 {dimension_numbers = #tpu.dot_dimension_numbers<[1], [0], [0], [1], [0, 0, 1, 1], [], []>} : vector<8x32xbf16>, vector<32x128xbf16>, vector<8x128xf32> -> vector<8x128xf32>
    %90 = arith.addf %86, %89 : vector<8x128xf32>
    %c0_56 = arith.constant 0 : index
    %c0_57 = arith.constant 0 : index
    %91 = vector.load %arg13[%c0_56, %c0_57] : memref<8x128xf32, #tpu.memory_space<vmem>>, vector<8x128xf32>
    tpu.vector_store %arg13[%c0_56, %c0_57], %90 {strides = array<i32>} : memref<8x128xf32, #tpu.memory_space<vmem>>, vector<8x128xf32>,
    %92 = vector.extract_strided_slice %7 {offsets = [0, 64], sizes = [8, 32], strides = [1, 1]} : vector<8x128xf32> to vector<8x32xf32>
    %93 = vector.extract_strided_slice %15 {offsets = [0, 64], sizes = [16, 32], strides = [1, 1]} : vector<16x256xf32> to vector<16x32xf32>
    %94 = vector.extract_strided_slice %15 {offsets = [0, 192], sizes = [16, 32], strides = [1, 1]} : vector<16x256xf32> to vector<16x32xf32>
    %95 = arith.truncf %92 : vector<8x32xf32> to vector<8x32xbf16>
    %96 = arith.truncf %93 : vector<16x32xf32> to vector<16x32xbf16>
    %cst_58 = arith.constant dense<0.000000e+00> : vector<8x16xf32>
    %97 = tpu.matmul %95, %96, %cst_58 {dimension_numbers = #tpu.dot_dimension_numbers<[1], [1], [0], [0], [0, 0, 1, 0], [], []>} : vector<8x32xbf16>, vector<16x32xbf16>, vector<8x16xf32> -> vector<8x16xf32>
    %cst_59 = arith.constant 0.176776692 : f32
    %98 = vector.broadcast %cst_59 : f32 to vector<8x16xf32>
    %99 = arith.mulf %97, %98 : vector<8x16xf32>
    %cst_60 = arith.constant dense<0xFF800000> : vector<8xf32>
    %100 = vector.multi_reduction <maximumf>, %99, %cst_60 [1] : vector<8x16xf32> to vector<8xf32>
    %101 = vector.shape_cast %100 : vector<8xf32> to vector<8x1xf32>
    %102 = vector.broadcast %101 : vector<8x1xf32> to vector<8x16xf32>
    %103 = arith.subf %99, %102 : vector<8x16xf32>
    %104 = math.exp %103 : vector<8x16xf32>
    %cst_61 = arith.constant dense<0.000000e+00> : vector<8xf32>
    %105 = vector.multi_reduction <add>, %104, %cst_61 [1] : vector<8x16xf32> to vector<8xf32>
    %106 = vector.shape_cast %105 : vector<8xf32> to vector<8x1xf32>
    %107 = tpu.reciprocal %106 {approx = true} : vector<8x1xf32> -> vector<8x1xf32>
    %108 = vector.broadcast %107 : vector<8x1xf32> to vector<8x16xf32>
    %109 = arith.mulf %104, %108 : vector<8x16xf32>
    %c0_62 = arith.constant 0 : index
    %c0_63 = arith.constant 0 : index
    %c0_64 = arith.constant 0 : index
    %110 = vector.load %arg12[%c0_62, %c0_63, %c0_64] : memref<1x8x16xf32, #tpu.memory_space<vmem>>, vector<1x8x16xf32>
    %111 = vector.shape_cast %110 : vector<1x8x16xf32> to vector<8x16xf32>
    %cst_65 = arith.constant 2.500000e-01 : f32
    %112 = vector.broadcast %cst_65 : f32 to vector<8x16xf32>
    %113 = arith.mulf %109, %112 : vector<8x16xf32>
    %114 = arith.addf %111, %113 : vector<8x16xf32>
    %c0_66 = arith.constant 0 : index
    %c0_67 = arith.constant 0 : index
    %c0_68 = arith.constant 0 : index
    %115 = vector.load %arg12[%c0_66, %c0_67, %c0_68] : memref<1x8x16xf32, #tpu.memory_space<vmem>>, vector<1x8x16xf32>
    %116 = vector.shape_cast %115 : vector<1x8x16xf32> to vector<8x16xf32>
    %117 = vector.shape_cast %114 : vector<8x16xf32> to vector<1x8x16xf32>
    tpu.vector_store %arg12[%c0_66, %c0_67, %c0_68], %117 {strides = array<i32>} : memref<1x8x16xf32, #tpu.memory_space<vmem>>, vector<1x8x16xf32>,
    %118 = arith.truncf %109 : vector<8x16xf32> to vector<8x16xbf16>
    %119 = arith.truncf %94 : vector<16x32xf32> to vector<16x32xbf16>
    %cst_69 = arith.constant dense<0.000000e+00> : vector<8x32xf32>
    %120 = tpu.matmul %118, %119, %cst_69 {dimension_numbers = #tpu.dot_dimension_numbers<[1], [0], [0], [1], [0, 0, 1, 1], [], []>} : vector<8x16xbf16>, vector<16x32xbf16>, vector<8x32xf32> -> vector<8x32xf32>
    %c0_70 = arith.constant 0 : index
    %c0_71 = arith.constant 0 : index
    %121 = vector.load %arg13[%c0_70, %c0_71] : memref<8x128xf32, #tpu.memory_space<vmem>>, vector<8x128xf32>
    %122 = arith.truncf %120 : vector<8x32xf32> to vector<8x32xbf16>
    %c64 = arith.constant 64 : index
    %c0_72 = arith.constant 0 : index
    %123 = vector.load %arg7[%c64, %c0_72] : memref<128x128xbf16, #tpu.memory_space<vmem>>, vector<32x128xbf16>
    %cst_73 = arith.constant dense<0.000000e+00> : vector<8x128xf32>
    %124 = tpu.matmul %122, %123, %cst_73 {dimension_numbers = #tpu.dot_dimension_numbers<[1], [0], [0], [1], [0, 0, 1, 1], [], []>} : vector<8x32xbf16>, vector<32x128xbf16>, vector<8x128xf32> -> vector<8x128xf32>
    %125 = arith.addf %121, %124 : vector<8x128xf32>
    %c0_74 = arith.constant 0 : index
    %c0_75 = arith.constant 0 : index
    %126 = vector.load %arg13[%c0_74, %c0_75] : memref<8x128xf32, #tpu.memory_space<vmem>>, vector<8x128xf32>
    tpu.vector_store %arg13[%c0_74, %c0_75], %125 {strides = array<i32>} : memref<8x128xf32, #tpu.memory_space<vmem>>, vector<8x128xf32>,
    %127 = vector.extract_strided_slice %7 {offsets = [0, 96], sizes = [8, 32], strides = [1, 1]} : vector<8x128xf32> to vector<8x32xf32>
    %128 = vector.extract_strided_slice %15 {offsets = [0, 96], sizes = [16, 32], strides = [1, 1]} : vector<16x256xf32> to vector<16x32xf32>
    %129 = vector.extract_strided_slice %15 {offsets = [0, 224], sizes = [16, 32], strides = [1, 1]} : vector<16x256xf32> to vector<16x32xf32>
    %130 = arith.truncf %127 : vector<8x32xf32> to vector<8x32xbf16>
    %131 = arith.truncf %128 : vector<16x32xf32> to vector<16x32xbf16>
    %cst_76 = arith.constant dense<0.000000e+00> : vector<8x16xf32>
    %132 = tpu.matmul %130, %131, %cst_76 {dimension_numbers = #tpu.dot_dimension_numbers<[1], [1], [0], [0], [0, 0, 1, 0], [], []>} : vector<8x32xbf16>, vector<16x32xbf16>, vector<8x16xf32> -> vector<8x16xf32>
    %cst_77 = arith.constant 0.176776692 : f32
    %133 = vector.broadcast %cst_77 : f32 to vector<8x16xf32>
    %134 = arith.mulf %132, %133 : vector<8x16xf32>
    %cst_78 = arith.constant dense<0xFF800000> : vector<8xf32>
    %135 = vector.multi_reduction <maximumf>, %134, %cst_78 [1] : vector<8x16xf32> to vector<8xf32>
    %136 = vector.shape_cast %135 : vector<8xf32> to vector<8x1xf32>
    %137 = vector.broadcast %136 : vector<8x1xf32> to vector<8x16xf32>
    %138 = arith.subf %134, %137 : vector<8x16xf32>
    %139 = math.exp %138 : vector<8x16xf32>
    %cst_79 = arith.constant dense<0.000000e+00> : vector<8xf32>
    %140 = vector.multi_reduction <add>, %139, %cst_79 [1] : vector<8x16xf32> to vector<8xf32>
    %141 = vector.shape_cast %140 : vector<8xf32> to vector<8x1xf32>
    %142 = tpu.reciprocal %141 {approx = true} : vector<8x1xf32> -> vector<8x1xf32>
    %143 = vector.broadcast %142 : vector<8x1xf32> to vector<8x16xf32>
    %144 = arith.mulf %139, %143 : vector<8x16xf32>
    %c0_80 = arith.constant 0 : index
    %c0_81 = arith.constant 0 : index
    %c0_82 = arith.constant 0 : index
    %145 = vector.load %arg12[%c0_80, %c0_81, %c0_82] : memref<1x8x16xf32, #tpu.memory_space<vmem>>, vector<1x8x16xf32>
    %146 = vector.shape_cast %145 : vector<1x8x16xf32> to vector<8x16xf32>
    %cst_83 = arith.constant 2.500000e-01 : f32
    %147 = vector.broadcast %cst_83 : f32 to vector<8x16xf32>
    %148 = arith.mulf %144, %147 : vector<8x16xf32>
    %149 = arith.addf %146, %148 : vector<8x16xf32>
    %c0_84 = arith.constant 0 : index
    %c0_85 = arith.constant 0 : index
    %c0_86 = arith.constant 0 : index
    %150 = vector.load %arg12[%c0_84, %c0_85, %c0_86] : memref<1x8x16xf32, #tpu.memory_space<vmem>>, vector<1x8x16xf32>
    %151 = vector.shape_cast %150 : vector<1x8x16xf32> to vector<8x16xf32>
    %152 = vector.shape_cast %149 : vector<8x16xf32> to vector<1x8x16xf32>
    tpu.vector_store %arg12[%c0_84, %c0_85, %c0_86], %152 {strides = array<i32>} : memref<1x8x16xf32, #tpu.memory_space<vmem>>, vector<1x8x16xf32>,
    %153 = arith.truncf %144 : vector<8x16xf32> to vector<8x16xbf16>
    %154 = arith.truncf %129 : vector<16x32xf32> to vector<16x32xbf16>
    %cst_87 = arith.constant dense<0.000000e+00> : vector<8x32xf32>
    %155 = tpu.matmul %153, %154, %cst_87 {dimension_numbers = #tpu.dot_dimension_numbers<[1], [0], [0], [1], [0, 0, 1, 1], [], []>} : vector<8x16xbf16>, vector<16x32xbf16>, vector<8x32xf32> -> vector<8x32xf32>
    %c0_88 = arith.constant 0 : index
    %c0_89 = arith.constant 0 : index
    %156 = vector.load %arg13[%c0_88, %c0_89] : memref<8x128xf32, #tpu.memory_space<vmem>>, vector<8x128xf32>
    %157 = arith.truncf %155 : vector<8x32xf32> to vector<8x32xbf16>
    %c96 = arith.constant 96 : index
    %c0_90 = arith.constant 0 : index
    %158 = vector.load %arg7[%c96, %c0_90] : memref<128x128xbf16, #tpu.memory_space<vmem>>, vector<32x128xbf16>
    %cst_91 = arith.constant dense<0.000000e+00> : vector<8x128xf32>
    %159 = tpu.matmul %157, %158, %cst_91 {dimension_numbers = #tpu.dot_dimension_numbers<[1], [0], [0], [1], [0, 0, 1, 1], [], []>} : vector<8x32xbf16>, vector<32x128xbf16>, vector<8x128xf32> -> vector<8x128xf32>
    %160 = arith.addf %156, %159 : vector<8x128xf32>
    %c0_92 = arith.constant 0 : index
    %c0_93 = arith.constant 0 : index
    %161 = vector.load %arg13[%c0_92, %c0_93] : memref<8x128xf32, #tpu.memory_space<vmem>>, vector<8x128xf32>
    tpu.vector_store %arg13[%c0_92, %c0_93], %160 {strides = array<i32>} : memref<8x128xf32, #tpu.memory_space<vmem>>, vector<8x128xf32>,
    %c0_94 = arith.constant 0 : index
    %c0_95 = arith.constant 0 : index
    %162 = vector.load %arg13[%c0_94, %c0_95] : memref<8x128xf32, #tpu.memory_space<vmem>>, vector<8x128xf32>
    %c0_96 = arith.constant 0 : index
    %c0_97 = arith.constant 0 : index
    %163 = vector.load %arg8[%c0_96, %c0_97] : memref<1x128xf32, #tpu.memory_space<vmem>>, vector<1x128xf32>
    %164 = vector.broadcast %163 : vector<1x128xf32> to vector<8x128xf32>
    %165 = arith.addf %162, %164 : vector<8x128xf32>
    %166 = arith.addf %1, %165 : vector<8x128xf32>
    %cst_98 = arith.constant dense<0.000000e+00> : vector<8xf32>
    %167 = vector.multi_reduction <add>, %166, %cst_98 [1] : vector<8x128xf32> to vector<8xf32>
    %168 = vector.shape_cast %167 : vector<8xf32> to vector<8x1xf32>
    %cst_99 = arith.constant 1.280000e+02 : f32
    %169 = vector.broadcast %cst_99 : f32 to vector<8x1xf32>
    %170 = arith.divf %168, %169 : vector<8x1xf32>
    %171 = vector.broadcast %170 : vector<8x1xf32> to vector<8x128xf32>
    %172 = arith.subf %166, %171 : vector<8x128xf32>
    %173 = arith.mulf %172, %172 : vector<8x128xf32>
    %cst_100 = arith.constant dense<0.000000e+00> : vector<8xf32>
    %174 = vector.multi_reduction <add>, %173, %cst_100 [1] : vector<8x128xf32> to vector<8xf32>
    %175 = vector.shape_cast %174 : vector<8xf32> to vector<8x1xf32>
    %cst_101 = arith.constant 1.280000e+02 : f32
    %176 = vector.broadcast %cst_101 : f32 to vector<8x1xf32>
    %177 = arith.divf %175, %176 : vector<8x1xf32>
    %178 = vector.broadcast %170 : vector<8x1xf32> to vector<8x128xf32>
    %179 = arith.subf %166, %178 : vector<8x128xf32>
    %cst_102 = arith.constant 9.99999974E-6 : f32
    %180 = vector.broadcast %cst_102 : f32 to vector<8x1xf32>
    %181 = arith.addf %177, %180 : vector<8x1xf32>
    %182 = math.rsqrt %181 : vector<8x1xf32>
    %183 = vector.broadcast %182 : vector<8x1xf32> to vector<8x128xf32>
    %184 = arith.mulf %179, %183 : vector<8x128xf32>
    %c0_103 = arith.constant 0 : index
    %c0_104 = arith.constant 0 : index
    %185 = vector.load %arg9[%c0_103, %c0_104] : memref<1x128xf32, #tpu.memory_space<vmem>>, vector<1x128xf32>
    %186 = vector.broadcast %185 : vector<1x128xf32> to vector<8x128xf32>
    %187 = arith.mulf %184, %186 : vector<8x128xf32>
    %c0_105 = arith.constant 0 : index
    %c0_106 = arith.constant 0 : index
    %188 = vector.load %arg10[%c0_105, %c0_106] : memref<1x128xf32, #tpu.memory_space<vmem>>, vector<1x128xf32>
    %189 = vector.broadcast %188 : vector<1x128xf32> to vector<8x128xf32>
    %190 = arith.addf %187, %189 : vector<8x128xf32>
    %c0_107 = arith.constant 0 : index
    %c0_108 = arith.constant 0 : index
    %c0_109 = arith.constant 0 : index
    %191 = vector.load %arg11[%c0_107, %c0_108, %c0_109] : memref<1x8x128xf32, #tpu.memory_space<vmem>>, vector<1x8x128xf32>
    %192 = vector.shape_cast %191 : vector<1x8x128xf32> to vector<8x128xf32>
    %193 = vector.shape_cast %190 : vector<8x128xf32> to vector<1x8x128xf32>
    tpu.vector_store %arg11[%c0_107, %c0_108, %c0_109], %193 {strides = array<i32>} : memref<1x8x128xf32, #tpu.memory_space<vmem>>, vector<1x8x128xf32>,
    return
  }
  func.func @transform_0(%arg0: i32) -> (i32, i32, i32) {
    %c0_i32 = arith.constant 0 : i32
    %c0_i32_0 = arith.constant 0 : i32
    %c0_i32_1 = arith.constant 0 : i32
    return %arg0, %c0_i32, %c0_i32_0 : i32, i32, i32
  }
  func.func @transform_1(%arg0: i32) -> (i32, i32, i32) {
    %c0_i32 = arith.constant 0 : i32
    %c0_i32_0 = arith.constant 0 : i32
    %c0_i32_1 = arith.constant 0 : i32
    return %arg0, %c0_i32, %c0_i32_0 : i32, i32, i32
  }
  func.func @transform_2(%arg0: i32) -> (i32, i32) {
    %c0_i32 = arith.constant 0 : i32
    %c0_i32_0 = arith.constant 0 : i32
    %c0_i32_1 = arith.constant 0 : i32
    return %c0_i32, %c0_i32_0 : i32, i32
  }
  func.func @transform_3(%arg0: i32) -> (i32, i32) {
    %c0_i32 = arith.constant 0 : i32
    %c0_i32_0 = arith.constant 0 : i32
    %c0_i32_1 = arith.constant 0 : i32
    return %c0_i32, %c0_i32_0 : i32, i32
  }
  func.func @transform_4(%arg0: i32) -> (i32, i32) {
    %c0_i32 = arith.constant 0 : i32
    %c0_i32_0 = arith.constant 0 : i32
    %c0_i32_1 = arith.constant 0 : i32
    return %c0_i32, %c0_i32_0 : i32, i32
  }
  func.func @transform_5(%arg0: i32) -> (i32, i32) {
    %c0_i32 = arith.constant 0 : i32
    %c0_i32_0 = arith.constant 0 : i32
    %c0_i32_1 = arith.constant 0 : i32
    return %c0_i32, %c0_i32_0 : i32, i32
  }
  func.func @transform_6(%arg0: i32) -> (i32, i32) {
    %c0_i32 = arith.constant 0 : i32
    %c0_i32_0 = arith.constant 0 : i32
    %c0_i32_1 = arith.constant 0 : i32
    return %c0_i32, %c0_i32_0 : i32, i32
  }
  func.func @transform_7(%arg0: i32) -> (i32, i32) {
    %c0_i32 = arith.constant 0 : i32
    %c0_i32_0 = arith.constant 0 : i32
    %c0_i32_1 = arith.constant 0 : i32
    return %c0_i32, %c0_i32_0 : i32, i32
  }
  func.func @transform_8(%arg0: i32) -> (i32, i32) {
    %c0_i32 = arith.constant 0 : i32
    %c0_i32_0 = arith.constant 0 : i32
    %c0_i32_1 = arith.constant 0 : i32
    return %c0_i32, %c0_i32_0 : i32, i32
  }
  func.func @transform_9(%arg0: i32) -> (i32, i32) {
    %c0_i32 = arith.constant 0 : i32
    %c0_i32_0 = arith.constant 0 : i32
    %c0_i32_1 = arith.constant 0 : i32
    return %c0_i32, %c0_i32_0 : i32, i32
  }
  func.func @transform_10(%arg0: i32) -> (i32, i32, i32) {
    %c0_i32 = arith.constant 0 : i32
    %c0_i32_0 = arith.constant 0 : i32
    %c0_i32_1 = arith.constant 0 : i32
    return %arg0, %c0_i32, %c0_i32_0 : i32, i32, i32
  }
  func.func @transform_11(%arg0: i32) -> (i32, i32, i32) {
    %c0_i32 = arith.constant 0 : i32
    %c0_i32_0 = arith.constant 0 : i32
    %c0_i32_1 = arith.constant 0 : i32
    return %arg0, %c0_i32, %c0_i32_0 : i32, i32, i32
  }
}

module attributes {stable_mosaic.version = 11 : i64} {
  func.func @_ffn_ln_kernel(%arg0: i32, %arg1: memref<1x8x128xf32, #tpu.memory_space<vmem>>, %arg2: memref<3x128x256xbf16, #tpu.memory_space<vmem>>, %arg3: memref<1x256xf32, #tpu.memory_space<vmem>>, %arg4: memref<3x256x128xbf16, #tpu.memory_space<vmem>>, %arg5: memref<1x128xf32, #tpu.memory_space<vmem>>, %arg6: memref<1x128xf32, #tpu.memory_space<vmem>>, %arg7: memref<1x128xf32, #tpu.memory_space<vmem>>, %arg8: memref<1x8x128xf32, #tpu.memory_space<vmem>>, %arg9: memref<12x128xbf16, #tpu.memory_space<vmem>>, %arg10: memref<12x256xbf16, #tpu.memory_space<vmem>>) attributes {dimension_semantics = [#tpu.dimension_semantics<parallel>], iteration_bounds = array<i64: 2>, scalar_prefetch = 0 : i64, scratch_operands = 2 : i64, tpu.core_type = #tpu.core_type<tc>, window_params = [{transform_indices = @transform_0, window_bounds = array<i64: 1, 8, 128>}, {pipeline_mode = #tpu.pipeline_mode<synchronous>, transform_indices = @transform_1, window_bounds = array<i64: 3, 128, 256>}, {pipeline_mode = #tpu.pipeline_mode<synchronous>, transform_indices = @transform_2, window_bounds = array<i64: 1, 256>}, {pipeline_mode = #tpu.pipeline_mode<synchronous>, transform_indices = @transform_3, window_bounds = array<i64: 3, 256, 128>}, {pipeline_mode = #tpu.pipeline_mode<synchronous>, transform_indices = @transform_4, window_bounds = array<i64: 1, 128>}, {pipeline_mode = #tpu.pipeline_mode<synchronous>, transform_indices = @transform_5, window_bounds = array<i64: 1, 128>}, {pipeline_mode = #tpu.pipeline_mode<synchronous>, transform_indices = @transform_6, window_bounds = array<i64: 1, 128>}, {transform_indices = @transform_7, window_bounds = array<i64: 1, 8, 128>}]} {
    %c0 = arith.constant 0 : index
    %c0_0 = arith.constant 0 : index
    %c0_1 = arith.constant 0 : index
    %0 = vector.load %arg1[%c0, %c0_0, %c0_1] : memref<1x8x128xf32, #tpu.memory_space<vmem>>, vector<1x8x128xf32>
    %1 = vector.shape_cast %0 : vector<1x8x128xf32> to vector<8x128xf32>
    %cst = arith.constant 0.000000e+00 : bf16
    %2 = vector.broadcast %cst : bf16 to vector<12x128xbf16>
    %c0_2 = arith.constant 0 : index
    %c0_3 = arith.constant 0 : index
    %3 = vector.load %arg9[%c0_2, %c0_3] : memref<12x128xbf16, #tpu.memory_space<vmem>>, vector<12x128xbf16>
    tpu.vector_store %arg9[%c0_2, %c0_3], %2 {strides = array<i32>} : memref<12x128xbf16, #tpu.memory_space<vmem>>, vector<12x128xbf16>,
    %4 = arith.truncf %1 : vector<8x128xf32> to vector<8x128xbf16>
    %c2 = arith.constant 2 : index
    %c0_4 = arith.constant 0 : index
    %5 = vector.load %arg9[%c2, %c0_4] : memref<12x128xbf16, #tpu.memory_space<vmem>>, vector<8x128xbf16>
    tpu.vector_store %arg9[%c2, %c0_4], %4 {strides = array<i32>} : memref<12x128xbf16, #tpu.memory_space<vmem>>, vector<8x128xbf16>,
    %cst_5 = arith.constant 0.000000e+00 : f32
    %6 = vector.broadcast %cst_5 : f32 to vector<8x256xf32>
    %c0_6 = arith.constant 0 : index
    %c0_7 = arith.constant 0 : index
    %7 = vector.load %arg3[%c0_6, %c0_7] : memref<1x256xf32, #tpu.memory_space<vmem>>, vector<1x256xf32>
    %8 = vector.broadcast %7 : vector<1x256xf32> to vector<8x256xf32>
    %9 = arith.addf %6, %8 : vector<8x256xf32>
    %c0_8 = arith.constant 0 : index
    %c0_9 = arith.constant 0 : index
    %10 = vector.load %arg9[%c0_8, %c0_9] : memref<12x128xbf16, #tpu.memory_space<vmem>>, vector<8x128xbf16>
    %c0_10 = arith.constant 0 : index
    %c0_11 = arith.constant 0 : index
    %c0_12 = arith.constant 0 : index
    %11 = vector.load %arg2[%c0_10, %c0_11, %c0_12] : memref<3x128x256xbf16, #tpu.memory_space<vmem>>, vector<1x128x256xbf16>
    %12 = vector.shape_cast %11 : vector<1x128x256xbf16> to vector<128x256xbf16>
    %cst_13 = arith.constant dense<0.000000e+00> : vector<8x256xf32>
    %13 = tpu.matmul %10, %12, %cst_13 {dimension_numbers = #tpu.dot_dimension_numbers<[1], [0], [0], [1], [0, 0, 1, 1], [], []>} : vector<8x128xbf16>, vector<128x256xbf16>, vector<8x256xf32> -> vector<8x256xf32>
    %14 = arith.addf %9, %13 : vector<8x256xf32>
    %c2_14 = arith.constant 2 : index
    %c0_15 = arith.constant 0 : index
    %15 = vector.load %arg9[%c2_14, %c0_15] : memref<12x128xbf16, #tpu.memory_space<vmem>>, vector<8x128xbf16>
    %c1 = arith.constant 1 : index
    %c0_16 = arith.constant 0 : index
    %c0_17 = arith.constant 0 : index
    %16 = vector.load %arg2[%c1, %c0_16, %c0_17] : memref<3x128x256xbf16, #tpu.memory_space<vmem>>, vector<1x128x256xbf16>
    %17 = vector.shape_cast %16 : vector<1x128x256xbf16> to vector<128x256xbf16>
    %cst_18 = arith.constant dense<0.000000e+00> : vector<8x256xf32>
    %18 = tpu.matmul %15, %17, %cst_18 {dimension_numbers = #tpu.dot_dimension_numbers<[1], [0], [0], [1], [0, 0, 1, 1], [], []>} : vector<8x128xbf16>, vector<128x256xbf16>, vector<8x256xf32> -> vector<8x256xf32>
    %19 = arith.addf %14, %18 : vector<8x256xf32>
    %c4 = arith.constant 4 : index
    %c0_19 = arith.constant 0 : index
    %20 = vector.load %arg9[%c4, %c0_19] : memref<12x128xbf16, #tpu.memory_space<vmem>>, vector<8x128xbf16>
    %c2_20 = arith.constant 2 : index
    %c0_21 = arith.constant 0 : index
    %c0_22 = arith.constant 0 : index
    %21 = vector.load %arg2[%c2_20, %c0_21, %c0_22] : memref<3x128x256xbf16, #tpu.memory_space<vmem>>, vector<1x128x256xbf16>
    %22 = vector.shape_cast %21 : vector<1x128x256xbf16> to vector<128x256xbf16>
    %cst_23 = arith.constant dense<0.000000e+00> : vector<8x256xf32>
    %23 = tpu.matmul %20, %22, %cst_23 {dimension_numbers = #tpu.dot_dimension_numbers<[1], [0], [0], [1], [0, 0, 1, 1], [], []>} : vector<8x128xbf16>, vector<128x256xbf16>, vector<8x256xf32> -> vector<8x256xf32>
    %24 = arith.addf %19, %23 : vector<8x256xf32>
    %cst_24 = arith.constant 5.000000e-01 : f32
    %25 = vector.broadcast %cst_24 : f32 to vector<8x256xf32>
    %26 = arith.mulf %25, %24 : vector<8x256xf32>
    %cst_25 = arith.constant 0.707106769 : f32
    %27 = vector.broadcast %cst_25 : f32 to vector<8x256xf32>
    %28 = arith.mulf %24, %27 : vector<8x256xf32>
    %29 = math.erf %28 : vector<8x256xf32>
    %cst_26 = arith.constant 1.000000e+00 : f32
    %30 = vector.broadcast %cst_26 : f32 to vector<8x256xf32>
    %31 = arith.addf %30, %29 : vector<8x256xf32>
    %32 = arith.mulf %26, %31 : vector<8x256xf32>
    %cst_27 = arith.constant 0.000000e+00 : bf16
    %33 = vector.broadcast %cst_27 : bf16 to vector<12x256xbf16>
    %c0_28 = arith.constant 0 : index
    %c0_29 = arith.constant 0 : index
    %34 = vector.load %arg10[%c0_28, %c0_29] : memref<12x256xbf16, #tpu.memory_space<vmem>>, vector<12x256xbf16>
    tpu.vector_store %arg10[%c0_28, %c0_29], %33 {strides = array<i32>} : memref<12x256xbf16, #tpu.memory_space<vmem>>, vector<12x256xbf16>,
    %35 = arith.truncf %32 : vector<8x256xf32> to vector<8x256xbf16>
    %c2_30 = arith.constant 2 : index
    %c0_31 = arith.constant 0 : index
    %36 = vector.load %arg10[%c2_30, %c0_31] : memref<12x256xbf16, #tpu.memory_space<vmem>>, vector<8x256xbf16>
    tpu.vector_store %arg10[%c2_30, %c0_31], %35 {strides = array<i32>} : memref<12x256xbf16, #tpu.memory_space<vmem>>, vector<8x256xbf16>,
    %cst_32 = arith.constant 0.000000e+00 : f32
    %37 = vector.broadcast %cst_32 : f32 to vector<8x128xf32>
    %c0_33 = arith.constant 0 : index
    %c0_34 = arith.constant 0 : index
    %38 = vector.load %arg5[%c0_33, %c0_34] : memref<1x128xf32, #tpu.memory_space<vmem>>, vector<1x128xf32>
    %39 = vector.broadcast %38 : vector<1x128xf32> to vector<8x128xf32>
    %40 = arith.addf %37, %39 : vector<8x128xf32>
    %c0_35 = arith.constant 0 : index
    %c0_36 = arith.constant 0 : index
    %41 = vector.load %arg10[%c0_35, %c0_36] : memref<12x256xbf16, #tpu.memory_space<vmem>>, vector<8x256xbf16>
    %c0_37 = arith.constant 0 : index
    %c0_38 = arith.constant 0 : index
    %c0_39 = arith.constant 0 : index
    %42 = vector.load %arg4[%c0_37, %c0_38, %c0_39] : memref<3x256x128xbf16, #tpu.memory_space<vmem>>, vector<1x256x128xbf16>
    %43 = vector.shape_cast %42 : vector<1x256x128xbf16> to vector<256x128xbf16>
    %cst_40 = arith.constant dense<0.000000e+00> : vector<8x128xf32>
    %44 = tpu.matmul %41, %43, %cst_40 {dimension_numbers = #tpu.dot_dimension_numbers<[1], [0], [0], [1], [0, 0, 1, 1], [], []>} : vector<8x256xbf16>, vector<256x128xbf16>, vector<8x128xf32> -> vector<8x128xf32>
    %45 = arith.addf %40, %44 : vector<8x128xf32>
    %c2_41 = arith.constant 2 : index
    %c0_42 = arith.constant 0 : index
    %46 = vector.load %arg10[%c2_41, %c0_42] : memref<12x256xbf16, #tpu.memory_space<vmem>>, vector<8x256xbf16>
    %c1_43 = arith.constant 1 : index
    %c0_44 = arith.constant 0 : index
    %c0_45 = arith.constant 0 : index
    %47 = vector.load %arg4[%c1_43, %c0_44, %c0_45] : memref<3x256x128xbf16, #tpu.memory_space<vmem>>, vector<1x256x128xbf16>
    %48 = vector.shape_cast %47 : vector<1x256x128xbf16> to vector<256x128xbf16>
    %cst_46 = arith.constant dense<0.000000e+00> : vector<8x128xf32>
    %49 = tpu.matmul %46, %48, %cst_46 {dimension_numbers = #tpu.dot_dimension_numbers<[1], [0], [0], [1], [0, 0, 1, 1], [], []>} : vector<8x256xbf16>, vector<256x128xbf16>, vector<8x128xf32> -> vector<8x128xf32>
    %50 = arith.addf %45, %49 : vector<8x128xf32>
    %c4_47 = arith.constant 4 : index
    %c0_48 = arith.constant 0 : index
    %51 = vector.load %arg10[%c4_47, %c0_48] : memref<12x256xbf16, #tpu.memory_space<vmem>>, vector<8x256xbf16>
    %c2_49 = arith.constant 2 : index
    %c0_50 = arith.constant 0 : index
    %c0_51 = arith.constant 0 : index
    %52 = vector.load %arg4[%c2_49, %c0_50, %c0_51] : memref<3x256x128xbf16, #tpu.memory_space<vmem>>, vector<1x256x128xbf16>
    %53 = vector.shape_cast %52 : vector<1x256x128xbf16> to vector<256x128xbf16>
    %cst_52 = arith.constant dense<0.000000e+00> : vector<8x128xf32>
    %54 = tpu.matmul %51, %53, %cst_52 {dimension_numbers = #tpu.dot_dimension_numbers<[1], [0], [0], [1], [0, 0, 1, 1], [], []>} : vector<8x256xbf16>, vector<256x128xbf16>, vector<8x128xf32> -> vector<8x128xf32>
    %55 = arith.addf %50, %54 : vector<8x128xf32>
    %56 = arith.addf %1, %55 : vector<8x128xf32>
    %cst_53 = arith.constant dense<0.000000e+00> : vector<8xf32>
    %57 = vector.multi_reduction <add>, %56, %cst_53 [1] : vector<8x128xf32> to vector<8xf32>
    %58 = vector.shape_cast %57 : vector<8xf32> to vector<8x1xf32>
    %cst_54 = arith.constant 1.280000e+02 : f32
    %59 = vector.broadcast %cst_54 : f32 to vector<8x1xf32>
    %60 = arith.divf %58, %59 : vector<8x1xf32>
    %61 = vector.broadcast %60 : vector<8x1xf32> to vector<8x128xf32>
    %62 = arith.subf %56, %61 : vector<8x128xf32>
    %63 = arith.mulf %62, %62 : vector<8x128xf32>
    %cst_55 = arith.constant dense<0.000000e+00> : vector<8xf32>
    %64 = vector.multi_reduction <add>, %63, %cst_55 [1] : vector<8x128xf32> to vector<8xf32>
    %65 = vector.shape_cast %64 : vector<8xf32> to vector<8x1xf32>
    %cst_56 = arith.constant 1.280000e+02 : f32
    %66 = vector.broadcast %cst_56 : f32 to vector<8x1xf32>
    %67 = arith.divf %65, %66 : vector<8x1xf32>
    %68 = vector.broadcast %60 : vector<8x1xf32> to vector<8x128xf32>
    %69 = arith.subf %56, %68 : vector<8x128xf32>
    %cst_57 = arith.constant 9.99999974E-6 : f32
    %70 = vector.broadcast %cst_57 : f32 to vector<8x1xf32>
    %71 = arith.addf %67, %70 : vector<8x1xf32>
    %72 = math.rsqrt %71 : vector<8x1xf32>
    %73 = vector.broadcast %72 : vector<8x1xf32> to vector<8x128xf32>
    %74 = arith.mulf %69, %73 : vector<8x128xf32>
    %c0_58 = arith.constant 0 : index
    %c0_59 = arith.constant 0 : index
    %75 = vector.load %arg6[%c0_58, %c0_59] : memref<1x128xf32, #tpu.memory_space<vmem>>, vector<1x128xf32>
    %76 = vector.broadcast %75 : vector<1x128xf32> to vector<8x128xf32>
    %77 = arith.mulf %74, %76 : vector<8x128xf32>
    %c0_60 = arith.constant 0 : index
    %c0_61 = arith.constant 0 : index
    %78 = vector.load %arg7[%c0_60, %c0_61] : memref<1x128xf32, #tpu.memory_space<vmem>>, vector<1x128xf32>
    %79 = vector.broadcast %78 : vector<1x128xf32> to vector<8x128xf32>
    %80 = arith.addf %77, %79 : vector<8x128xf32>
    %c0_62 = arith.constant 0 : index
    %c0_63 = arith.constant 0 : index
    %c0_64 = arith.constant 0 : index
    %81 = vector.load %arg8[%c0_62, %c0_63, %c0_64] : memref<1x8x128xf32, #tpu.memory_space<vmem>>, vector<1x8x128xf32>
    %82 = vector.shape_cast %81 : vector<1x8x128xf32> to vector<8x128xf32>
    %83 = vector.shape_cast %80 : vector<8x128xf32> to vector<1x8x128xf32>
    tpu.vector_store %arg8[%c0_62, %c0_63, %c0_64], %83 {strides = array<i32>} : memref<1x8x128xf32, #tpu.memory_space<vmem>>, vector<1x8x128xf32>,
    return
  }
  func.func @transform_0(%arg0: i32) -> (i32, i32, i32) {
    %c0_i32 = arith.constant 0 : i32
    %c0_i32_0 = arith.constant 0 : i32
    %c0_i32_1 = arith.constant 0 : i32
    return %arg0, %c0_i32, %c0_i32_0 : i32, i32, i32
  }
  func.func @transform_1(%arg0: i32) -> (i32, i32, i32) {
    %c0_i32 = arith.constant 0 : i32
    %c0_i32_0 = arith.constant 0 : i32
    %c0_i32_1 = arith.constant 0 : i32
    %c0_i32_2 = arith.constant 0 : i32
    return %c0_i32, %c0_i32_0, %c0_i32_1 : i32, i32, i32
  }
  func.func @transform_2(%arg0: i32) -> (i32, i32) {
    %c0_i32 = arith.constant 0 : i32
    %c0_i32_0 = arith.constant 0 : i32
    %c0_i32_1 = arith.constant 0 : i32
    return %c0_i32, %c0_i32_0 : i32, i32
  }
  func.func @transform_3(%arg0: i32) -> (i32, i32, i32) {
    %c0_i32 = arith.constant 0 : i32
    %c0_i32_0 = arith.constant 0 : i32
    %c0_i32_1 = arith.constant 0 : i32
    %c0_i32_2 = arith.constant 0 : i32
    return %c0_i32, %c0_i32_0, %c0_i32_1 : i32, i32, i32
  }
  func.func @transform_4(%arg0: i32) -> (i32, i32) {
    %c0_i32 = arith.constant 0 : i32
    %c0_i32_0 = arith.constant 0 : i32
    %c0_i32_1 = arith.constant 0 : i32
    return %c0_i32, %c0_i32_0 : i32, i32
  }
  func.func @transform_5(%arg0: i32) -> (i32, i32) {
    %c0_i32 = arith.constant 0 : i32
    %c0_i32_0 = arith.constant 0 : i32
    %c0_i32_1 = arith.constant 0 : i32
    return %c0_i32, %c0_i32_0 : i32, i32
  }
  func.func @transform_6(%arg0: i32) -> (i32, i32) {
    %c0_i32 = arith.constant 0 : i32
    %c0_i32_0 = arith.constant 0 : i32
    %c0_i32_1 = arith.constant 0 : i32
    return %c0_i32, %c0_i32_0 : i32, i32
  }
  func.func @transform_7(%arg0: i32) -> (i32, i32, i32) {
    %c0_i32 = arith.constant 0 : i32
    %c0_i32_0 = arith.constant 0 : i32
    %c0_i32_1 = arith.constant 0 : i32
    return %arg0, %c0_i32, %c0_i32_0 : i32, i32, i32
  }
}

</mosaic_0001>

<llo_original>
// kernel: decoder_layer.3
$region0: #{decoder_layer.3}
  #allocation0 [shape = 'u32[]', space=smem, size = 0x4, offset = 0x4, fixed_abs, tag = 'smem constant byte address 0x4 - core index']
  #allocation1 [shape = 'u32[144,128]{1,0:T(1,128)}', space=vmem, size = 0x12000, scoped, tag = 'internal scratch']
  #allocation2 [shape = 'f32[8,128]{1,0:T(8,128)}', space=vmem, size = 0x1000, scoped, tag = 'scratch operand']
  %s0 = inlined_call_operand.hbm [shape: f32[2,8,128], index: 0, kind: input, shape index: {}, may-alias: {0,1}]
  %s1 = inlined_call_operand.hbm [shape: f32[2,8,128], index: 1, kind: input, shape index: {}, may-alias: {0,1}]
  %s2 = inlined_call_operand.vmem [shape: bf16[128,128], index: 2, kind: input, shape index: {}]
  %s3 = inlined_call_operand.vmem [shape: f32[1,128], index: 3, kind: input, shape index: {}]
  %s4 = inlined_call_operand.hbm [shape: bf16[128,256], index: 4, kind: input, shape index: {}]
  %s5 = inlined_call_operand.vmem [shape: f32[1,256], index: 5, kind: input, shape index: {}]
  %s6 = inlined_call_operand.hbm [shape: bf16[128,128], index: 6, kind: input, shape index: {}]
  %s7 = inlined_call_operand.hbm [shape: f32[1,128], index: 7, kind: input, shape index: {}]
  %s8 = inlined_call_operand.hbm [shape: f32[1,128], index: 8, kind: input, shape index: {}]
  %s9 = inlined_call_operand.hbm [shape: f32[1,128], index: 9, kind: input, shape index: {}]
  %s10 = inlined_call_operand.vmem [shape: f32[2,8,128], index: 10, kind: output, shape index: {}]
  %s11 = sld [smem:[#allocation0]]
  $region101: #{decoder_layer.3} parent=0
    _
  %s13 = ssub.s32 1, %s11
  %s14 = scalar_select 0, %s13, %s11
  $region1: #{decoder_layer.3} parent=0
    #allocation3 [shape = 'u8[8192]{0}', space=vmem, size = 0x2000, scoped, tag = 'input window, operand 0']
    #allocation4 [shape = 's32[2]{0}', space=sflag, size = 0x8, scoped, tag = 'scoped memory for decoder_layer.3']
    #allocation5 [shape = 'u8[8192]{0}', space=vmem, size = 0x2000, scoped, tag = 'input window, operand 1']
    #allocation6 [shape = 's32[2]{0}', space=sflag, size = 0x8, scoped, tag = 'scoped memory for decoder_layer.3']
    #allocation7 [shape = 'u8[65536]{0}', space=vmem, size = 0x10000, scoped, tag = 'input window, operand 4, single buffered']
    #allocation8 [shape = 'u8[32768]{0}', space=vmem, size = 0x8000, scoped, tag = 'input window, operand 6, single buffered']
    #allocation9 [shape = 's32[1]{0}', space=sflag, size = 0x4, scoped, tag = 'scoped memory for decoder_layer.3']
    #allocation10 [shape = 'u8[512]{0}', space=vmem, size = 0x400, scoped, tag = 'input window, operand 7, single buffered']
    #allocation11 [shape = 'u8[512]{0}', space=vmem, size = 0x400, scoped, tag = 'input window, operand 8, single buffered']
    #allocation12 [shape = 's32[1]{0}', space=sflag, size = 0x4, scoped, tag = 'scoped memory for decoder_layer.3']
    #allocation13 [shape = 'u8[512]{0}', space=vmem, size = 0x400, scoped, tag = 'input window, operand 9, single buffered']
    %15 = vsyncpa [#allocation4], 0
    %s16 = scalar_lea.sflag [#allocation4], 1
    %17 = vsyncpa %s16, 0
    %18 = vsyncpa [#allocation6], 0
    %s19 = scalar_lea.sflag [#allocation6], 1
    %20 = vsyncpa %s19, 0
    %21 = vsyncpa [#allocation9], 0
    %22 = vsyncpa [#allocation12], 0
    loop: start=0, step=1, limit=4
    $region2: #{decoder_layer.3} parent=1 // loop_pre_header
      _
    $region3: #{decoder_layer.3} parent=1 // loop_header
      %s24 = sphi 0, %s28
      %p25 = scmp.ge.s32.totalorder %s24, 4
      %s34 = sphi 0, %s36
      %s37 = sphi 0, %s34
      %s38 = sphi 0, %s37
      %s54 = sphi 0, %s38
      %s60 = sphi 0, %s62
      %s63 = sphi 0, %s60
      %s64 = sphi 0, %s63
      %s80 = sphi 0, %s64
      %s84 = sphi 0, %s84
      %s86 = sphi 0, %s84
      %s87 = sphi 0, %s86
      %s101 = sphi 0, %s87
      %s105 = sphi 0, %s105
      %s107 = sphi 0, %s105
      %s108 = sphi 0, %s107
      %s122 = sphi 0, %s108
      %s126 = sphi 0, %s126
      %s128 = sphi 0, %s126
      %s129 = sphi 0, %s128
      %s143 = sphi 0, %s129
      %s147 = sphi 0, %s147
      %s149 = sphi 0, %s147
      %s150 = sphi 0, %s149
      %s164 = sphi 0, %s150
      %s168 = sphi 0, %s168
      %s170 = sphi 0, %s168
      %s171 = sphi 0, %s170
      %s185 = sphi 0, %s171
      %s189 = sphi 0, %s189
      %s191 = sphi 0, %s189
      %s192 = sphi 0, %s191
      %s206 = sphi 0, %s192
      %s210 = sphi 0, %s210
      %s212 = sphi 0, %s210
      %s213 = sphi 0, %s212
      %s227 = sphi 0, %s213
      %s231 = sphi 0, %s231
      %s233 = sphi 0, %s231
      %s234 = sphi 0, %s233
      %s248 = sphi 0, %s234
      %s254 = sphi 0, %s256
      %s257 = sphi 0, %s254
      %s258 = sphi 0, %s257
      %s274 = sphi 0, %s258
    $region4: #{decoder_layer.3} parent=1 // loop_header_branch
      %27 = sbr.rel (%p25) target = $region8
    $region5: #{decoder_layer.3} parent=1 // loop_body
      %s29 = ssub.s32 %s24, 1
      %s30 = ssub.s32 %s24, 2
      %s31 = sadd.s32 %s24, 1
      %s32 = ssub.s32 %s24, %s31
      %p33 = scmp.eq.s32.totalorder %s32, 0
      %s35 = sadd.s32 %s34, 1
      %s36 = scalar_select %p33, %s34, %s35
      %p39 = pneg %p33
      %p40 = scmp.eq.s32.totalorder %s24, 1
      %p41 = por %p39, %p40
      %p42 = scmp.ne.s32.totalorder %s34, %s37
      %p43 = scmp.eq.s32.totalorder %s24, 0
      %p44 = por %p42, %p43
      %p45 = scmp.ne.s32.totalorder %s34, %s37
      %p46 = scmp.eq.s32.totalorder %s29, 1
      %p47 = por %p45, %p46
      %p48 = scmp.ne.s32.totalorder %s37, %s38
      %p49 = scmp.eq.s32.totalorder %s29, 0
      %p50 = por %p48, %p49
      %p51 = scmp.ne.s32.totalorder %s37, %s38
      %p52 = scmp.eq.s32.totalorder %s30, 1
      %p53 = por %p51, %p52
      %p55 = scmp.ne.s32.totalorder %s38, %s54
      %p56 = scmp.eq.s32.totalorder %s30, 0
      %p57 = por %p55, %p56
      %s58 = ssub.s32 %s24, %s31
      %p59 = scmp.eq.s32.totalorder %s58, 0
      %s61 = sadd.s32 %s60, 1
      %s62 = scalar_select %p59, %s60, %s61
      %p65 = pneg %p59
      %p66 = scmp.eq.s32.totalorder %s24, 1
      %p67 = por %p65, %p66
      %p68 = scmp.ne.s32.totalorder %s60, %s63
      %p69 = scmp.eq.s32.totalorder %s24, 0
      %p70 = por %p68, %p69
      %p71 = scmp.ne.s32.totalorder %s60, %s63
      %p72 = scmp.eq.s32.totalorder %s29, 1
      %p73 = por %p71, %p72
      %p74 = scmp.ne.s32.totalorder %s63, %s64
      %p75 = scmp.eq.s32.totalorder %s29, 0
      %p76 = por %p74, %p75
      %p77 = scmp.ne.s32.totalorder %s63, %s64
      %p78 = scmp.eq.s32.totalorder %s30, 1
      %p79 = por %p77, %p78
      %p81 = scmp.ne.s32.totalorder %s64, %s80
      %p82 = scmp.eq.s32.totalorder %s30, 0
      %p83 = por %p81, %p82
      %s85 = sadd.s32 %s84, 1
      %p88 = scmp.eq.s32.totalorder %s24, 1
      %p89 = scmp.ne.s32.totalorder %s84, %s86
      %p90 = scmp.eq.s32.totalorder %s24, 0
      %p91 = por %p89, %p90
      %p92 = scmp.ne.s32.totalorder %s84, %s86
      %p93 = scmp.eq.s32.totalorder %s29, 1
      %p94 = por %p92, %p93
      %p95 = scmp.ne.s32.totalorder %s86, %s87
      %p96 = scmp.eq.s32.totalorder %s29, 0
      %p97 = por %p95, %p96
      %p98 = scmp.ne.s32.totalorder %s86, %s87
      %p99 = scmp.eq.s32.totalorder %s30, 1
      %p100 = por %p98, %p99
      %p102 = scmp.ne.s32.totalorder %s87, %s101
      %p103 = scmp.eq.s32.totalorder %s30, 0
      %p104 = por %p102, %p103
      %s106 = sadd.s32 %s105, 1
      %p109 = scmp.eq.s32.totalorder %s24, 1
      %p110 = scmp.ne.s32.totalorder %s105, %s107
      %p111 = scmp.eq.s32.totalorder %s24, 0
      %p112 = por %p110, %p111
      %p113 = scmp.ne.s32.totalorder %s105, %s107
      %p114 = scmp.eq.s32.totalorder %s29, 1
      %p115 = por %p113, %p114
      %p116 = scmp.ne.s32.totalorder %s107, %s108
      %p117 = scmp.eq.s32.totalorder %s29, 0
      %p118 = por %p116, %p117
      %p119 = scmp.ne.s32.totalorder %s107, %s108
      %p120 = scmp.eq.s32.totalorder %s30, 1
      %p121 = por %p119, %p120
      %p123 = scmp.ne.s32.totalorder %s108, %s122
      %p124 = scmp.eq.s32.totalorder %s30, 0
      %p125 = por %p123, %p124
      %s127 = sadd.s32 %s126, 1
      %p130 = scmp.eq.s32.totalorder %s24, 1
      %p131 = scmp.ne.s32.totalorder %s126, %s128
      %p132 = scmp.eq.s32.totalorder %s24, 0
      %p133 = por %p131, %p132
      %p134 = scmp.ne.s32.totalorder %s126, %s128
      %p135 = scmp.eq.s32.totalorder %s29, 1
      %p136 = por %p134, %p135
      %p137 = scmp.ne.s32.totalorder %s128, %s129
      %p138 = scmp.eq.s32.totalorder %s29, 0
      %p139 = por %p137, %p138
      %p140 = scmp.ne.s32.totalorder %s128, %s129
      %p141 = scmp.eq.s32.totalorder %s30, 1
      %p142 = por %p140, %p141
      %p144 = scmp.ne.s32.totalorder %s129, %s143
      %p145 = scmp.eq.s32.totalorder %s30, 0
      %p146 = por %p144, %p145
      %s148 = sadd.s32 %s147, 1
      %p151 = scmp.eq.s32.totalorder %s24, 1
      %p152 = scmp.ne.s32.totalorder %s147, %s149
      %p153 = scmp.eq.s32.totalorder %s24, 0
      %p154 = por %p152, %p153
      %p155 = scmp.ne.s32.totalorder %s147, %s149
      %p156 = scmp.eq.s32.totalorder %s29, 1
      %p157 = por %p155, %p156
      %p158 = scmp.ne.s32.totalorder %s149, %s150
      %p159 = scmp.eq.s32.totalorder %s29, 0
      %p160 = por %p158, %p159
      %p161 = scmp.ne.s32.totalorder %s149, %s150
      %p162 = scmp.eq.s32.totalorder %s30, 1
      %p163 = por %p161, %p162
      %p165 = scmp.ne.s32.totalorder %s150, %s164
      %p166 = scmp.eq.s32.totalorder %s30, 0
      %p167 = por %p165, %p166
      %s169 = sadd.s32 %s168, 1
      %p172 = scmp.eq.s32.totalorder %s24, 1
      %p173 = scmp.ne.s32.totalorder %s168, %s170
      %p174 = scmp.eq.s32.totalorder %s24, 0
      %p175 = por %p173, %p174
      %p176 = scmp.ne.s32.totalorder %s168, %s170
      %p177 = scmp.eq.s32.totalorder %s29, 1
      %p178 = por %p176, %p177
      %p179 = scmp.ne.s32.totalorder %s170, %s171
      %p180 = scmp.eq.s32.totalorder %s29, 0
      %p181 = por %p179, %p180
      %p182 = scmp.ne.s32.totalorder %s170, %s171
      %p183 = scmp.eq.s32.totalorder %s30, 1
      %p184 = por %p182, %p183
      %p186 = scmp.ne.s32.totalorder %s171, %s185
      %p187 = scmp.eq.s32.totalorder %s30, 0
      %p188 = por %p186, %p187
      %s190 = sadd.s32 %s189, 1
      %p193 = scmp.eq.s32.totalorder %s24, 1
      %p194 = scmp.ne.s32.totalorder %s189, %s191
      %p195 = scmp.eq.s32.totalorder %s24, 0
      %p196 = por %p194, %p195
      %p197 = scmp.ne.s32.totalorder %s189, %s191
      %p198 = scmp.eq.s32.totalorder %s29, 1
      %p199 = por %p197, %p198
      %p200 = scmp.ne.s32.totalorder %s191, %s192
      %p201 = scmp.eq.s32.totalorder %s29, 0
      %p202 = por %p200, %p201
      %p203 = scmp.ne.s32.totalorder %s191, %s192
      %p204 = scmp.eq.s32.totalorder %s30, 1
      %p205 = por %p203, %p204
      %p207 = scmp.ne.s32.totalorder %s192, %s206
      %p208 = scmp.eq.s32.totalorder %s30, 0
      %p209 = por %p207, %p208
      %s211 = sadd.s32 %s210, 1
      %p214 = scmp.eq.s32.totalorder %s24, 1
      %p215 = scmp.ne.s32.totalorder %s210, %s212
      %p216 = scmp.eq.s32.totalorder %s24, 0
      %p217 = por %p215, %p216
      %p218 = scmp.ne.s32.totalorder %s210, %s212
      %p219 = scmp.eq.s32.totalorder %s29, 1
      %p220 = por %p218, %p219
      %p221 = scmp.ne.s32.totalorder %s212, %s213
      %p222 = scmp.eq.s32.totalorder %s29, 0
      %p223 = por %p221, %p222
      %p224 = scmp.ne.s32.totalorder %s212, %s213
      %p225 = scmp.eq.s32.totalorder %s30, 1
      %p226 = por %p224, %p225
      %p228 = scmp.ne.s32.totalorder %s213, %s227
      %p229 = scmp.eq.s32.totalorder %s30, 0
      %p230 = por %p228, %p229
      %s232 = sadd.s32 %s231, 1
      %p235 = scmp.eq.s32.totalorder %s24, 1
      %p236 = scmp.ne.s32.totalorder %s231, %s233
      %p237 = scmp.eq.s32.totalorder %s24, 0
      %p238 = por %p236, %p237
      %p239 = scmp.ne.s32.totalorder %s231, %s233
      %p240 = scmp.eq.s32.totalorder %s29, 1
      %p241 = por %p239, %p240
      %p242 = scmp.ne.s32.totalorder %s233, %s234
      %p243 = scmp.eq.s32.totalorder %s29, 0
      %p244 = por %p242, %p243
      %p245 = scmp.ne.s32.totalorder %s233, %s234
      %p246 = scmp.eq.s32.totalorder %s30, 1
      %p247 = por %p245, %p246
      %p249 = scmp.ne.s32.totalorder %s234, %s248
      %p250 = scmp.eq.s32.totalorder %s30, 0
      %p251 = por %p249, %p250
      %s252 = ssub.s32 %s24, %s31
      %p253 = scmp.eq.s32.totalorder %s252, 0
      %s255 = sadd.s32 %s254, 1
      %s256 = scalar_select %p253, %s254, %s255
      %p259 = pneg %p253
      %p260 = scmp.eq.s32.totalorder %s24, 1
      %p261 = por %p259, %p260
      %p262 = scmp.ne.s32.totalorder %s254, %s257
      %p263 = scmp.eq.s32.totalorder %s24, 0
      %p264 = por %p262, %p263
      %p265 = scmp.ne.s32.totalorder %s254, %s257
      %p266 = scmp.eq.s32.totalorder %s29, 1
      %p267 = por %p265, %p266
      %p268 = scmp.ne.s32.totalorder %s257, %s258
      %p269 = scmp.eq.s32.totalorder %s29, 0
      %p270 = por %p268, %p269
      %p271 = scmp.ne.s32.totalorder %s257, %s258
      %p272 = scmp.eq.s32.totalorder %s30, 1
      %p273 = por %p271, %p272
      %p275 = scmp.ne.s32.totalorder %s258, %s274
      %p276 = scmp.eq.s32.totalorder %s30, 0
      %p277 = por %p275, %p276
      %p278 = scmp.le.s32.totalorder 1, %s24
      %p279 = scmp.lt.s32.totalorder %s24, 3
      %p280 = pnand %p278, %p279
      %p281 = pneg %p280
      // Predicated region
      $region9: #{decoder_layer.3} parent=5 // pred_check
        _
      $region10: #{decoder_layer.3} parent=5 // pred_check_branch
        %283 = sbr.rel (%p280) target = $region12
      $region11: #{decoder_layer.3} parent=5 // pred_region
        %s284 = ssub.s32 %s24, 1
        // Predicated region
        $region13: #{decoder_layer.3} parent=11 // pred_check
          %p285 = pneg %p97
        $region14: #{decoder_layer.3} parent=11 // pred_check_branch
          %287 = sbr.rel (%p285) target = $region16
        $region15: #{decoder_layer.3} parent=11 // pred_region
          _
        $region16: #{decoder_layer.3} parent=11 // pred_fallthru
          _
        // Predicated region
        $region17: #{decoder_layer.3} parent=11 // pred_check
          %p288 = pneg %p118
        $region18: #{decoder_layer.3} parent=11 // pred_check_branch
          %290 = sbr.rel (%p288) target = $region20
        $region19: #{decoder_layer.3} parent=11 // pred_region
          _
        $region20: #{decoder_layer.3} parent=11 // pred_fallthru
          _
        // Predicated region
        $region21: #{decoder_layer.3} parent=11 // pred_check
          %p291 = pneg %p139
        $region22: #{decoder_layer.3} parent=11 // pred_check_branch
          %293 = sbr.rel (%p291) target = $region24
        $region23: #{decoder_layer.3} parent=11 // pred_region
          %s295 = ssub.s32 2048, 2048
          %296 = vsyncadd [#allocation6], %s295
          %s297 = sshll.u32 [#allocation7], 4
          %s298 = int_to_ptr.vmem [resolvable:$true] %s297
          %303 = dma.hbm_to_vmem [thread:$0]  %s4, 2048, %s298, [#allocation6], 128, 128, 8
        $region24: #{decoder_layer.3} parent=11 // pred_fallthru
          _
        // Predicated region
        $region25: #{decoder_layer.3} parent=11 // pred_check
          %p304 = pneg %p160
        $region26: #{decoder_layer.3} parent=11 // pred_check_branch
          %306 = sbr.rel (%p304) target = $region28
        $region27: #{decoder_layer.3} parent=11 // pred_region
          _
        $region28: #{decoder_layer.3} parent=11 // pred_fallthru
          _
        // Predicated region
        $region29: #{decoder_layer.3} parent=11 // pred_check
          %p307 = pneg %p181
        $region30: #{decoder_layer.3} parent=11 // pred_check_branch
          %309 = sbr.rel (%p307) target = $region32
        $region31: #{decoder_layer.3} parent=11 // pred_region
          %s311 = ssub.s32 1024, 1024
          %312 = vsyncadd [#allocation9], %s311
          %s313 = sshll.u32 [#allocation8], 4
          %s314 = int_to_ptr.vmem [resolvable:$true] %s313
          %319 = dma.hbm_to_vmem [thread:$0]  %s6, 1024, %s314, [#allocation9], 64, 64, 4
        $region32: #{decoder_layer.3} parent=11 // pred_fallthru
          _
        // Predicated region
        $region33: #{decoder_layer.3} parent=11 // pred_check
          %p320 = pneg %p202
        $region34: #{decoder_layer.3} parent=11 // pred_check_branch
          %322 = sbr.rel (%p320) target = $region36
        $region35: #{decoder_layer.3} parent=11 // pred_region
          %s324 = ssub.s32 16, 16
          %325 = vsyncadd [#allocation9], %s324
          %s327 = sshll.u32 [#allocation10], 4
          %s328 = int_to_ptr.vmem [resolvable:$true] %s327
          %330 = dma.hbm_to_vmem [thread:$0]  %s7, 16, %s328, [#allocation9]
        $region36: #{decoder_layer.3} parent=11 // pred_fallthru
          _
        // Predicated region
        $region37: #{decoder_layer.3} parent=11 // pred_check
          %p331 = pneg %p223
        $region38: #{decoder_layer.3} parent=11 // pred_check_branch
          %333 = sbr.rel (%p331) target = $region40
        $region39: #{decoder_layer.3} parent=11 // pred_region
          %s335 = ssub.s32 16, 16
          %336 = vsyncadd [#allocation12], %s335
          %s338 = sshll.u32 [#allocation11], 4
          %s339 = int_to_ptr.vmem [resolvable:$true] %s338
          %341 = dma.hbm_to_vmem [thread:$0]  %s8, 16, %s339, [#allocation12]
        $region40: #{decoder_layer.3} parent=11 // pred_fallthru
          _
        // Predicated region
        $region41: #{decoder_layer.3} parent=11 // pred_check
          %p342 = pneg %p244
        $region42: #{decoder_layer.3} parent=11 // pred_check_branch
          %344 = sbr.rel (%p342) target = $region44
        $region43: #{decoder_layer.3} parent=11 // pred_region
          %s346 = ssub.s32 16, 16
          %347 = vsyncadd [#allocation12], %s346
          %s349 = sshll.u32 [#allocation13], 4
          %s350 = int_to_ptr.vmem [resolvable:$true] %s349
          %352 = dma.hbm_to_vmem [thread:$0]  %s9, 16, %s350, [#allocation12]
        $region44: #{decoder_layer.3} parent=11 // pred_fallthru
          _
      $region12: #{decoder_layer.3} parent=5 // pred_fallthru
        _
      %p353 = scmp.lt.s32.totalorder %s24, 2
      // Predicated region
      $region45: #{decoder_layer.3} parent=5 // pred_check
        %p354 = pneg %p353
      $region46: #{decoder_layer.3} parent=5 // pred_check_branch
        %356 = sbr.rel (%p354) target = $region48
      $region47: #{decoder_layer.3} parent=5 // pred_region
        // Predicated region
        $region49: #{decoder_layer.3} parent=47 // pred_check
          %p357 = pneg %p44
        $region50: #{decoder_layer.3} parent=47 // pred_check_branch
          %359 = sbr.rel (%p357) target = $region52
        $region51: #{decoder_layer.3} parent=47 // pred_region
          %s360 = sand.u32 %s34, 1
          %s361 = scalar_lea.sflag [#allocation4], %s360
          %s362 = sand.u32 %s34, 1
          %s363 = smul.addr %s362, 8
          %s364 = scalar_lea.vmem [#allocation3], %s363
          %s366 = ssub.s32 128, 128
          %367 = vsyncadd %s361, %s366
          %s368 = smul.addr %s24, 128
          %s369 = scalar_lea.hbm %s0, %s368
          %s371 = sshll.u32 %s364, 4
          %s372 = int_to_ptr.vmem [resolvable:$true] %s371
          %374 = dma.hbm_to_vmem [thread:$0]  %s369, 128, %s372, %s361
        $region52: #{decoder_layer.3} parent=47 // pred_fallthru
          _
        // Predicated region
        $region53: #{decoder_layer.3} parent=47 // pred_check
          %p375 = pneg %p70
        $region54: #{decoder_layer.3} parent=47 // pred_check_branch
          %377 = sbr.rel (%p375) target = $region56
        $region55: #{decoder_layer.3} parent=47 // pred_region
          %s378 = sand.u32 %s24, 1
          %s379 = scalar_lea.sflag [#allocation6], %s378
          %s380 = sand.u32 %s60, 1
          %s381 = smul.addr %s380, 8
          %s382 = scalar_lea.vmem [#allocation5], %s381
          %s384 = ssub.s32 128, 128
          %385 = vsyncadd %s379, %s384
          %s386 = smul.addr %s24, 128
          %s387 = scalar_lea.hbm %s1, %s386
          %s389 = sshll.u32 %s382, 4
          %s390 = int_to_ptr.vmem [resolvable:$true] %s389
          %392 = dma.hbm_to_vmem [thread:$0]  %s387, 128, %s390, %s379
        $region56: #{decoder_layer.3} parent=47 // pred_fallthru
          _
      $region48: #{decoder_layer.3} parent=5 // pred_fallthru
        _
      %p393 = scmp.le.s32.totalorder 1, %s24
      %p394 = scmp.lt.s32.totalorder %s24, 3
      %p395 = pnand %p393, %p394
      %p396 = pneg %p395
      // Predicated region
      $region57: #{decoder_layer.3} parent=5 // pred_check
        _
      $region58: #{decoder_layer.3} parent=5 // pred_check_branch
        %398 = sbr.rel (%p395) target = $region60
      $region59: #{decoder_layer.3} parent=5 // pred_region
        %s399 = ssub.s32 %s24, 1
        %s400 = sand.u32 %s37, 1
        %s401 = scalar_lea.sflag [#allocation4], %s400
        %s402 = sand.u32 %s37, 1
        %s403 = smul.addr %s402, 8
        %s404 = scalar_lea.vmem [#allocation3], %s403
        // Predicated region
        $region61: #{decoder_layer.3} parent=59 // pred_check
          %p405 = pneg %p50
        $region62: #{decoder_layer.3} parent=59 // pred_check_branch
          %407 = sbr.rel (%p405) target = $region64
        $region63: #{decoder_layer.3} parent=59 // pred_region
          %408 = dma.done %s401, 128
        $region64: #{decoder_layer.3} parent=59 // pred_fallthru
          _
        %s409 = sand.u32 %s29, 1
        %s410 = scalar_lea.sflag [#allocation6], %s409
        %s411 = sand.u32 %s63, 1
        %s412 = smul.addr %s411, 8
        %s413 = scalar_lea.vmem [#allocation5], %s412
        // Predicated region
        $region65: #{decoder_layer.3} parent=59 // pred_check
          %p414 = pneg %p76
        $region66: #{decoder_layer.3} parent=59 // pred_check_branch
          %416 = sbr.rel (%p414) target = $region68
        $region67: #{decoder_layer.3} parent=59 // pred_region
          %417 = dma.done %s410, 128
        $region68: #{decoder_layer.3} parent=59 // pred_fallthru
          _
        // Predicated region
        $region69: #{decoder_layer.3} parent=59 // pred_check
          %p418 = pneg %p139
        $region70: #{decoder_layer.3} parent=59 // pred_check_branch
          %420 = sbr.rel (%p418) target = $region72
        $region71: #{decoder_layer.3} parent=59 // pred_region
          %421 = dma.done [#allocation6], 2048
        $region72: #{decoder_layer.3} parent=59 // pred_fallthru
          _
        // Predicated region
        $region73: #{decoder_layer.3} parent=59 // pred_check
          %p422 = pneg %p181
        $region74: #{decoder_layer.3} parent=59 // pred_check_branch
          %424 = sbr.rel (%p422) target = $region76
        $region75: #{decoder_layer.3} parent=59 // pred_region
          %425 = dma.done [#allocation9], 1024
        $region76: #{decoder_layer.3} parent=59 // pred_fallthru
          _
        // Predicated region
        $region77: #{decoder_layer.3} parent=59 // pred_check
          %p426 = pneg %p202
        $region78: #{decoder_layer.3} parent=59 // pred_check_branch
          %428 = sbr.rel (%p426) target = $region80
        $region79: #{decoder_layer.3} parent=59 // pred_region
          %429 = dma.done [#allocation9], 16
        $region80: #{decoder_layer.3} parent=59 // pred_fallthru
          _
        // Predicated region
        $region81: #{decoder_layer.3} parent=59 // pred_check
          %p430 = pneg %p223
        $region82: #{decoder_layer.3} parent=59 // pred_check_branch
          %432 = sbr.rel (%p430) target = $region84
        $region83: #{decoder_layer.3} parent=59 // pred_region
          %433 = dma.done [#allocation12], 16
        $region84: #{decoder_layer.3} parent=59 // pred_fallthru
          _
        // Predicated region
        $region85: #{decoder_layer.3} parent=59 // pred_check
          %p434 = pneg %p244
        $region86: #{decoder_layer.3} parent=59 // pred_check_branch
          %436 = sbr.rel (%p434) target = $region88
        $region87: #{decoder_layer.3} parent=59 // pred_region
          %437 = dma.done [#allocation12], 16
        $region88: #{decoder_layer.3} parent=59 // pred_fallthru
          _
        %s438 = sand.u32 %s37, 1
        %s439 = scalar_lea.sflag [#allocation4], %s438
        %s440 = sand.u32 %s37, 1
        %s441 = smul.addr %s440, 8
        %s442 = scalar_lea.vmem [#allocation3], %s441
        %p443 = pneg %p50
        %p444 = pneg %p47
        %s445 = sand.u32 %s29, 1
        %s446 = scalar_lea.sflag [#allocation6], %s445
        %s447 = sand.u32 %s63, 1
        %s448 = smul.addr %s447, 8
        %s449 = scalar_lea.vmem [#allocation5], %s448
        %p450 = pneg %p76
        %p451 = pneg %p73
        %p452 = pneg %p97
        %p453 = pneg %p94
        %p454 = pneg %p118
        %p455 = pneg %p115
        %p456 = pneg %p139
        %p457 = pneg %p136
        %p458 = pneg %p160
        %p459 = pneg %p157
        %p460 = pneg %p181
        %p461 = pneg %p178
        %p462 = pneg %p202
        %p463 = pneg %p199
        %p464 = pneg %p223
        %p465 = pneg %p220
        %p466 = pneg %p244
        %p467 = pneg %p241
        %p468 = pneg %p270
        %p469 = pneg %p267
        %p470 = scmp.lt.s32.totalorder %s29, 1
        %s471 = scalar_select %p470, %s29, 1
        %s472 = smul.addr %s471, 8
        %s473 = scalar_lea.vmem %s10, %s472
        %p474 = scmp.lt.s32.totalorder %s29, 1
        %s475 = scalar_select %p474, %s29, 1
        %s476 = smul.addr %s475, 8
        %s477 = scalar_lea.vmem %s10, %s476
        %v479 = vld [vmem:[%s404] sm:$0xff]
        %v480 = vpack.c.bf16 %v479, %v479
        %v481 = vld [vmem:[%s2] sm:$0xf]
        %v482 = vld [vmem:[%s2 + $0x4] sm:$0xf]
        %v483 = vld [vmem:[%s2 + $0x8] sm:$0xf]
        %v484 = vld [vmem:[%s2 + $0xc] sm:$0xf]
        %v485 = vld [vmem:[%s2 + $0x10] sm:$0xf]
        %v486 = vld [vmem:[%s2 + $0x14] sm:$0xf]
        %v487 = vld [vmem:[%s2 + $0x18] sm:$0xf]
        %v488 = vld [vmem:[%s2 + $0x1c] sm:$0xf]
        %v489 = vld [vmem:[%s2 + $0x20] sm:$0xf]
        %v490 = vld [vmem:[%s2 + $0x24] sm:$0xf]
        %v491 = vld [vmem:[%s2 + $0x28] sm:$0xf]
        %v492 = vld [vmem:[%s2 + $0x2c] sm:$0xf]
        %v493 = vld [vmem:[%s2 + $0x30] sm:$0xf]
        %v494 = vld [vmem:[%s2 + $0x34] sm:$0xf]
        %v495 = vld [vmem:[%s2 + $0x38] sm:$0xf]
        %v496 = vld [vmem:[%s2 + $0x3c] sm:$0xf]
        %v497 = vld [vmem:[%s3] sm:$0x1]
        %v499 = vlaneseq
        %v500 = vshrl.u32 %v499, 7
        %v501 = vsub.s32 0, %v500
        %v502 = vrot.slane %v497, %v501
        %v520 = vunpack.c.l.b16 %v481
        %v521 = vunpack.c.l.b16 %v482
        %v522 = vunpack.c.l.b16 %v483
        %v523 = vunpack.c.l.b16 %v484
        %v524 = vunpack.c.l.b16 %v485
        %v525 = vunpack.c.l.b16 %v486
        %v526 = vunpack.c.l.b16 %v487
        %v527 = vunpack.c.l.b16 %v488
        %v528 = vunpack.c.l.b16 %v489
        %v529 = vunpack.c.l.b16 %v490
        %v530 = vunpack.c.l.b16 %v491
        %v531 = vunpack.c.l.b16 %v492
        %v532 = vunpack.c.l.b16 %v493
        %v533 = vunpack.c.l.b16 %v494
        %v534 = vunpack.c.l.b16 %v495
        %v535 = vunpack.c.l.b16 %v496
        %v536 = vpack.c.b16 %v521, %v520
        %v537 = vpack.c.b16 %v523, %v522
        %v538 = vpack.c.b16 %v525, %v524
        %v539 = vpack.c.b16 %v527, %v526
        %v540 = vpack.c.b16 %v529, %v528
        %v541 = vpack.c.b16 %v531, %v530
        %v542 = vpack.c.b16 %v533, %v532
        %v543 = vpack.c.b16 %v535, %v534
        %552 = vmatprep.subr.bf16.mxu0 0
        %553 = vmatpush1.bf16.msra.mxu0 %v543
        %554 = vmatprep.subr.bf16.mxu0 0
        %555 = vmatpush1.bf16.msra.mxu0 %v542
        %556 = vmatprep.subr.bf16.mxu0 0
        %557 = vmatpush1.bf16.msra.mxu0 %v541
        %558 = vmatprep.subr.bf16.mxu0 0
        %559 = vmatpush1.bf16.msra.mxu0 %v540
        %560 = vmatprep.subr.bf16.mxu0 0
        %561 = vmatpush1.bf16.msra.mxu0 %v539
        %562 = vmatprep.subr.bf16.mxu0 0
        %563 = vmatpush1.bf16.msra.mxu0 %v538
        %564 = vmatprep.subr.bf16.mxu0 0
        %565 = vmatpush1.bf16.msra.mxu0 %v537
        %566 = vmatprep.subr.bf16.mxu0 0
        %567 = vmatpush1.bf16.msra.mxu0 %v536
        %568 = vmatprep.subr.bf16.mxu0 0
        %569 = vmatpush2.bf16.msra.mxu0 0
        %570 = vmatprep.subr.bf16.mxu0 0
        %571 = vmatpush2.bf16.msra.mxu0 0
        %572 = vmatprep.subr.bf16.mxu0 0
        %573 = vmatpush2.bf16.msra.mxu0 0
        %574 = vmatprep.subr.bf16.mxu0 0
        %575 = vmatpush2.bf16.msra.mxu0 0
        %576 = vmatprep.subr.bf16.mxu0 0
        %577 = vmatpush2.bf16.msra.mxu0 0
        %578 = vmatprep.subr.bf16.mxu0 0
        %579 = vmatpush2.bf16.msra.mxu0 0
        %580 = vmatprep.subr.bf16.mxu0 0
        %581 = vmatpush2.bf16.msra.mxu0 0
        %582 = vmatprep.subr.bf16.mxu0 0
        %583 = vmatpush2.bf16.msra.mxu0 0
        %584 = vmatprep.mubr.bf16.mxu0 0
        %585 = vmatmul.mubr.bf16.gmra.mxu0 %v480
        %v586 = vpop.f32.mrf.mxu0
        %v587 = vadd.f32 %v502, %v586
        %v588 = vpop.f32.mrf.mxu0
        %v589 = vpop.f32.mrf.mxu0
        %v590 = vpop.f32.mrf.mxu0
        %591 = vdwg.mxu0
        %v592 = vld [vmem:[%s413] sm:$0xff]
        %v593 = vpack.c.bf16 %v592, %v592
        %v594 = vld [vmem:[#allocation7] sm:$0xff]
        %v595 = vld [vmem:[#allocation7 + $0x8] sm:$0xff]
        %v596 = vld [vmem:[#allocation7 + $0x10] sm:$0xff]
        %v597 = vld [vmem:[#allocation7 + $0x18] sm:$0xff]
        %v598 = vld [vmem:[#allocation7 + $0x20] sm:$0xff]
        %v599 = vld [vmem:[#allocation7 + $0x28] sm:$0xff]
        %v600 = vld [vmem:[#allocation7 + $0x30] sm:$0xff]
        %v601 = vld [vmem:[#allocation7 + $0x38] sm:$0xff]
        %v602 = vld [vmem:[#allocation7 + $0x40] sm:$0xff]
        %v603 = vld [vmem:[#allocation7 + $0x48] sm:$0xff]
        %v604 = vld [vmem:[#allocation7 + $0x50] sm:$0xff]
        %v605 = vld [vmem:[#allocation7 + $0x58] sm:$0xff]
        %v606 = vld [vmem:[#allocation7 + $0x60] sm:$0xff]
        %v607 = vld [vmem:[#allocation7 + $0x68] sm:$0xff]
        %v608 = vld [vmem:[#allocation7 + $0x70] sm:$0xff]
        %v609 = vld [vmem:[#allocation7 + $0x78] sm:$0xff]
        %v610 = vld [vmem:[%s5] sm:$0x3]
        %v612 = vlaneseq
        %v613 = vshrl.u32 %v612, 7
        %v614 = vsub.s32 0, %v613
        %v615 = vrot.slane %v610, %v614
        %v616 = vlaneseq
        %v617 = vshrl.u32 %v616, 7
        %v618 = vsub.s32 1, %v617
        %v619 = vrot.slane %v610, %v618
        %v638 = vunpack.c.l.b16 %v594
        %v639 = vunpack.c.h.b16 %v594
        %v640 = vunpack.c.l.b16 %v595
        %v641 = vunpack.c.h.b16 %v595
        %v642 = vunpack.c.l.b16 %v596
        %v643 = vunpack.c.h.b16 %v596
        %v644 = vunpack.c.l.b16 %v597
        %v645 = vunpack.c.h.b16 %v597
        %v646 = vunpack.c.l.b16 %v598
        %v647 = vunpack.c.h.b16 %v598
        %v648 = vunpack.c.l.b16 %v599
        %v649 = vunpack.c.h.b16 %v599
        %v650 = vunpack.c.l.b16 %v600
        %v651 = vunpack.c.h.b16 %v600
        %v652 = vunpack.c.l.b16 %v601
        %v653 = vunpack.c.h.b16 %v601
        %v654 = vunpack.c.l.b16 %v602
        %v655 = vunpack.c.h.b16 %v602
        %v656 = vunpack.c.l.b16 %v603
        %v657 = vunpack.c.h.b16 %v603
        %v658 = vunpack.c.l.b16 %v604
        %v659 = vunpack.c.h.b16 %v604
        %v660 = vunpack.c.l.b16 %v605
        %v661 = vunpack.c.h.b16 %v605
        %v662 = vunpack.c.l.b16 %v606
        %v663 = vunpack.c.h.b16 %v606
        %v664 = vunpack.c.l.b16 %v607
        %v665 = vunpack.c.h.b16 %v607
        %v666 = vunpack.c.l.b16 %v608
        %v667 = vunpack.c.h.b16 %v608
        %v668 = vunpack.c.l.b16 %v609
        %v669 = vunpack.c.h.b16 %v609
        %v670 = vpack.c.b16 %v640, %v638
        %v671 = vpack.c.b16 %v641, %v639
        %v672 = vpack.c.b16 %v644, %v642
        %v673 = vpack.c.b16 %v645, %v643
        %v674 = vpack.c.b16 %v648, %v646
        %v675 = vpack.c.b16 %v649, %v647
        %v676 = vpack.c.b16 %v652, %v650
        %v677 = vpack.c.b16 %v653, %v651
        %v678 = vpack.c.b16 %v656, %v654
        %v679 = vpack.c.b16 %v657, %v655
        %v680 = vpack.c.b16 %v660, %v658
        %v681 = vpack.c.b16 %v661, %v659
        %v682 = vpack.c.b16 %v664, %v662
        %v683 = vpack.c.b16 %v665, %v663
        %v684 = vpack.c.b16 %v668, %v666
        %v685 = vpack.c.b16 %v669, %v667
        %702 = vmatprep.subr.bf16.mxu0 %v685
        %703 = vmatpush1.bf16.msra.mxu0 %v684
        %704 = vmatprep.subr.bf16.mxu0 %v683
        %705 = vmatpush1.bf16.msra.mxu0 %v682
        %706 = vmatprep.subr.bf16.mxu0 %v681
        %707 = vmatpush1.bf16.msra.mxu0 %v680
        %708 = vmatprep.subr.bf16.mxu0 %v679
        %709 = vmatpush1.bf16.msra.mxu0 %v678
        %710 = vmatprep.subr.bf16.mxu0 %v677
        %711 = vmatpush1.bf16.msra.mxu0 %v676
        %712 = vmatprep.subr.bf16.mxu0 %v675
        %713 = vmatpush1.bf16.msra.mxu0 %v674
        %714 = vmatprep.subr.bf16.mxu0 %v673
        %715 = vmatpush1.bf16.msra.mxu0 %v672
        %716 = vmatprep.subr.bf16.mxu0 %v671
        %717 = vmatpush1.bf16.msra.mxu0 %v670
        %718 = vmatprep.subr.bf16.mxu0 0
        %719 = vmatpush2.bf16.msra.mxu0 0
        %720 = vmatprep.subr.bf16.mxu0 0
        %721 = vmatpush2.bf16.msra.mxu0 0
        %722 = vmatprep.subr.bf16.mxu0 0
        %723 = vmatpush2.bf16.msra.mxu0 0
        %724 = vmatprep.subr.bf16.mxu0 0
        %725 = vmatpush2.bf16.msra.mxu0 0
        %726 = vmatprep.subr.bf16.mxu0 0
        %727 = vmatpush2.bf16.msra.mxu0 0
        %728 = vmatprep.subr.bf16.mxu0 0
        %729 = vmatpush2.bf16.msra.mxu0 0
        %730 = vmatprep.subr.bf16.mxu0 0
        %731 = vmatpush2.bf16.msra.mxu0 0
        %732 = vmatprep.subr.bf16.mxu0 0
        %733 = vmatpush2.bf16.msra.mxu0 0
        %734 = vmatprep.mubr.bf16.mxu0 0
        %735 = vmatmul.mubr.bf16.gmra.mxu0 %v593
        %v736 = vpop.f32.mrf.mxu0
        %v737 = vadd.f32 %v615, %v736
        %v738 = vpop.f32.mrf.mxu0
        %v739 = vadd.f32 %v619, %v738
        %v740 = vpop.f32.mrf.mxu0
        %v741 = vpop.f32.mrf.mxu0
        %742 = vdwg.mxu0
        %743 = vst [vmem:[#allocation2] sm:$0xff] 0.0
        %v744 = vpack.c.bf16 %v587, %v587
        %v745 = vpack.c.bf16 %v737, %v737
        %vm746 = vcmask 261120
        %v748 = vsel %vm746, %v744, 0
        %v751 = vsel %vm746, %v745, 0
        %753 = vmatprep.subr.bf16.mxu0 0
        %754 = vmatpush1.bf16.xpose.msra.mxu0 0
        %755 = vmatprep.subr.bf16.mxu0 0
        %756 = vmatpush1.bf16.xpose.msra.mxu0 0
        %757 = vmatprep.subr.bf16.mxu0 0
        %758 = vmatpush1.bf16.xpose.msra.mxu0 0
        %759 = vmatprep.subr.bf16.mxu0 0
        %760 = vmatpush1.bf16.xpose.msra.mxu0 0
        %761 = vmatprep.subr.bf16.mxu0 0
        %762 = vmatpush1.bf16.xpose.msra.mxu0 0
        %763 = vmatprep.subr.bf16.mxu0 0
        %764 = vmatpush1.bf16.xpose.msra.mxu0 0
        %765 = vmatprep.subr.bf16.mxu0 0
        %766 = vmatpush1.bf16.xpose.msra.mxu0 0
        %767 = vmatprep.subr.bf16.mxu0 0
        %768 = vmatpush1.bf16.xpose.msra.mxu0 %v751
        %769 = vmatprep.subr.bf16.mxu0 0
        %770 = vmatpush2.bf16.xpose.msra.mxu0 0
        %771 = vmatprep.subr.bf16.mxu0 0
        %772 = vmatpush2.bf16.xpose.msra.mxu0 0
        %773 = vmatprep.subr.bf16.mxu0 0
        %774 = vmatpush2.bf16.xpose.msra.mxu0 0
        %775 = vmatprep.subr.bf16.mxu0 0
        %776 = vmatpush2.bf16.xpose.msra.mxu0 0
        %777 = vmatprep.subr.bf16.mxu0 0
        %778 = vmatpush2.bf16.xpose.msra.mxu0 0
        %779 = vmatprep.subr.bf16.mxu0 0
        %780 = vmatpush2.bf16.xpose.msra.mxu0 0
        %781 = vmatprep.subr.bf16.mxu0 0
        %782 = vmatpush2.bf16.xpose.msra.mxu0 0
        %783 = vmatprep.subr.bf16.mxu0 0
        %784 = vmatpush2.bf16.xpose.msra.mxu0 0
        %785 = vmatprep.mubr.bf16.mxu0 0
        %786 = vmatmul.mubr.bf16.gmra.mxu0 %v748
        %v787 = vpop.f32.mrf.mxu0
        %v788 = vadd.f32 0.0, %v787
        %v789 = vpop.f32.mrf.mxu0
        %v790 = vpop.f32.mrf.mxu0
        %v791 = vpop.f32.mrf.mxu0
        %792 = vdwg.mxu0
        %v793 = vmul.f32 %v788, 0.17677669
        %vm794 = vcmask 64512
        %v795 = vsel %vm794, %v793, -inf
        %796 = vmax.xlane.f32.xlu0 %v795
        %v797 = vpop.xlane.xlu0 %796
        %v798 = vsub.f32 %v793, %v797
        %v799 = vmul.f32 %v798, 1.442695
        %v800 = vpow.pop %v799
        %v801 = vsel %vm794, %v800, 0.0
        %802 = vadd.xlane.f32.xlu0 %v801
        %v803 = vpop.xlane.xlu0 %802
        %v804 = vrcp.pop %v803
        %v805 = vmul.f32 %v800, %v804
        %v806 = vpack.c.bf16 %v805, %v805
        %v807 = vpack.c.bf16 %v739, %v739
        %v809 = vsel %vm794, %v806, 0
        %vm811 = vcmask 1043456
        %v813 = vsel %vm811, %v807, 0
        %815 = vmatprep.subr.bf16.mxu0 0
        %816 = vmatpush1.bf16.msra.mxu0 0
        %817 = vmatprep.subr.bf16.mxu0 0
        %818 = vmatpush1.bf16.msra.mxu0 0
        %819 = vmatprep.subr.bf16.mxu0 0
        %820 = vmatpush1.bf16.msra.mxu0 0
        %821 = vmatprep.subr.bf16.mxu0 0
        %822 = vmatpush1.bf16.msra.mxu0 0
        %823 = vmatprep.subr.bf16.mxu0 0
        %824 = vmatpush1.bf16.msra.mxu0 0
        %825 = vmatprep.subr.bf16.mxu0 0
        %826 = vmatpush1.bf16.msra.mxu0 0
        %827 = vmatprep.subr.bf16.mxu0 0
        %828 = vmatpush1.bf16.msra.mxu0 0
        %829 = vmatprep.subr.bf16.mxu0 0
        %830 = vmatpush1.bf16.msra.mxu0 %v813
        %831 = vmatprep.subr.bf16.mxu0 0
        %832 = vmatpush2.bf16.msra.mxu0 0
        %833 = vmatprep.subr.bf16.mxu0 0
        %834 = vmatpush2.bf16.msra.mxu0 0
        %835 = vmatprep.subr.bf16.mxu0 0
        %836 = vmatpush2.bf16.msra.mxu0 0
        %837 = vmatprep.subr.bf16.mxu0 0
        %838 = vmatpush2.bf16.msra.mxu0 0
        %839 = vmatprep.subr.bf16.mxu0 0
        %840 = vmatpush2.bf16.msra.mxu0 0
        %841 = vmatprep.subr.bf16.mxu0 0
        %842 = vmatpush2.bf16.msra.mxu0 0
        %843 = vmatprep.subr.bf16.mxu0 0
        %844 = vmatpush2.bf16.msra.mxu0 0
        %845 = vmatprep.subr.bf16.mxu0 0
        %846 = vmatpush2.bf16.msra.mxu0 0
        %847 = vmatprep.mubr.bf16.mxu0 0
        %848 = vmatmul.mubr.bf16.gmra.mxu0 %v809
        %v849 = vpop.f32.mrf.mxu0
        %v850 = vadd.f32 0.0, %v849
        %v851 = vpop.f32.mrf.mxu0
        %v852 = vpop.f32.mrf.mxu0
        %v853 = vpop.f32.mrf.mxu0
        %854 = vdwg.mxu0
        %v855 = vld [vmem:[#allocation2] sm:$0xff]
        %v856 = vpack.c.bf16 %v850, %v850
        %v857 = vld [vmem:[#allocation8] sm:$0xf]
        %v858 = vld [vmem:[#allocation8 + $0x4] sm:$0xf]
        %v859 = vld [vmem:[#allocation8 + $0x8] sm:$0xf]
        %v860 = vld [vmem:[#allocation8 + $0xc] sm:$0xf]
        %v865 = vunpack.c.l.b16 %v857
        %v866 = vunpack.c.l.b16 %v858
        %v867 = vunpack.c.l.b16 %v859
        %v868 = vunpack.c.l.b16 %v860
        %v869 = vpack.c.b16 %v866, %v865
        %v870 = vpack.c.b16 %v868, %v867
        %v874 = vsel %vm746, %v856, 0
        %876 = vmatprep.subr.bf16.mxu0 0
        %877 = vmatpush1.bf16.msra.mxu0 0
        %878 = vmatprep.subr.bf16.mxu0 0
        %879 = vmatpush1.bf16.msra.mxu0 0
        %880 = vmatprep.subr.bf16.mxu0 0
        %881 = vmatpush1.bf16.msra.mxu0 0
        %882 = vmatprep.subr.bf16.mxu0 0
        %883 = vmatpush1.bf16.msra.mxu0 0
        %884 = vmatprep.subr.bf16.mxu0 0
        %885 = vmatpush1.bf16.msra.mxu0 0
        %886 = vmatprep.subr.bf16.mxu0 0
        %887 = vmatpush1.bf16.msra.mxu0 0
        %888 = vmatprep.subr.bf16.mxu0 0
        %889 = vmatpush1.bf16.msra.mxu0 %v870
        %890 = vmatprep.subr.bf16.mxu0 0
        %891 = vmatpush1.bf16.msra.mxu0 %v869
        %892 = vmatprep.subr.bf16.mxu0 0
        %893 = vmatpush2.bf16.msra.mxu0 0
        %894 = vmatprep.subr.bf16.mxu0 0
        %895 = vmatpush2.bf16.msra.mxu0 0
        %896 = vmatprep.subr.bf16.mxu0 0
        %897 = vmatpush2.bf16.msra.mxu0 0
        %898 = vmatprep.subr.bf16.mxu0 0
        %899 = vmatpush2.bf16.msra.mxu0 0
        %900 = vmatprep.subr.bf16.mxu0 0
        %901 = vmatpush2.bf16.msra.mxu0 0
        %902 = vmatprep.subr.bf16.mxu0 0
        %903 = vmatpush2.bf16.msra.mxu0 0
        %904 = vmatprep.subr.bf16.mxu0 0
        %905 = vmatpush2.bf16.msra.mxu0 0
        %906 = vmatprep.subr.bf16.mxu0 0
        %907 = vmatpush2.bf16.msra.mxu0 0
        %908 = vmatprep.mubr.bf16.mxu0 0
        %909 = vmatmul.mubr.bf16.gmra.mxu0 %v874
        %v910 = vpop.f32.mrf.mxu0
        %v911 = vadd.f32 0.0, %v910
        %v912 = vpop.f32.mrf.mxu0
        %v913 = vpop.f32.mrf.mxu0
        %v914 = vpop.f32.mrf.mxu0
        %915 = vdwg.mxu0
        %v916 = vadd.f32 %v855, %v911
        %917 = vst [vmem:[#allocation2] sm:$0xff] %v916
        %919 = vrot.lane.b32.xlu0 %v744, 96
        %v920 = vpop.permute.xlu0 %919
        %922 = vrot.lane.b32.xlu0 %v745, 96
        %v923 = vpop.permute.xlu0 %922
        %v925 = vsel %vm746, %v920, 0
        %v928 = vsel %vm746, %v923, 0
        %930 = vmatprep.subr.bf16.mxu0 0
        %931 = vmatpush1.bf16.xpose.msra.mxu0 0
        %932 = vmatprep.subr.bf16.mxu0 0
        %933 = vmatpush1.bf16.xpose.msra.mxu0 0
        %934 = vmatprep.subr.bf16.mxu0 0
        %935 = vmatpush1.bf16.xpose.msra.mxu0 0
        %936 = vmatprep.subr.bf16.mxu0 0
        %937 = vmatpush1.bf16.xpose.msra.mxu0 0
        %938 = vmatprep.subr.bf16.mxu0 0
        %939 = vmatpush1.bf16.xpose.msra.mxu0 0
        %940 = vmatprep.subr.bf16.mxu0 0
        %941 = vmatpush1.bf16.xpose.msra.mxu0 0
        %942 = vmatprep.subr.bf16.mxu0 0
        %943 = vmatpush1.bf16.xpose.msra.mxu0 0
        %944 = vmatprep.subr.bf16.mxu0 0
        %945 = vmatpush1.bf16.xpose.msra.mxu0 %v928
        %946 = vmatprep.subr.bf16.mxu0 0
        %947 = vmatpush2.bf16.xpose.msra.mxu0 0
        %948 = vmatprep.subr.bf16.mxu0 0
        %949 = vmatpush2.bf16.xpose.msra.mxu0 0
        %950 = vmatprep.subr.bf16.mxu0 0
        %951 = vmatpush2.bf16.xpose.msra.mxu0 0
        %952 = vmatprep.subr.bf16.mxu0 0
        %953 = vmatpush2.bf16.xpose.msra.mxu0 0
        %954 = vmatprep.subr.bf16.mxu0 0
        %955 = vmatpush2.bf16.xpose.msra.mxu0 0
        %956 = vmatprep.subr.bf16.mxu0 0
        %957 = vmatpush2.bf16.xpose.msra.mxu0 0
        %958 = vmatprep.subr.bf16.mxu0 0
        %959 = vmatpush2.bf16.xpose.msra.mxu0 0
        %960 = vmatprep.subr.bf16.mxu0 0
        %961 = vmatpush2.bf16.xpose.msra.mxu0 0
        %962 = vmatprep.mubr.bf16.mxu0 0
        %963 = vmatmul.mubr.bf16.gmra.mxu0 %v925
        %v964 = vpop.f32.mrf.mxu0
        %v965 = vadd.f32 0.0, %v964
        %v966 = vpop.f32.mrf.mxu0
        %v967 = vpop.f32.mrf.mxu0
        %v968 = vpop.f32.mrf.mxu0
        %969 = vdwg.mxu0
        %v970 = vmul.f32 %v965, 0.17677669
        %v971 = vsel %vm794, %v970, -inf
        %972 = vmax.xlane.f32.xlu0 %v971
        %v973 = vpop.xlane.xlu0 %972
        %v974 = vsub.f32 %v970, %v973
        %v975 = vmul.f32 %v974, 1.442695
        %v976 = vpow.pop %v975
        %v977 = vsel %vm794, %v976, 0.0
        %978 = vadd.xlane.f32.xlu0 %v977
        %v979 = vpop.xlane.xlu0 %978
        %v980 = vrcp.pop %v979
        %v981 = vmul.f32 %v976, %v980
        %v982 = vpack.c.bf16 %v981, %v981
        %984 = vrot.lane.b32.xlu0 %v807, 96
        %v985 = vpop.permute.xlu0 %984
        %v987 = vsel %vm794, %v982, 0
        %v990 = vsel %vm811, %v985, 0
        %992 = vmatprep.subr.bf16.mxu0 0
        %993 = vmatpush1.bf16.msra.mxu0 0
        %994 = vmatprep.subr.bf16.mxu0 0
        %995 = vmatpush1.bf16.msra.mxu0 0
        %996 = vmatprep.subr.bf16.mxu0 0
        %997 = vmatpush1.bf16.msra.mxu0 0
        %998 = vmatprep.subr.bf16.mxu0 0
        %999 = vmatpush1.bf16.msra.mxu0 0
        %1000 = vmatprep.subr.bf16.mxu0 0
        %1001 = vmatpush1.bf16.msra.mxu0 0
        %1002 = vmatprep.subr.bf16.mxu0 0
        %1003 = vmatpush1.bf16.msra.mxu0 0
        %1004 = vmatprep.subr.bf16.mxu0 0
        %1005 = vmatpush1.bf16.msra.mxu0 0
        %1006 = vmatprep.subr.bf16.mxu0 0
        %1007 = vmatpush1.bf16.msra.mxu0 %v990
        %1008 = vmatprep.subr.bf16.mxu0 0
        %1009 = vmatpush2.bf16.msra.mxu0 0
        %1010 = vmatprep.subr.bf16.mxu0 0
        %1011 = vmatpush2.bf16.msra.mxu0 0
        %1012 = vmatprep.subr.bf16.mxu0 0
        %1013 = vmatpush2.bf16.msra.mxu0 0
        %1014 = vmatprep.subr.bf16.mxu0 0
        %1015 = vmatpush2.bf16.msra.mxu0 0
        %1016 = vmatprep.subr.bf16.mxu0 0
        %1017 = vmatpush2.bf16.msra.mxu0 0
        %1018 = vmatprep.subr.bf16.mxu0 0
        %1019 = vmatpush2.bf16.msra.mxu0 0
        %1020 = vmatprep.subr.bf16.mxu0 0
        %1021 = vmatpush2.bf16.msra.mxu0 0
        %1022 = vmatprep.subr.bf16.mxu0 0
        %1023 = vmatpush2.bf16.msra.mxu0 0
        %1024 = vmatprep.mubr.bf16.mxu0 0
        %1025 = vmatmul.mubr.bf16.gmra.mxu0 %v987
        %v1026 = vpop.f32.mrf.mxu0
        %v1027 = vadd.f32 0.0, %v1026
        %v1028 = vpop.f32.mrf.mxu0
        %v1029 = vpop.f32.mrf.mxu0
        %v1030 = vpop.f32.mrf.mxu0
        %1031 = vdwg.mxu0
        %v1032 = vld [vmem:[#allocation2] sm:$0xff]
        %v1033 = vpack.c.bf16 %v1027, %v1027
        %v1034 = vld [vmem:[#allocation8 + $0x10] sm:$0xf]
        %v1035 = vld [vmem:[#allocation8 + $0x14] sm:$0xf]
        %v1036 = vld [vmem:[#allocation8 + $0x18] sm:$0xf]
        %v1037 = vld [vmem:[#allocation8 + $0x1c] sm:$0xf]
        %v1042 = vunpack.c.l.b16 %v1034
        %v1043 = vunpack.c.l.b16 %v1035
        %v1044 = vunpack.c.l.b16 %v1036
        %v1045 = vunpack.c.l.b16 %v1037
        %v1046 = vpack.c.b16 %v1043, %v1042
        %v1047 = vpack.c.b16 %v1045, %v1044
        %v1051 = vsel %vm746, %v1033, 0
        %1053 = vmatprep.subr.bf16.mxu0 0
        %1054 = vmatpush1.bf16.msra.mxu0 0
        %1055 = vmatprep.subr.bf16.mxu0 0
        %1056 = vmatpush1.bf16.msra.mxu0 0
        %1057 = vmatprep.subr.bf16.mxu0 0
        %1058 = vmatpush1.bf16.msra.mxu0 0
        %1059 = vmatprep.subr.bf16.mxu0 0
        %1060 = vmatpush1.bf16.msra.mxu0 0
        %1061 = vmatprep.subr.bf16.mxu0 0
        %1062 = vmatpush1.bf16.msra.mxu0 0
        %1063 = vmatprep.subr.bf16.mxu0 0
        %1064 = vmatpush1.bf16.msra.mxu0 0
        %1065 = vmatprep.subr.bf16.mxu0 0
        %1066 = vmatpush1.bf16.msra.mxu0 %v1047
        %1067 = vmatprep.subr.bf16.mxu0 0
        %1068 = vmatpush1.bf16.msra.mxu0 %v1046
        %1069 = vmatprep.subr.bf16.mxu0 0
        %1070 = vmatpush2.bf16.msra.mxu0 0
        %1071 = vmatprep.subr.bf16.mxu0 0
        %1072 = vmatpush2.bf16.msra.mxu0 0
        %1073 = vmatprep.subr.bf16.mxu0 0
        %1074 = vmatpush2.bf16.msra.mxu0 0
        %1075 = vmatprep.subr.bf16.mxu0 0
        %1076 = vmatpush2.bf16.msra.mxu0 0
        %1077 = vmatprep.subr.bf16.mxu0 0
        %1078 = vmatpush2.bf16.msra.mxu0 0
        %1079 = vmatprep.subr.bf16.mxu0 0
        %1080 = vmatpush2.bf16.msra.mxu0 0
        %1081 = vmatprep.subr.bf16.mxu0 0
        %1082 = vmatpush2.bf16.msra.mxu0 0
        %1083 = vmatprep.subr.bf16.mxu0 0
        %1084 = vmatpush2.bf16.msra.mxu0 0
        %1085 = vmatprep.mubr.bf16.mxu0 0
        %1086 = vmatmul.mubr.bf16.gmra.mxu0 %v1051
        %v1087 = vpop.f32.mrf.mxu0
        %v1088 = vadd.f32 0.0, %v1087
        %v1089 = vpop.f32.mrf.mxu0
        %v1090 = vpop.f32.mrf.mxu0
        %v1091 = vpop.f32.mrf.mxu0
        %1092 = vdwg.mxu0
        %v1093 = vadd.f32 %v1032, %v1088
        %1094 = vst [vmem:[#allocation2] sm:$0xff] %v1093
        %1095 = vrot.lane.b32.xlu0 %v744, 64
        %v1096 = vpop.permute.xlu0 %1095
        %1097 = vrot.lane.b32.xlu0 %v745, 64
        %v1098 = vpop.permute.xlu0 %1097
        %v1100 = vsel %vm746, %v1096, 0
        %v1103 = vsel %vm746, %v1098, 0
        %1105 = vmatprep.subr.bf16.mxu0 0
        %1106 = vmatpush1.bf16.xpose.msra.mxu0 0
        %1107 = vmatprep.subr.bf16.mxu0 0
        %1108 = vmatpush1.bf16.xpose.msra.mxu0 0
        %1109 = vmatprep.subr.bf16.mxu0 0
        %1110 = vmatpush1.bf16.xpose.msra.mxu0 0
        %1111 = vmatprep.subr.bf16.mxu0 0
        %1112 = vmatpush1.bf16.xpose.msra.mxu0 0
        %1113 = vmatprep.subr.bf16.mxu0 0
        %1114 = vmatpush1.bf16.xpose.msra.mxu0 0
        %1115 = vmatprep.subr.bf16.mxu0 0
        %1116 = vmatpush1.bf16.xpose.msra.mxu0 0
        %1117 = vmatprep.subr.bf16.mxu0 0
        %1118 = vmatpush1.bf16.xpose.msra.mxu0 0
        %1119 = vmatprep.subr.bf16.mxu0 0
        %1120 = vmatpush1.bf16.xpose.msra.mxu0 %v1103
        %1121 = vmatprep.subr.bf16.mxu0 0
        %1122 = vmatpush2.bf16.xpose.msra.mxu0 0
        %1123 = vmatprep.subr.bf16.mxu0 0
        %1124 = vmatpush2.bf16.xpose.msra.mxu0 0
        %1125 = vmatprep.subr.bf16.mxu0 0
        %1126 = vmatpush2.bf16.xpose.msra.mxu0 0
        %1127 = vmatprep.subr.bf16.mxu0 0
        %1128 = vmatpush2.bf16.xpose.msra.mxu0 0
        %1129 = vmatprep.subr.bf16.mxu0 0
        %1130 = vmatpush2.bf16.xpose.msra.mxu0 0
        %1131 = vmatprep.subr.bf16.mxu0 0
        %1132 = vmatpush2.bf16.xpose.msra.mxu0 0
        %1133 = vmatprep.subr.bf16.mxu0 0
        %1134 = vmatpush2.bf16.xpose.msra.mxu0 0
        %1135 = vmatprep.subr.bf16.mxu0 0
        %1136 = vmatpush2.bf16.xpose.msra.mxu0 0
        %1137 = vmatprep.mubr.bf16.mxu0 0
        %1138 = vmatmul.mubr.bf16.gmra.mxu0 %v1100
        %v1139 = vpop.f32.mrf.mxu0
        %v1140 = vadd.f32 0.0, %v1139
        %v1141 = vpop.f32.mrf.mxu0
        %v1142 = vpop.f32.mrf.mxu0
        %v1143 = vpop.f32.mrf.mxu0
        %1144 = vdwg.mxu0
        %v1145 = vmul.f32 %v1140, 0.17677669
        %v1146 = vsel %vm794, %v1145, -inf
        %1147 = vmax.xlane.f32.xlu0 %v1146
        %v1148 = vpop.xlane.xlu0 %1147
        %v1149 = vsub.f32 %v1145, %v1148
        %v1150 = vmul.f32 %v1149, 1.442695
        %v1151 = vpow.pop %v1150
        %v1152 = vsel %vm794, %v1151, 0.0
        %1153 = vadd.xlane.f32.xlu0 %v1152
        %v1154 = vpop.xlane.xlu0 %1153
        %v1155 = vrcp.pop %v1154
        %v1156 = vmul.f32 %v1151, %v1155
        %v1157 = vpack.c.bf16 %v1156, %v1156
        %1158 = vrot.lane.b32.xlu0 %v807, 64
        %v1159 = vpop.permute.xlu0 %1158
        %v1161 = vsel %vm794, %v1157, 0
        %v1164 = vsel %vm811, %v1159, 0
        %1166 = vmatprep.subr.bf16.mxu0 0
        %1167 = vmatpush1.bf16.msra.mxu0 0
        %1168 = vmatprep.subr.bf16.mxu0 0
        %1169 = vmatpush1.bf16.msra.mxu0 0
        %1170 = vmatprep.subr.bf16.mxu0 0
        %1171 = vmatpush1.bf16.msra.mxu0 0
        %1172 = vmatprep.subr.bf16.mxu0 0
        %1173 = vmatpush1.bf16.msra.mxu0 0
        %1174 = vmatprep.subr.bf16.mxu0 0
        %1175 = vmatpush1.bf16.msra.mxu0 0
        %1176 = vmatprep.subr.bf16.mxu0 0
        %1177 = vmatpush1.bf16.msra.mxu0 0
        %1178 = vmatprep.subr.bf16.mxu0 0
        %1179 = vmatpush1.bf16.msra.mxu0 0
        %1180 = vmatprep.subr.bf16.mxu0 0
        %1181 = vmatpush1.bf16.msra.mxu0 %v1164
        %1182 = vmatprep.subr.bf16.mxu0 0
        %1183 = vmatpush2.bf16.msra.mxu0 0
        %1184 = vmatprep.subr.bf16.mxu0 0
        %1185 = vmatpush2.bf16.msra.mxu0 0
        %1186 = vmatprep.subr.bf16.mxu0 0
        %1187 = vmatpush2.bf16.msra.mxu0 0
        %1188 = vmatprep.subr.bf16.mxu0 0
        %1189 = vmatpush2.bf16.msra.mxu0 0
        %1190 = vmatprep.subr.bf16.mxu0 0
        %1191 = vmatpush2.bf16.msra.mxu0 0
        %1192 = vmatprep.subr.bf16.mxu0 0
        %1193 = vmatpush2.bf16.msra.mxu0 0
        %1194 = vmatprep.subr.bf16.mxu0 0
        %1195 = vmatpush2.bf16.msra.mxu0 0
        %1196 = vmatprep.subr.bf16.mxu0 0
        %1197 = vmatpush2.bf16.msra.mxu0 0
        %1198 = vmatprep.mubr.bf16.mxu0 0
        %1199 = vmatmul.mubr.bf16.gmra.mxu0 %v1161
        %v1200 = vpop.f32.mrf.mxu0
        %v1201 = vadd.f32 0.0, %v1200
        %v1202 = vpop.f32.mrf.mxu0
        %v1203 = vpop.f32.mrf.mxu0
        %v1204 = vpop.f32.mrf.mxu0
        %1205 = vdwg.mxu0
        %v1206 = vld [vmem:[#allocation2] sm:$0xff]
        %v1207 = vpack.c.bf16 %v1201, %v1201
        %v1208 = vld [vmem:[#allocation8 + $0x20] sm:$0xf]
        %v1209 = vld [vmem:[#allocation8 + $0x24] sm:$0xf]
        %v1210 = vld [vmem:[#allocation8 + $0x28] sm:$0xf]
        %v1211 = vld [vmem:[#allocation8 + $0x2c] sm:$0xf]
        %v1216 = vunpack.c.l.b16 %v1208
        %v1217 = vunpack.c.l.b16 %v1209
        %v1218 = vunpack.c.l.b16 %v1210
        %v1219 = vunpack.c.l.b16 %v1211
        %v1220 = vpack.c.b16 %v1217, %v1216
        %v1221 = vpack.c.b16 %v1219, %v1218
        %v1225 = vsel %vm746, %v1207, 0
        %1227 = vmatprep.subr.bf16.mxu0 0
        %1228 = vmatpush1.bf16.msra.mxu0 0
        %1229 = vmatprep.subr.bf16.mxu0 0
        %1230 = vmatpush1.bf16.msra.mxu0 0
        %1231 = vmatprep.subr.bf16.mxu0 0
        %1232 = vmatpush1.bf16.msra.mxu0 0
        %1233 = vmatprep.subr.bf16.mxu0 0
        %1234 = vmatpush1.bf16.msra.mxu0 0
        %1235 = vmatprep.subr.bf16.mxu0 0
        %1236 = vmatpush1.bf16.msra.mxu0 0
        %1237 = vmatprep.subr.bf16.mxu0 0
        %1238 = vmatpush1.bf16.msra.mxu0 0
        %1239 = vmatprep.subr.bf16.mxu0 0
        %1240 = vmatpush1.bf16.msra.mxu0 %v1221
        %1241 = vmatprep.subr.bf16.mxu0 0
        %1242 = vmatpush1.bf16.msra.mxu0 %v1220
        %1243 = vmatprep.subr.bf16.mxu0 0
        %1244 = vmatpush2.bf16.msra.mxu0 0
        %1245 = vmatprep.subr.bf16.mxu0 0
        %1246 = vmatpush2.bf16.msra.mxu0 0
        %1247 = vmatprep.subr.bf16.mxu0 0
        %1248 = vmatpush2.bf16.msra.mxu0 0
        %1249 = vmatprep.subr.bf16.mxu0 0
        %1250 = vmatpush2.bf16.msra.mxu0 0
        %1251 = vmatprep.subr.bf16.mxu0 0
        %1252 = vmatpush2.bf16.msra.mxu0 0
        %1253 = vmatprep.subr.bf16.mxu0 0
        %1254 = vmatpush2.bf16.msra.mxu0 0
        %1255 = vmatprep.subr.bf16.mxu0 0
        %1256 = vmatpush2.bf16.msra.mxu0 0
        %1257 = vmatprep.subr.bf16.mxu0 0
        %1258 = vmatpush2.bf16.msra.mxu0 0
        %1259 = vmatprep.mubr.bf16.mxu0 0
        %1260 = vmatmul.mubr.bf16.gmra.mxu0 %v1225
        %v1261 = vpop.f32.mrf.mxu0
        %v1262 = vadd.f32 0.0, %v1261
        %v1263 = vpop.f32.mrf.mxu0
        %v1264 = vpop.f32.mrf.mxu0
        %v1265 = vpop.f32.mrf.mxu0
        %1266 = vdwg.mxu0
        %v1267 = vadd.f32 %v1206, %v1262
        %1268 = vst [vmem:[#allocation2] sm:$0xff] %v1267
        %1269 = vrot.lane.b32.xlu0 %v744, 32
        %v1270 = vpop.permute.xlu0 %1269
        %1271 = vrot.lane.b32.xlu0 %v745, 32
        %v1272 = vpop.permute.xlu0 %1271
        %v1274 = vsel %vm746, %v1270, 0
        %v1277 = vsel %vm746, %v1272, 0
        %1279 = vmatprep.subr.bf16.mxu0 0
        %1280 = vmatpush1.bf16.xpose.msra.mxu0 0
        %1281 = vmatprep.subr.bf16.mxu0 0
        %1282 = vmatpush1.bf16.xpose.msra.mxu0 0
        %1283 = vmatprep.subr.bf16.mxu0 0
        %1284 = vmatpush1.bf16.xpose.msra.mxu0 0
        %1285 = vmatprep.subr.bf16.mxu0 0
        %1286 = vmatpush1.bf16.xpose.msra.mxu0 0
        %1287 = vmatprep.subr.bf16.mxu0 0
        %1288 = vmatpush1.bf16.xpose.msra.mxu0 0
        %1289 = vmatprep.subr.bf16.mxu0 0
        %1290 = vmatpush1.bf16.xpose.msra.mxu0 0
        %1291 = vmatprep.subr.bf16.mxu0 0
        %1292 = vmatpush1.bf16.xpose.msra.mxu0 0
        %1293 = vmatprep.subr.bf16.mxu0 0
        %1294 = vmatpush1.bf16.xpose.msra.mxu0 %v1277
        %1295 = vmatprep.subr.bf16.mxu0 0
        %1296 = vmatpush2.bf16.xpose.msra.mxu0 0
        %1297 = vmatprep.subr.bf16.mxu0 0
        %1298 = vmatpush2.bf16.xpose.msra.mxu0 0
        %1299 = vmatprep.subr.bf16.mxu0 0
        %1300 = vmatpush2.bf16.xpose.msra.mxu0 0
        %1301 = vmatprep.subr.bf16.mxu0 0
        %1302 = vmatpush2.bf16.xpose.msra.mxu0 0
        %1303 = vmatprep.subr.bf16.mxu0 0
        %1304 = vmatpush2.bf16.xpose.msra.mxu0 0
        %1305 = vmatprep.subr.bf16.mxu0 0
        %1306 = vmatpush2.bf16.xpose.msra.mxu0 0
        %1307 = vmatprep.subr.bf16.mxu0 0
        %1308 = vmatpush2.bf16.xpose.msra.mxu0 0
        %1309 = vmatprep.subr.bf16.mxu0 0
        %1310 = vmatpush2.bf16.xpose.msra.mxu0 0
        %1311 = vmatprep.mubr.bf16.mxu0 0
        %1312 = vmatmul.mubr.bf16.gmra.mxu0 %v1274
        %v1313 = vpop.f32.mrf.mxu0
        %v1314 = vadd.f32 0.0, %v1313
        %v1315 = vpop.f32.mrf.mxu0
        %v1316 = vpop.f32.mrf.mxu0
        %v1317 = vpop.f32.mrf.mxu0
        %1318 = vdwg.mxu0
        %v1319 = vmul.f32 %v1314, 0.17677669
        %v1320 = vsel %vm794, %v1319, -inf
        %1321 = vmax.xlane.f32.xlu0 %v1320
        %v1322 = vpop.xlane.xlu0 %1321
        %v1323 = vsub.f32 %v1319, %v1322
        %v1324 = vmul.f32 %v1323, 1.442695
        %v1325 = vpow.pop %v1324
        %v1326 = vsel %vm794, %v1325, 0.0
        %1327 = vadd.xlane.f32.xlu0 %v1326
        %v1328 = vpop.xlane.xlu0 %1327
        %v1329 = vrcp.pop %v1328
        %v1330 = vmul.f32 %v1325, %v1329
        %v1331 = vpack.c.bf16 %v1330, %v1330
        %1332 = vrot.lane.b32.xlu0 %v807, 32
        %v1333 = vpop.permute.xlu0 %1332
        %v1335 = vsel %vm794, %v1331, 0
        %v1338 = vsel %vm811, %v1333, 0
        %1340 = vmatprep.subr.bf16.mxu0 0
        %1341 = vmatpush1.bf16.msra.mxu0 0
        %1342 = vmatprep.subr.bf16.mxu0 0
        %1343 = vmatpush1.bf16.msra.mxu0 0
        %1344 = vmatprep.subr.bf16.mxu0 0
        %1345 = vmatpush1.bf16.msra.mxu0 0
        %1346 = vmatprep.subr.bf16.mxu0 0
        %1347 = vmatpush1.bf16.msra.mxu0 0
        %1348 = vmatprep.subr.bf16.mxu0 0
        %1349 = vmatpush1.bf16.msra.mxu0 0
        %1350 = vmatprep.subr.bf16.mxu0 0
        %1351 = vmatpush1.bf16.msra.mxu0 0
        %1352 = vmatprep.subr.bf16.mxu0 0
        %1353 = vmatpush1.bf16.msra.mxu0 0
        %1354 = vmatprep.subr.bf16.mxu0 0
        %1355 = vmatpush1.bf16.msra.mxu0 %v1338
        %1356 = vmatprep.subr.bf16.mxu0 0
        %1357 = vmatpush2.bf16.msra.mxu0 0
        %1358 = vmatprep.subr.bf16.mxu0 0
        %1359 = vmatpush2.bf16.msra.mxu0 0
        %1360 = vmatprep.subr.bf16.mxu0 0
        %1361 = vmatpush2.bf16.msra.mxu0 0
        %1362 = vmatprep.subr.bf16.mxu0 0
        %1363 = vmatpush2.bf16.msra.mxu0 0
        %1364 = vmatprep.subr.bf16.mxu0 0
        %1365 = vmatpush2.bf16.msra.mxu0 0
        %1366 = vmatprep.subr.bf16.mxu0 0
        %1367 = vmatpush2.bf16.msra.mxu0 0
        %1368 = vmatprep.subr.bf16.mxu0 0
        %1369 = vmatpush2.bf16.msra.mxu0 0
        %1370 = vmatprep.subr.bf16.mxu0 0
        %1371 = vmatpush2.bf16.msra.mxu0 0
        %1372 = vmatprep.mubr.bf16.mxu0 0
        %1373 = vmatmul.mubr.bf16.gmra.mxu0 %v1335
        %v1374 = vpop.f32.mrf.mxu0
        %v1375 = vadd.f32 0.0, %v1374
        %v1376 = vpop.f32.mrf.mxu0
        %v1377 = vpop.f32.mrf.mxu0
        %v1378 = vpop.f32.mrf.mxu0
        %1379 = vdwg.mxu0
        %v1380 = vld [vmem:[#allocation2] sm:$0xff]
        %v1381 = vpack.c.bf16 %v1375, %v1375
        %v1382 = vld [vmem:[#allocation8 + $0x30] sm:$0xf]
        %v1383 = vld [vmem:[#allocation8 + $0x34] sm:$0xf]
        %v1384 = vld [vmem:[#allocation8 + $0x38] sm:$0xf]
        %v1385 = vld [vmem:[#allocation8 + $0x3c] sm:$0xf]
        %v1390 = vunpack.c.l.b16 %v1382
        %v1391 = vunpack.c.l.b16 %v1383
        %v1392 = vunpack.c.l.b16 %v1384
        %v1393 = vunpack.c.l.b16 %v1385
        %v1394 = vpack.c.b16 %v1391, %v1390
        %v1395 = vpack.c.b16 %v1393, %v1392
        %v1399 = vsel %vm746, %v1381, 0
        %1401 = vmatprep.subr.bf16.mxu0 0
        %1402 = vmatpush1.bf16.msra.mxu0 0
        %1403 = vmatprep.subr.bf16.mxu0 0
        %1404 = vmatpush1.bf16.msra.mxu0 0
        %1405 = vmatprep.subr.bf16.mxu0 0
        %1406 = vmatpush1.bf16.msra.mxu0 0
        %1407 = vmatprep.subr.bf16.mxu0 0
        %1408 = vmatpush1.bf16.msra.mxu0 0
        %1409 = vmatprep.subr.bf16.mxu0 0
        %1410 = vmatpush1.bf16.msra.mxu0 0
        %1411 = vmatprep.subr.bf16.mxu0 0
        %1412 = vmatpush1.bf16.msra.mxu0 0
        %1413 = vmatprep.subr.bf16.mxu0 0
        %1414 = vmatpush1.bf16.msra.mxu0 %v1395
        %1415 = vmatprep.subr.bf16.mxu0 0
        %1416 = vmatpush1.bf16.msra.mxu0 %v1394
        %1417 = vmatprep.subr.bf16.mxu0 0
        %1418 = vmatpush2.bf16.msra.mxu0 0
        %1419 = vmatprep.subr.bf16.mxu0 0
        %1420 = vmatpush2.bf16.msra.mxu0 0
        %1421 = vmatprep.subr.bf16.mxu0 0
        %1422 = vmatpush2.bf16.msra.mxu0 0
        %1423 = vmatprep.subr.bf16.mxu0 0
        %1424 = vmatpush2.bf16.msra.mxu0 0
        %1425 = vmatprep.subr.bf16.mxu0 0
        %1426 = vmatpush2.bf16.msra.mxu0 0
        %1427 = vmatprep.subr.bf16.mxu0 0
        %1428 = vmatpush2.bf16.msra.mxu0 0
        %1429 = vmatprep.subr.bf16.mxu0 0
        %1430 = vmatpush2.bf16.msra.mxu0 0
        %1431 = vmatprep.subr.bf16.mxu0 0
        %1432 = vmatpush2.bf16.msra.mxu0 0
        %1433 = vmatprep.mubr.bf16.mxu0 0
        %1434 = vmatmul.mubr.bf16.gmra.mxu0 %v1399
        %v1435 = vpop.f32.mrf.mxu0
        %v1436 = vadd.f32 0.0, %v1435
        %v1437 = vpop.f32.mrf.mxu0
        %v1438 = vpop.f32.mrf.mxu0
        %v1439 = vpop.f32.mrf.mxu0
        %1440 = vdwg.mxu0
        %v1441 = vadd.f32 %v1380, %v1436
        %1442 = vst [vmem:[#allocation2] sm:$0xff] %v1441
        %v1443 = vld [vmem:[#allocation2] sm:$0xff]
        %v1444 = vld [vmem:[#allocation10] sm:$0x1]
        %v1446 = vlaneseq
        %v1447 = vshrl.u32 %v1446, 7
        %v1448 = vsub.s32 0, %v1447
        %v1449 = vrot.slane %v1444, %v1448
        %v1451 = vadd.f32 %v1443, %v1449
        %v1452 = vadd.f32 %v479, %v1451
        %1453 = vadd.xlane.f32.xlu0 %v1452
        %v1454 = vpop.xlane.xlu0 %1453
        %v1455 = vrcp.pop 128.0
        %v1456 = vmul.f32 %v1454, %v1455
        %v1457 = vsub.f32 %v1452, %v1456
        %v1458 = vmul.f32 %v1457, %v1457
        %1459 = vadd.xlane.f32.xlu0 %v1458
        %v1460 = vpop.xlane.xlu0 %1459
        %v1461 = vmul.f32 %v1460, %v1455
        %v1462 = vadd.f32 %v1461, 1e-05
        %v1463 = vrsqrt.pop %v1462
        %v1464 = vmul.f32 %v1457, %v1463
        %v1465 = vld [vmem:[#allocation11] sm:$0x1]
        %v1467 = vlaneseq
        %v1468 = vshrl.u32 %v1467, 7
        %v1469 = vsub.s32 0, %v1468
        %v1470 = vrot.slane %v1465, %v1469
        %v1472 = vmul.f32 %v1464, %v1470
        %v1473 = vld [vmem:[#allocation13] sm:$0x1]
        %v1475 = vlaneseq
        %v1476 = vshrl.u32 %v1475, 7
        %v1477 = vsub.s32 0, %v1476
        %v1478 = vrot.slane %v1473, %v1477
        %v1480 = vadd.f32 %v1472, %v1478
        %1481 = vst [vmem:[%s477] sm:$0xff] %v1480
        %p1482 = scmp.lt.s32.totalorder %s29, 1
        %s1483 = scalar_select %p1482, %s29, 1
        %s1484 = smul.addr %s1483, 8
        %s1485 = scalar_lea.vmem %s10, %s1484
        // Predicated region
        $region89: #{decoder_layer.3} parent=59 // pred_check
          %p1486 = pneg %p267
        $region90: #{decoder_layer.3} parent=59 // pred_check_branch
          %1488 = sbr.rel (%p1486) target = $region92
        $region91: #{decoder_layer.3} parent=59 // pred_region
          _
        $region92: #{decoder_layer.3} parent=59 // pred_fallthru
          _
      $region60: #{decoder_layer.3} parent=5 // pred_fallthru
        _
      %p1489 = scmp.le.s32.totalorder 2, %s24
      // Predicated region
      $region93: #{decoder_layer.3} parent=5 // pred_check
        %p1490 = pneg %p1489
      $region94: #{decoder_layer.3} parent=5 // pred_check_branch
        %1492 = sbr.rel (%p1490) target = $region96
      $region95: #{decoder_layer.3} parent=5 // pred_region
        %s1493 = ssub.s32 %s24, 2
        // Predicated region
        $region97: #{decoder_layer.3} parent=95 // pred_check
          %p1494 = pneg %p273
        $region98: #{decoder_layer.3} parent=95 // pred_check_branch
          %1496 = sbr.rel (%p1494) target = $region100
        $region99: #{decoder_layer.3} parent=95 // pred_region
          %p1497 = scmp.lt.s32.totalorder %s30, 1
          %s1498 = scalar_select %p1497, %s30, 1
          %s1499 = smul.addr %s1498, 8
          %s1500 = scalar_lea.vmem %s10, %s1499
        $region100: #{decoder_layer.3} parent=95 // pred_fallthru
          _
      $region96: #{decoder_layer.3} parent=5 // pred_fallthru
        _
    $region6: #{decoder_layer.3} parent=1 // loop_footer
      %s28 = sadd.s32 1, %s24
    $region7: #{decoder_layer.3} parent=1 // loop_footer_branch
      %23 = sbr.rel target = $region3
    $region8: #{decoder_layer.3} parent=1 // loop_exit
      _
    %1501 = vsyncpa [#allocation4], 1
    %s1502 = scalar_lea.sflag [#allocation4], 1
    %1503 = vsyncpa %s1502, 1
    %1504 = vsyncpa [#allocation6], 1
    %s1505 = scalar_lea.sflag [#allocation6], 1
    %1506 = vsyncpa %s1505, 1
    %1507 = vsyncpa [#allocation9], 1
    %1508 = vsyncpa [#allocation12], 1

// kernel: decoder_layer.5
$region0: #{decoder_layer.5}
  #allocation0 [shape = 'u32[]', space=smem, size = 0x4, offset = 0x4, fixed_abs, tag = 'smem constant byte address 0x4 - core index']
  #allocation1 [shape = 'u32[144,128]{1,0:T(1,128)}', space=vmem, size = 0x12000, scoped, tag = 'internal scratch']
  #allocation2 [shape = 'bf16[12,128]{1,0:T(8,128)(2,1)}', space=vmem, size = 0x1000, scoped, tag = 'scratch operand']
  #allocation3 [shape = 'bf16[12,256]{1,0:T(8,128)(2,1)}', space=vmem, size = 0x2000, scoped, tag = 'scratch operand']
  %s0 = inlined_call_operand.vmem [shape: f32[2,8,128], index: 0, kind: input, shape index: {}]
  %s1 = inlined_call_operand.vmem [shape: bf16[3,128,256], index: 1, kind: input, shape index: {}]
  %s2 = inlined_call_operand.vmem [shape: f32[1,256], index: 2, kind: input, shape index: {}]
  %s3 = inlined_call_operand.hbm [shape: bf16[3,256,128], index: 3, kind: input, shape index: {}]
  %s4 = inlined_call_operand.vmem [shape: f32[1,128], index: 4, kind: input, shape index: {}]
  %s5 = inlined_call_operand.vmem [shape: f32[1,128], index: 5, kind: input, shape index: {}]
  %s6 = inlined_call_operand.vmem [shape: f32[1,128], index: 6, kind: input, shape index: {}]
  %s7 = inlined_call_operand.hbm [shape: f32[2,8,128], index: 7, kind: output, shape index: {}]
  %s8 = sld [smem:[#allocation0]]
  $region65: #{decoder_layer.5} parent=0
    _
  %s10 = ssub.s32 1, %s8
  %s11 = scalar_select 0, %s10, %s8
  $region1: #{decoder_layer.5} parent=0
    #allocation4 [shape = 'u8[196608]{0}', space=vmem, size = 0x30000, scoped, tag = 'input window, operand 3, single buffered']
    #allocation5 [shape = 's32[2]{0}', space=sflag, size = 0x8, scoped, tag = 'scoped memory for decoder_layer.5']
    #allocation6 [shape = 's32[2]{0}', space=sflag, size = 0x8, scoped, tag = 'scoped memory for decoder_layer.5']
    #allocation7 [shape = 'u8[8192]{0}', space=vmem, size = 0x2000, scoped, tag = 'output window, operand 0']
    %12 = vsyncpa [#allocation5], 0
    %13 = vsyncpa [#allocation6], 0
    %s14 = scalar_lea.sflag [#allocation6], 1
    %15 = vsyncpa %s14, 0
    loop: start=0, step=1, limit=4
    $region2: #{decoder_layer.5} parent=1 // loop_pre_header
      _
    $region3: #{decoder_layer.5} parent=1 // loop_header
      %s17 = sphi 0, %s21
      %p18 = scmp.ge.s32.totalorder %s17, 4
      %s27 = sphi 0, %s29
      %s30 = sphi 0, %s27
      %s31 = sphi 0, %s30
      %s47 = sphi 0, %s31
      %s51 = sphi 0, %s51
      %s53 = sphi 0, %s51
      %s54 = sphi 0, %s53
      %s68 = sphi 0, %s54
      %s72 = sphi 0, %s72
      %s74 = sphi 0, %s72
      %s75 = sphi 0, %s74
      %s89 = sphi 0, %s75
      %s93 = sphi 0, %s93
      %s95 = sphi 0, %s93
      %s96 = sphi 0, %s95
      %s110 = sphi 0, %s96
      %s114 = sphi 0, %s114
      %s116 = sphi 0, %s114
      %s117 = sphi 0, %s116
      %s131 = sphi 0, %s117
      %s135 = sphi 0, %s135
      %s137 = sphi 0, %s135
      %s138 = sphi 0, %s137
      %s152 = sphi 0, %s138
      %s156 = sphi 0, %s156
      %s158 = sphi 0, %s156
      %s159 = sphi 0, %s158
      %s173 = sphi 0, %s159
      %s179 = sphi 0, %s181
      %s182 = sphi 0, %s179
      %s183 = sphi 0, %s182
      %s199 = sphi 0, %s183
    $region4: #{decoder_layer.5} parent=1 // loop_header_branch
      %20 = sbr.rel (%p18) target = $region8
    $region5: #{decoder_layer.5} parent=1 // loop_body
      %s22 = ssub.s32 %s17, 1
      %s23 = ssub.s32 %s17, 2
      %s24 = sadd.s32 %s17, 1
      %s25 = ssub.s32 %s17, %s24
      %p26 = scmp.eq.s32.totalorder %s25, 0
      %s28 = sadd.s32 %s27, 1
      %s29 = scalar_select %p26, %s27, %s28
      %p32 = pneg %p26
      %p33 = scmp.eq.s32.totalorder %s17, 1
      %p34 = por %p32, %p33
      %p35 = scmp.ne.s32.totalorder %s27, %s30
      %p36 = scmp.eq.s32.totalorder %s17, 0
      %p37 = por %p35, %p36
      %p38 = scmp.ne.s32.totalorder %s27, %s30
      %p39 = scmp.eq.s32.totalorder %s22, 1
      %p40 = por %p38, %p39
      %p41 = scmp.ne.s32.totalorder %s30, %s31
      %p42 = scmp.eq.s32.totalorder %s22, 0
      %p43 = por %p41, %p42
      %p44 = scmp.ne.s32.totalorder %s30, %s31
      %p45 = scmp.eq.s32.totalorder %s23, 1
      %p46 = por %p44, %p45
      %p48 = scmp.ne.s32.totalorder %s31, %s47
      %p49 = scmp.eq.s32.totalorder %s23, 0
      %p50 = por %p48, %p49
      %s52 = sadd.s32 %s51, 1
      %p55 = scmp.eq.s32.totalorder %s17, 1
      %p56 = scmp.ne.s32.totalorder %s51, %s53
      %p57 = scmp.eq.s32.totalorder %s17, 0
      %p58 = por %p56, %p57
      %p59 = scmp.ne.s32.totalorder %s51, %s53
      %p60 = scmp.eq.s32.totalorder %s22, 1
      %p61 = por %p59, %p60
      %p62 = scmp.ne.s32.totalorder %s53, %s54
      %p63 = scmp.eq.s32.totalorder %s22, 0
      %p64 = por %p62, %p63
      %p65 = scmp.ne.s32.totalorder %s53, %s54
      %p66 = scmp.eq.s32.totalorder %s23, 1
      %p67 = por %p65, %p66
      %p69 = scmp.ne.s32.totalorder %s54, %s68
      %p70 = scmp.eq.s32.totalorder %s23, 0
      %p71 = por %p69, %p70
      %s73 = sadd.s32 %s72, 1
      %p76 = scmp.eq.s32.totalorder %s17, 1
      %p77 = scmp.ne.s32.totalorder %s72, %s74
      %p78 = scmp.eq.s32.totalorder %s17, 0
      %p79 = por %p77, %p78
      %p80 = scmp.ne.s32.totalorder %s72, %s74
      %p81 = scmp.eq.s32.totalorder %s22, 1
      %p82 = por %p80, %p81
      %p83 = scmp.ne.s32.totalorder %s74, %s75
      %p84 = scmp.eq.s32.totalorder %s22, 0
      %p85 = por %p83, %p84
      %p86 = scmp.ne.s32.totalorder %s74, %s75
      %p87 = scmp.eq.s32.totalorder %s23, 1
      %p88 = por %p86, %p87
      %p90 = scmp.ne.s32.totalorder %s75, %s89
      %p91 = scmp.eq.s32.totalorder %s23, 0
      %p92 = por %p90, %p91
      %s94 = sadd.s32 %s93, 1
      %p97 = scmp.eq.s32.totalorder %s17, 1
      %p98 = scmp.ne.s32.totalorder %s93, %s95
      %p99 = scmp.eq.s32.totalorder %s17, 0
      %p100 = por %p98, %p99
      %p101 = scmp.ne.s32.totalorder %s93, %s95
      %p102 = scmp.eq.s32.totalorder %s22, 1
      %p103 = por %p101, %p102
      %p104 = scmp.ne.s32.totalorder %s95, %s96
      %p105 = scmp.eq.s32.totalorder %s22, 0
      %p106 = por %p104, %p105
      %p107 = scmp.ne.s32.totalorder %s95, %s96
      %p108 = scmp.eq.s32.totalorder %s23, 1
      %p109 = por %p107, %p108
      %p111 = scmp.ne.s32.totalorder %s96, %s110
      %p112 = scmp.eq.s32.totalorder %s23, 0
      %p113 = por %p111, %p112
      %s115 = sadd.s32 %s114, 1
      %p118 = scmp.eq.s32.totalorder %s17, 1
      %p119 = scmp.ne.s32.totalorder %s114, %s116
      %p120 = scmp.eq.s32.totalorder %s17, 0
      %p121 = por %p119, %p120
      %p122 = scmp.ne.s32.totalorder %s114, %s116
      %p123 = scmp.eq.s32.totalorder %s22, 1
      %p124 = por %p122, %p123
      %p125 = scmp.ne.s32.totalorder %s116, %s117
      %p126 = scmp.eq.s32.totalorder %s22, 0
      %p127 = por %p125, %p126
      %p128 = scmp.ne.s32.totalorder %s116, %s117
      %p129 = scmp.eq.s32.totalorder %s23, 1
      %p130 = por %p128, %p129
      %p132 = scmp.ne.s32.totalorder %s117, %s131
      %p133 = scmp.eq.s32.totalorder %s23, 0
      %p134 = por %p132, %p133
      %s136 = sadd.s32 %s135, 1
      %p139 = scmp.eq.s32.totalorder %s17, 1
      %p140 = scmp.ne.s32.totalorder %s135, %s137
      %p141 = scmp.eq.s32.totalorder %s17, 0
      %p142 = por %p140, %p141
      %p143 = scmp.ne.s32.totalorder %s135, %s137
      %p144 = scmp.eq.s32.totalorder %s22, 1
      %p145 = por %p143, %p144
      %p146 = scmp.ne.s32.totalorder %s137, %s138
      %p147 = scmp.eq.s32.totalorder %s22, 0
      %p148 = por %p146, %p147
      %p149 = scmp.ne.s32.totalorder %s137, %s138
      %p150 = scmp.eq.s32.totalorder %s23, 1
      %p151 = por %p149, %p150
      %p153 = scmp.ne.s32.totalorder %s138, %s152
      %p154 = scmp.eq.s32.totalorder %s23, 0
      %p155 = por %p153, %p154
      %s157 = sadd.s32 %s156, 1
      %p160 = scmp.eq.s32.totalorder %s17, 1
      %p161 = scmp.ne.s32.totalorder %s156, %s158
      %p162 = scmp.eq.s32.totalorder %s17, 0
      %p163 = por %p161, %p162
      %p164 = scmp.ne.s32.totalorder %s156, %s158
      %p165 = scmp.eq.s32.totalorder %s22, 1
      %p166 = por %p164, %p165
      %p167 = scmp.ne.s32.totalorder %s158, %s159
      %p168 = scmp.eq.s32.totalorder %s22, 0
      %p169 = por %p167, %p168
      %p170 = scmp.ne.s32.totalorder %s158, %s159
      %p171 = scmp.eq.s32.totalorder %s23, 1
      %p172 = por %p170, %p171
      %p174 = scmp.ne.s32.totalorder %s159, %s173
      %p175 = scmp.eq.s32.totalorder %s23, 0
      %p176 = por %p174, %p175
      %s177 = ssub.s32 %s17, %s24
      %p178 = scmp.eq.s32.totalorder %s177, 0
      %s180 = sadd.s32 %s179, 1
      %s181 = scalar_select %p178, %s179, %s180
      %p184 = pneg %p178
      %p185 = scmp.eq.s32.totalorder %s17, 1
      %p186 = por %p184, %p185
      %p187 = scmp.ne.s32.totalorder %s179, %s182
      %p188 = scmp.eq.s32.totalorder %s17, 0
      %p189 = por %p187, %p188
      %p190 = scmp.ne.s32.totalorder %s179, %s182
      %p191 = scmp.eq.s32.totalorder %s22, 1
      %p192 = por %p190, %p191
      %p193 = scmp.ne.s32.totalorder %s182, %s183
      %p194 = scmp.eq.s32.totalorder %s22, 0
      %p195 = por %p193, %p194
      %p196 = scmp.ne.s32.totalorder %s182, %s183
      %p197 = scmp.eq.s32.totalorder %s23, 1
      %p198 = por %p196, %p197
      %p200 = scmp.ne.s32.totalorder %s183, %s199
      %p201 = scmp.eq.s32.totalorder %s23, 0
      %p202 = por %p200, %p201
      %p203 = scmp.le.s32.totalorder 1, %s17
      %p204 = scmp.lt.s32.totalorder %s17, 3
      %p205 = pnand %p203, %p204
      %p206 = pneg %p205
      // Predicated region
      $region9: #{decoder_layer.5} parent=5 // pred_check
        _
      $region10: #{decoder_layer.5} parent=5 // pred_check_branch
        %208 = sbr.rel (%p205) target = $region12
      $region11: #{decoder_layer.5} parent=5 // pred_region
        %s209 = ssub.s32 %s17, 1
        // Predicated region
        $region13: #{decoder_layer.5} parent=11 // pred_check
          %p210 = pneg %p64
        $region14: #{decoder_layer.5} parent=11 // pred_check_branch
          %212 = sbr.rel (%p210) target = $region16
        $region15: #{decoder_layer.5} parent=11 // pred_region
          _
        $region16: #{decoder_layer.5} parent=11 // pred_fallthru
          _
        // Predicated region
        $region17: #{decoder_layer.5} parent=11 // pred_check
          %p213 = pneg %p85
        $region18: #{decoder_layer.5} parent=11 // pred_check_branch
          %215 = sbr.rel (%p213) target = $region20
        $region19: #{decoder_layer.5} parent=11 // pred_region
          _
        $region20: #{decoder_layer.5} parent=11 // pred_fallthru
          _
        // Predicated region
        $region21: #{decoder_layer.5} parent=11 // pred_check
          %p216 = pneg %p106
        $region22: #{decoder_layer.5} parent=11 // pred_check_branch
          %218 = sbr.rel (%p216) target = $region24
        $region23: #{decoder_layer.5} parent=11 // pred_region
          %s220 = ssub.s32 6144, 6144
          %221 = vsyncadd [#allocation5], %s220
          %s222 = sshll.u32 [#allocation4], 4
          %s223 = int_to_ptr.vmem [resolvable:$true] %s222
          %228 = dma.hbm_to_vmem [thread:$0]  %s3, 6144, %s223, [#allocation5], 64, 64, 4
        $region24: #{decoder_layer.5} parent=11 // pred_fallthru
          _
        // Predicated region
        $region25: #{decoder_layer.5} parent=11 // pred_check
          %p229 = pneg %p127
        $region26: #{decoder_layer.5} parent=11 // pred_check_branch
          %231 = sbr.rel (%p229) target = $region28
        $region27: #{decoder_layer.5} parent=11 // pred_region
          _
        $region28: #{decoder_layer.5} parent=11 // pred_fallthru
          _
        // Predicated region
        $region29: #{decoder_layer.5} parent=11 // pred_check
          %p232 = pneg %p148
        $region30: #{decoder_layer.5} parent=11 // pred_check_branch
          %234 = sbr.rel (%p232) target = $region32
        $region31: #{decoder_layer.5} parent=11 // pred_region
          _
        $region32: #{decoder_layer.5} parent=11 // pred_fallthru
          _
        // Predicated region
        $region33: #{decoder_layer.5} parent=11 // pred_check
          %p235 = pneg %p169
        $region34: #{decoder_layer.5} parent=11 // pred_check_branch
          %237 = sbr.rel (%p235) target = $region36
        $region35: #{decoder_layer.5} parent=11 // pred_region
          _
        $region36: #{decoder_layer.5} parent=11 // pred_fallthru
          _
      $region12: #{decoder_layer.5} parent=5 // pred_fallthru
        _
      %p238 = scmp.lt.s32.totalorder %s17, 2
      // Predicated region
      $region37: #{decoder_layer.5} parent=5 // pred_check
        %p239 = pneg %p238
      $region38: #{decoder_layer.5} parent=5 // pred_check_branch
        %241 = sbr.rel (%p239) target = $region40
      $region39: #{decoder_layer.5} parent=5 // pred_region
        // Predicated region
        $region41: #{decoder_layer.5} parent=39 // pred_check
          %p242 = pneg %p37
        $region42: #{decoder_layer.5} parent=39 // pred_check_branch
          %244 = sbr.rel (%p242) target = $region44
        $region43: #{decoder_layer.5} parent=39 // pred_region
          %p245 = scmp.lt.s32.totalorder %s17, 1
          %s246 = scalar_select %p245, %s17, 1
          %s247 = smul.addr %s246, 8
          %s248 = scalar_lea.vmem %s0, %s247
        $region44: #{decoder_layer.5} parent=39 // pred_fallthru
          _
      $region40: #{decoder_layer.5} parent=5 // pred_fallthru
        _
      %p249 = scmp.le.s32.totalorder 1, %s17
      %p250 = scmp.lt.s32.totalorder %s17, 3
      %p251 = pnand %p249, %p250
      %p252 = pneg %p251
      // Predicated region
      $region45: #{decoder_layer.5} parent=5 // pred_check
        _
      $region46: #{decoder_layer.5} parent=5 // pred_check_branch
        %254 = sbr.rel (%p251) target = $region48
      $region47: #{decoder_layer.5} parent=5 // pred_region
        %s255 = ssub.s32 %s17, 1
        // Predicated region
        $region49: #{decoder_layer.5} parent=47 // pred_check
          %p256 = pneg %p106
        $region50: #{decoder_layer.5} parent=47 // pred_check_branch
          %258 = sbr.rel (%p256) target = $region52
        $region51: #{decoder_layer.5} parent=47 // pred_region
          %259 = dma.done [#allocation5], 6144
        $region52: #{decoder_layer.5} parent=47 // pred_fallthru
          _
        %p260 = scmp.lt.s32.totalorder %s22, 1
        %s261 = scalar_select %p260, %s22, 1
        %s262 = smul.addr %s261, 8
        %s263 = scalar_lea.vmem %s0, %s262
        %p264 = pneg %p43
        %p265 = pneg %p40
        %p266 = pneg %p64
        %p267 = pneg %p61
        %p268 = pneg %p85
        %p269 = pneg %p82
        %p270 = pneg %p106
        %p271 = pneg %p103
        %p272 = pneg %p127
        %p273 = pneg %p124
        %p274 = pneg %p148
        %p275 = pneg %p145
        %p276 = pneg %p169
        %p277 = pneg %p166
        %p278 = pneg %p195
        %p279 = pneg %p192
        %s280 = sand.u32 %s182, 1
        %s281 = scalar_lea.sflag [#allocation6], %s280
        %s282 = sand.u32 %s182, 1
        %s283 = smul.addr %s282, 8
        %s284 = scalar_lea.vmem [#allocation7], %s283
        %p285 = scmp.lt.s32.totalorder %s22, 1
        %s286 = scalar_select %p285, %s22, 1
        %s287 = smul.addr %s286, 8
        %s288 = scalar_lea.vmem %s0, %s287
        %v290 = vld [vmem:[%s288] sm:$0xff]
        %291 = vst [vmem:[#allocation2] sm:$0xf] 0
        %292 = vst [vmem:[#allocation2 + $0x4] sm:$0x3] 0
        %v293 = vpack.c.bf16 %v290, %v290
        %v295 = vunpack.c.l.b16 %v293
        %v296 = vpack.c.b16 %v295, %v295
        %v297 = vrot.slane %v296, 7
        %v298 = vrot.slane %v297, 4
        %301 = vst [vmem:[#allocation2] sm:$0xe] %v297
        %302 = vst [vmem:[#allocation2 + $0x4] sm:$0x1] %v298
        %v303 = vld [vmem:[%s2] sm:$0x3]
        %v305 = vlaneseq
        %v306 = vshrl.u32 %v305, 7
        %v307 = vsub.s32 0, %v306
        %v308 = vrot.slane %v303, %v307
        %v309 = vlaneseq
        %v310 = vshrl.u32 %v309, 7
        %v311 = vsub.s32 1, %v310
        %v312 = vrot.slane %v303, %v311
        %v315 = vadd.f32 %v308, 0.0
        %v316 = vadd.f32 %v312, 0.0
        %v317 = vld [vmem:[#allocation2] sm:$0xf]
        %v318 = vld [vmem:[%s1] sm:$0xff]
        %v319 = vld [vmem:[%s1 + $0x8] sm:$0xff]
        %v320 = vld [vmem:[%s1 + $0x10] sm:$0xff]
        %v321 = vld [vmem:[%s1 + $0x18] sm:$0xff]
        %v322 = vld [vmem:[%s1 + $0x20] sm:$0xff]
        %v323 = vld [vmem:[%s1 + $0x28] sm:$0xff]
        %v324 = vld [vmem:[%s1 + $0x30] sm:$0xff]
        %v325 = vld [vmem:[%s1 + $0x38] sm:$0xff]
        %v326 = vld [vmem:[%s1 + $0x40] sm:$0xff]
        %v327 = vld [vmem:[%s1 + $0x48] sm:$0xff]
        %v328 = vld [vmem:[%s1 + $0x50] sm:$0xff]
        %v329 = vld [vmem:[%s1 + $0x58] sm:$0xff]
        %v330 = vld [vmem:[%s1 + $0x60] sm:$0xff]
        %v331 = vld [vmem:[%s1 + $0x68] sm:$0xff]
        %v332 = vld [vmem:[%s1 + $0x70] sm:$0xff]
        %v333 = vld [vmem:[%s1 + $0x78] sm:$0xff]
        %v350 = vunpack.c.l.b16 %v318
        %v351 = vunpack.c.h.b16 %v318
        %v352 = vunpack.c.l.b16 %v319
        %v353 = vunpack.c.h.b16 %v319
        %v354 = vunpack.c.l.b16 %v320
        %v355 = vunpack.c.h.b16 %v320
        %v356 = vunpack.c.l.b16 %v321
        %v357 = vunpack.c.h.b16 %v321
        %v358 = vunpack.c.l.b16 %v322
        %v359 = vunpack.c.h.b16 %v322
        %v360 = vunpack.c.l.b16 %v323
        %v361 = vunpack.c.h.b16 %v323
        %v362 = vunpack.c.l.b16 %v324
        %v363 = vunpack.c.h.b16 %v324
        %v364 = vunpack.c.l.b16 %v325
        %v365 = vunpack.c.h.b16 %v325
        %v366 = vunpack.c.l.b16 %v326
        %v367 = vunpack.c.h.b16 %v326
        %v368 = vunpack.c.l.b16 %v327
        %v369 = vunpack.c.h.b16 %v327
        %v370 = vunpack.c.l.b16 %v328
        %v371 = vunpack.c.h.b16 %v328
        %v372 = vunpack.c.l.b16 %v329
        %v373 = vunpack.c.h.b16 %v329
        %v374 = vunpack.c.l.b16 %v330
        %v375 = vunpack.c.h.b16 %v330
        %v376 = vunpack.c.l.b16 %v331
        %v377 = vunpack.c.h.b16 %v331
        %v378 = vunpack.c.l.b16 %v332
        %v379 = vunpack.c.h.b16 %v332
        %v380 = vunpack.c.l.b16 %v333
        %v381 = vunpack.c.h.b16 %v333
        %v382 = vpack.c.b16 %v352, %v350
        %v383 = vpack.c.b16 %v353, %v351
        %v384 = vpack.c.b16 %v356, %v354
        %v385 = vpack.c.b16 %v357, %v355
        %v386 = vpack.c.b16 %v360, %v358
        %v387 = vpack.c.b16 %v361, %v359
        %v388 = vpack.c.b16 %v364, %v362
        %v389 = vpack.c.b16 %v365, %v363
        %v390 = vpack.c.b16 %v368, %v366
        %v391 = vpack.c.b16 %v369, %v367
        %v392 = vpack.c.b16 %v372, %v370
        %v393 = vpack.c.b16 %v373, %v371
        %v394 = vpack.c.b16 %v376, %v374
        %v395 = vpack.c.b16 %v377, %v375
        %v396 = vpack.c.b16 %v380, %v378
        %v397 = vpack.c.b16 %v381, %v379
        %414 = vmatprep.subr.bf16.mxu0 %v397
        %415 = vmatpush1.bf16.msra.mxu0 %v396
        %416 = vmatprep.subr.bf16.mxu0 %v395
        %417 = vmatpush1.bf16.msra.mxu0 %v394
        %418 = vmatprep.subr.bf16.mxu0 %v393
        %419 = vmatpush1.bf16.msra.mxu0 %v392
        %420 = vmatprep.subr.bf16.mxu0 %v391
        %421 = vmatpush1.bf16.msra.mxu0 %v390
        %422 = vmatprep.subr.bf16.mxu0 %v389
        %423 = vmatpush1.bf16.msra.mxu0 %v388
        %424 = vmatprep.subr.bf16.mxu0 %v387
        %425 = vmatpush1.bf16.msra.mxu0 %v386
        %426 = vmatprep.subr.bf16.mxu0 %v385
        %427 = vmatpush1.bf16.msra.mxu0 %v384
        %428 = vmatprep.subr.bf16.mxu0 %v383
        %429 = vmatpush1.bf16.msra.mxu0 %v382
        %430 = vmatprep.subr.bf16.mxu0 0
        %431 = vmatpush2.bf16.msra.mxu0 0
        %432 = vmatprep.subr.bf16.mxu0 0
        %433 = vmatpush2.bf16.msra.mxu0 0
        %434 = vmatprep.subr.bf16.mxu0 0
        %435 = vmatpush2.bf16.msra.mxu0 0
        %436 = vmatprep.subr.bf16.mxu0 0
        %437 = vmatpush2.bf16.msra.mxu0 0
        %438 = vmatprep.subr.bf16.mxu0 0
        %439 = vmatpush2.bf16.msra.mxu0 0
        %440 = vmatprep.subr.bf16.mxu0 0
        %441 = vmatpush2.bf16.msra.mxu0 0
        %442 = vmatprep.subr.bf16.mxu0 0
        %443 = vmatpush2.bf16.msra.mxu0 0
        %444 = vmatprep.subr.bf16.mxu0 0
        %445 = vmatpush2.bf16.msra.mxu0 0
        %446 = vmatprep.mubr.bf16.mxu0 0
        %447 = vmatmul.mubr.bf16.gmra.mxu0 %v317
        %v448 = vpop.f32.mrf.mxu0
        %v449 = vadd.f32 0.0, %v448
        %v450 = vpop.f32.mrf.mxu0
        %v451 = vadd.f32 0.0, %v450
        %v452 = vpop.f32.mrf.mxu0
        %v453 = vpop.f32.mrf.mxu0
        %454 = vdwg.mxu0
        %v455 = vadd.f32 %v315, %v449
        %v456 = vadd.f32 %v316, %v451
        %v457 = vld [vmem:[#allocation2] sm:$0xe]
        %v458 = vld [vmem:[#allocation2 + $0x4] sm:$0x1]
        %s459 = scalar_lea.vmem %s1, 128
        %v460 = vld [vmem:[%s459] sm:$0xff]
        %v461 = vld [vmem:[%s459 + $0x8] sm:$0xff]
        %v462 = vld [vmem:[%s459 + $0x10] sm:$0xff]
        %v463 = vld [vmem:[%s459 + $0x18] sm:$0xff]
        %v464 = vld [vmem:[%s459 + $0x20] sm:$0xff]
        %v465 = vld [vmem:[%s459 + $0x28] sm:$0xff]
        %v466 = vld [vmem:[%s459 + $0x30] sm:$0xff]
        %v467 = vld [vmem:[%s459 + $0x38] sm:$0xff]
        %v468 = vld [vmem:[%s459 + $0x40] sm:$0xff]
        %v469 = vld [vmem:[%s459 + $0x48] sm:$0xff]
        %v470 = vld [vmem:[%s459 + $0x50] sm:$0xff]
        %v471 = vld [vmem:[%s459 + $0x58] sm:$0xff]
        %v472 = vld [vmem:[%s459 + $0x60] sm:$0xff]
        %v473 = vld [vmem:[%s459 + $0x68] sm:$0xff]
        %v474 = vld [vmem:[%s459 + $0x70] sm:$0xff]
        %v475 = vld [vmem:[%s459 + $0x78] sm:$0xff]
        %v478 = vunpack.c.l.b16 %v457
        %v479 = vunpack.c.l.b16 %v458
        %v480 = vpack.c.b16 %v479, %v478
        %v481 = vrot.slane %v480, 1
        %v499 = vunpack.c.l.b16 %v460
        %v500 = vunpack.c.h.b16 %v460
        %v501 = vunpack.c.l.b16 %v461
        %v502 = vunpack.c.h.b16 %v461
        %v503 = vunpack.c.l.b16 %v462
        %v504 = vunpack.c.h.b16 %v462
        %v505 = vunpack.c.l.b16 %v463
        %v506 = vunpack.c.h.b16 %v463
        %v507 = vunpack.c.l.b16 %v464
        %v508 = vunpack.c.h.b16 %v464
        %v509 = vunpack.c.l.b16 %v465
        %v510 = vunpack.c.h.b16 %v465
        %v511 = vunpack.c.l.b16 %v466
        %v512 = vunpack.c.h.b16 %v466
        %v513 = vunpack.c.l.b16 %v467
        %v514 = vunpack.c.h.b16 %v467
        %v515 = vunpack.c.l.b16 %v468
        %v516 = vunpack.c.h.b16 %v468
        %v517 = vunpack.c.l.b16 %v469
        %v518 = vunpack.c.h.b16 %v469
        %v519 = vunpack.c.l.b16 %v470
        %v520 = vunpack.c.h.b16 %v470
        %v521 = vunpack.c.l.b16 %v471
        %v522 = vunpack.c.h.b16 %v471
        %v523 = vunpack.c.l.b16 %v472
        %v524 = vunpack.c.h.b16 %v472
        %v525 = vunpack.c.l.b16 %v473
        %v526 = vunpack.c.h.b16 %v473
        %v527 = vunpack.c.l.b16 %v474
        %v528 = vunpack.c.h.b16 %v474
        %v529 = vunpack.c.l.b16 %v475
        %v530 = vunpack.c.h.b16 %v475
        %v531 = vpack.c.b16 %v501, %v499
        %v532 = vpack.c.b16 %v502, %v500
        %v533 = vpack.c.b16 %v505, %v503
        %v534 = vpack.c.b16 %v506, %v504
        %v535 = vpack.c.b16 %v509, %v507
        %v536 = vpack.c.b16 %v510, %v508
        %v537 = vpack.c.b16 %v513, %v511
        %v538 = vpack.c.b16 %v514, %v512
        %v539 = vpack.c.b16 %v517, %v515
        %v540 = vpack.c.b16 %v518, %v516
        %v541 = vpack.c.b16 %v521, %v519
        %v542 = vpack.c.b16 %v522, %v520
        %v543 = vpack.c.b16 %v525, %v523
        %v544 = vpack.c.b16 %v526, %v524
        %v545 = vpack.c.b16 %v529, %v527
        %v546 = vpack.c.b16 %v530, %v528
        %563 = vmatprep.subr.bf16.mxu0 %v546
        %564 = vmatpush1.bf16.msra.mxu0 %v545
        %565 = vmatprep.subr.bf16.mxu0 %v544
        %566 = vmatpush1.bf16.msra.mxu0 %v543
        %567 = vmatprep.subr.bf16.mxu0 %v542
        %568 = vmatpush1.bf16.msra.mxu0 %v541
        %569 = vmatprep.subr.bf16.mxu0 %v540
        %570 = vmatpush1.bf16.msra.mxu0 %v539
        %571 = vmatprep.subr.bf16.mxu0 %v538
        %572 = vmatpush1.bf16.msra.mxu0 %v537
        %573 = vmatprep.subr.bf16.mxu0 %v536
        %574 = vmatpush1.bf16.msra.mxu0 %v535
        %575 = vmatprep.subr.bf16.mxu0 %v534
        %576 = vmatpush1.bf16.msra.mxu0 %v533
        %577 = vmatprep.subr.bf16.mxu0 %v532
        %578 = vmatpush1.bf16.msra.mxu0 %v531
        %579 = vmatprep.subr.bf16.mxu0 0
        %580 = vmatpush2.bf16.msra.mxu0 0
        %581 = vmatprep.subr.bf16.mxu0 0
        %582 = vmatpush2.bf16.msra.mxu0 0
        %583 = vmatprep.subr.bf16.mxu0 0
        %584 = vmatpush2.bf16.msra.mxu0 0
        %585 = vmatprep.subr.bf16.mxu0 0
        %586 = vmatpush2.bf16.msra.mxu0 0
        %587 = vmatprep.subr.bf16.mxu0 0
        %588 = vmatpush2.bf16.msra.mxu0 0
        %589 = vmatprep.subr.bf16.mxu0 0
        %590 = vmatpush2.bf16.msra.mxu0 0
        %591 = vmatprep.subr.bf16.mxu0 0
        %592 = vmatpush2.bf16.msra.mxu0 0
        %593 = vmatprep.subr.bf16.mxu0 0
        %594 = vmatpush2.bf16.msra.mxu0 0
        %595 = vmatprep.mubr.bf16.mxu0 0
        %596 = vmatmul.mubr.bf16.gmra.mxu0 %v481
        %v597 = vpop.f32.mrf.mxu0
        %v598 = vadd.f32 0.0, %v597
        %v599 = vpop.f32.mrf.mxu0
        %v600 = vadd.f32 0.0, %v599
        %v601 = vpop.f32.mrf.mxu0
        %v602 = vpop.f32.mrf.mxu0
        %603 = vdwg.mxu0
        %v604 = vadd.f32 %v455, %v598
        %v605 = vadd.f32 %v456, %v600
        %v606 = vld [vmem:[#allocation2] sm:$0xc]
        %v607 = vld [vmem:[#allocation2 + $0x4] sm:$0x3]
        %s608 = scalar_lea.vmem %s1, 256
        %v609 = vld [vmem:[%s608] sm:$0xff]
        %v610 = vld [vmem:[%s608 + $0x8] sm:$0xff]
        %v611 = vld [vmem:[%s608 + $0x10] sm:$0xff]
        %v612 = vld [vmem:[%s608 + $0x18] sm:$0xff]
        %v613 = vld [vmem:[%s608 + $0x20] sm:$0xff]
        %v614 = vld [vmem:[%s608 + $0x28] sm:$0xff]
        %v615 = vld [vmem:[%s608 + $0x30] sm:$0xff]
        %v616 = vld [vmem:[%s608 + $0x38] sm:$0xff]
        %v617 = vld [vmem:[%s608 + $0x40] sm:$0xff]
        %v618 = vld [vmem:[%s608 + $0x48] sm:$0xff]
        %v619 = vld [vmem:[%s608 + $0x50] sm:$0xff]
        %v620 = vld [vmem:[%s608 + $0x58] sm:$0xff]
        %v621 = vld [vmem:[%s608 + $0x60] sm:$0xff]
        %v622 = vld [vmem:[%s608 + $0x68] sm:$0xff]
        %v623 = vld [vmem:[%s608 + $0x70] sm:$0xff]
        %v624 = vld [vmem:[%s608 + $0x78] sm:$0xff]
        %v627 = vunpack.c.l.b16 %v606
        %v628 = vunpack.c.l.b16 %v607
        %v629 = vpack.c.b16 %v628, %v627
        %v630 = vrot.slane %v629, 2
        %v648 = vunpack.c.l.b16 %v609
        %v649 = vunpack.c.h.b16 %v609
        %v650 = vunpack.c.l.b16 %v610
        %v651 = vunpack.c.h.b16 %v610
        %v652 = vunpack.c.l.b16 %v611
        %v653 = vunpack.c.h.b16 %v611
        %v654 = vunpack.c.l.b16 %v612
        %v655 = vunpack.c.h.b16 %v612
        %v656 = vunpack.c.l.b16 %v613
        %v657 = vunpack.c.h.b16 %v613
        %v658 = vunpack.c.l.b16 %v614
        %v659 = vunpack.c.h.b16 %v614
        %v660 = vunpack.c.l.b16 %v615
        %v661 = vunpack.c.h.b16 %v615
        %v662 = vunpack.c.l.b16 %v616
        %v663 = vunpack.c.h.b16 %v616
        %v664 = vunpack.c.l.b16 %v617
        %v665 = vunpack.c.h.b16 %v617
        %v666 = vunpack.c.l.b16 %v618
        %v667 = vunpack.c.h.b16 %v618
        %v668 = vunpack.c.l.b16 %v619
        %v669 = vunpack.c.h.b16 %v619
        %v670 = vunpack.c.l.b16 %v620
        %v671 = vunpack.c.h.b16 %v620
        %v672 = vunpack.c.l.b16 %v621
        %v673 = vunpack.c.h.b16 %v621
        %v674 = vunpack.c.l.b16 %v622
        %v675 = vunpack.c.h.b16 %v622
        %v676 = vunpack.c.l.b16 %v623
        %v677 = vunpack.c.h.b16 %v623
        %v678 = vunpack.c.l.b16 %v624
        %v679 = vunpack.c.h.b16 %v624
        %v680 = vpack.c.b16 %v650, %v648
        %v681 = vpack.c.b16 %v651, %v649
        %v682 = vpack.c.b16 %v654, %v652
        %v683 = vpack.c.b16 %v655, %v653
        %v684 = vpack.c.b16 %v658, %v656
        %v685 = vpack.c.b16 %v659, %v657
        %v686 = vpack.c.b16 %v662, %v660
        %v687 = vpack.c.b16 %v663, %v661
        %v688 = vpack.c.b16 %v666, %v664
        %v689 = vpack.c.b16 %v667, %v665
        %v690 = vpack.c.b16 %v670, %v668
        %v691 = vpack.c.b16 %v671, %v669
        %v692 = vpack.c.b16 %v674, %v672
        %v693 = vpack.c.b16 %v675, %v673
        %v694 = vpack.c.b16 %v678, %v676
        %v695 = vpack.c.b16 %v679, %v677
        %712 = vmatprep.subr.bf16.mxu0 %v695
        %713 = vmatpush1.bf16.msra.mxu0 %v694
        %714 = vmatprep.subr.bf16.mxu0 %v693
        %715 = vmatpush1.bf16.msra.mxu0 %v692
        %716 = vmatprep.subr.bf16.mxu0 %v691
        %717 = vmatpush1.bf16.msra.mxu0 %v690
        %718 = vmatprep.subr.bf16.mxu0 %v689
        %719 = vmatpush1.bf16.msra.mxu0 %v688
        %720 = vmatprep.subr.bf16.mxu0 %v687
        %721 = vmatpush1.bf16.msra.mxu0 %v686
        %722 = vmatprep.subr.bf16.mxu0 %v685
        %723 = vmatpush1.bf16.msra.mxu0 %v684
        %724 = vmatprep.subr.bf16.mxu0 %v683
        %725 = vmatpush1.bf16.msra.mxu0 %v682
        %726 = vmatprep.subr.bf16.mxu0 %v681
        %727 = vmatpush1.bf16.msra.mxu0 %v680
        %728 = vmatprep.subr.bf16.mxu0 0
        %729 = vmatpush2.bf16.msra.mxu0 0
        %730 = vmatprep.subr.bf16.mxu0 0
        %731 = vmatpush2.bf16.msra.mxu0 0
        %732 = vmatprep.subr.bf16.mxu0 0
        %733 = vmatpush2.bf16.msra.mxu0 0
        %734 = vmatprep.subr.bf16.mxu0 0
        %735 = vmatpush2.bf16.msra.mxu0 0
        %736 = vmatprep.subr.bf16.mxu0 0
        %737 = vmatpush2.bf16.msra.mxu0 0
        %738 = vmatprep.subr.bf16.mxu0 0
        %739 = vmatpush2.bf16.msra.mxu0 0
        %740 = vmatprep.subr.bf16.mxu0 0
        %741 = vmatpush2.bf16.msra.mxu0 0
        %742 = vmatprep.subr.bf16.mxu0 0
        %743 = vmatpush2.bf16.msra.mxu0 0
        %744 = vmatprep.mubr.bf16.mxu0 0
        %745 = vmatmul.mubr.bf16.gmra.mxu0 %v630
        %v746 = vpop.f32.mrf.mxu0
        %v747 = vadd.f32 0.0, %v746
        %v748 = vpop.f32.mrf.mxu0
        %v749 = vadd.f32 0.0, %v748
        %v750 = vpop.f32.mrf.mxu0
        %v751 = vpop.f32.mrf.mxu0
        %752 = vdwg.mxu0
        %v753 = vadd.f32 %v604, %v747
        %v754 = vadd.f32 %v605, %v749
        %v755 = vmul.f32 %v753, 0.5
        %v756 = vmul.f32 %v754, 0.5
        %v757 = vmul.f32 %v753, 0.70710677
        %v758 = vmul.f32 %v754, 0.70710677
        %v759 = verf.f32.pop %v757
        %v760 = verf.f32.pop %v758
        %v761 = vadd.f32 %v759, 1.0
        %v762 = vadd.f32 %v760, 1.0
        %v763 = vmul.f32 %v755, %v761
        %v764 = vmul.f32 %v756, %v762
        %765 = vst [vmem:[#allocation3] sm:$0xff] 0
        %766 = vst [vmem:[#allocation3 + $0x8] sm:$0x33] 0
        %v767 = vpack.c.bf16 %v763, %v763
        %v768 = vpack.c.bf16 %v764, %v764
        %v771 = vunpack.c.l.b16 %v767
        %v772 = vunpack.c.l.b16 %v768
        %v773 = vpack.c.b16 %v772, %v771
        %v774 = vrot.slane %v773, 7
        %v775 = vrot.slane %v774, 4
        %778 = vst [vmem:[#allocation3] sm:$0xee] %v774
        %779 = vst [vmem:[#allocation3 + $0x8] sm:$0x11] %v775
        %v780 = vld [vmem:[%s4] sm:$0x1]
        %v782 = vlaneseq
        %v783 = vshrl.u32 %v782, 7
        %v784 = vsub.s32 0, %v783
        %v785 = vrot.slane %v780, %v784
        %v787 = vadd.f32 %v785, 0.0
        %v788 = vld [vmem:[#allocation3] sm:$0xff]
        %v789 = vld [vmem:[#allocation4] sm:$0xf]
        %v790 = vld [vmem:[#allocation4 + $0x4] sm:$0xf]
        %v791 = vld [vmem:[#allocation4 + $0x8] sm:$0xf]
        %v792 = vld [vmem:[#allocation4 + $0xc] sm:$0xf]
        %v793 = vld [vmem:[#allocation4 + $0x10] sm:$0xf]
        %v794 = vld [vmem:[#allocation4 + $0x14] sm:$0xf]
        %v795 = vld [vmem:[#allocation4 + $0x18] sm:$0xf]
        %v796 = vld [vmem:[#allocation4 + $0x1c] sm:$0xf]
        %v797 = vld [vmem:[#allocation4 + $0x20] sm:$0xf]
        %v798 = vld [vmem:[#allocation4 + $0x24] sm:$0xf]
        %v799 = vld [vmem:[#allocation4 + $0x28] sm:$0xf]
        %v800 = vld [vmem:[#allocation4 + $0x2c] sm:$0xf]
        %v801 = vld [vmem:[#allocation4 + $0x30] sm:$0xf]
        %v802 = vld [vmem:[#allocation4 + $0x34] sm:$0xf]
        %v803 = vld [vmem:[#allocation4 + $0x38] sm:$0xf]
        %v804 = vld [vmem:[#allocation4 + $0x3c] sm:$0xf]
        %v805 = vld [vmem:[#allocation4 + $0x40] sm:$0xf]
        %v806 = vld [vmem:[#allocation4 + $0x44] sm:$0xf]
        %v807 = vld [vmem:[#allocation4 + $0x48] sm:$0xf]
        %v808 = vld [vmem:[#allocation4 + $0x4c] sm:$0xf]
        %v809 = vld [vmem:[#allocation4 + $0x50] sm:$0xf]
        %v810 = vld [vmem:[#allocation4 + $0x54] sm:$0xf]
        %v811 = vld [vmem:[#allocation4 + $0x58] sm:$0xf]
        %v812 = vld [vmem:[#allocation4 + $0x5c] sm:$0xf]
        %v813 = vld [vmem:[#allocation4 + $0x60] sm:$0xf]
        %v814 = vld [vmem:[#allocation4 + $0x64] sm:$0xf]
        %v815 = vld [vmem:[#allocation4 + $0x68] sm:$0xf]
        %v816 = vld [vmem:[#allocation4 + $0x6c] sm:$0xf]
        %v817 = vld [vmem:[#allocation4 + $0x70] sm:$0xf]
        %v818 = vld [vmem:[#allocation4 + $0x74] sm:$0xf]
        %v819 = vld [vmem:[#allocation4 + $0x78] sm:$0xf]
        %v820 = vld [vmem:[#allocation4 + $0x7c] sm:$0xf]
        %v822 = vunpack.c.l.b16 %v788
        %v823 = vunpack.c.h.b16 %v788
        %v824 = vpack.c.b16 %v822, %v822
        %v825 = vpack.c.b16 %v823, %v823
        %v860 = vunpack.c.l.b16 %v789
        %v861 = vunpack.c.l.b16 %v790
        %v862 = vunpack.c.l.b16 %v791
        %v863 = vunpack.c.l.b16 %v792
        %v864 = vunpack.c.l.b16 %v793
        %v865 = vunpack.c.l.b16 %v794
        %v866 = vunpack.c.l.b16 %v795
        %v867 = vunpack.c.l.b16 %v796
        %v868 = vunpack.c.l.b16 %v797
        %v869 = vunpack.c.l.b16 %v798
        %v870 = vunpack.c.l.b16 %v799
        %v871 = vunpack.c.l.b16 %v800
        %v872 = vunpack.c.l.b16 %v801
        %v873 = vunpack.c.l.b16 %v802
        %v874 = vunpack.c.l.b16 %v803
        %v875 = vunpack.c.l.b16 %v804
        %v876 = vunpack.c.l.b16 %v805
        %v877 = vunpack.c.l.b16 %v806
        %v878 = vunpack.c.l.b16 %v807
        %v879 = vunpack.c.l.b16 %v808
        %v880 = vunpack.c.l.b16 %v809
        %v881 = vunpack.c.l.b16 %v810
        %v882 = vunpack.c.l.b16 %v811
        %v883 = vunpack.c.l.b16 %v812
        %v884 = vunpack.c.l.b16 %v813
        %v885 = vunpack.c.l.b16 %v814
        %v886 = vunpack.c.l.b16 %v815
        %v887 = vunpack.c.l.b16 %v816
        %v888 = vunpack.c.l.b16 %v817
        %v889 = vunpack.c.l.b16 %v818
        %v890 = vunpack.c.l.b16 %v819
        %v891 = vunpack.c.l.b16 %v820
        %v892 = vpack.c.b16 %v861, %v860
        %v893 = vpack.c.b16 %v863, %v862
        %v894 = vpack.c.b16 %v865, %v864
        %v895 = vpack.c.b16 %v867, %v866
        %v896 = vpack.c.b16 %v869, %v868
        %v897 = vpack.c.b16 %v871, %v870
        %v898 = vpack.c.b16 %v873, %v872
        %v899 = vpack.c.b16 %v875, %v874
        %v900 = vpack.c.b16 %v877, %v876
        %v901 = vpack.c.b16 %v879, %v878
        %v902 = vpack.c.b16 %v881, %v880
        %v903 = vpack.c.b16 %v883, %v882
        %v904 = vpack.c.b16 %v885, %v884
        %v905 = vpack.c.b16 %v887, %v886
        %v906 = vpack.c.b16 %v889, %v888
        %v907 = vpack.c.b16 %v891, %v890
        %924 = vmatprep.subr.bf16.mxu0 0
        %925 = vmatpush1.bf16.msra.mxu0 %v899
        %926 = vmatprep.subr.bf16.mxu0 0
        %927 = vmatpush1.bf16.msra.mxu0 %v898
        %928 = vmatprep.subr.bf16.mxu0 0
        %929 = vmatpush1.bf16.msra.mxu0 %v897
        %930 = vmatprep.subr.bf16.mxu0 0
        %931 = vmatpush1.bf16.msra.mxu0 %v896
        %932 = vmatprep.subr.bf16.mxu0 0
        %933 = vmatpush1.bf16.msra.mxu0 %v895
        %934 = vmatprep.subr.bf16.mxu0 0
        %935 = vmatpush1.bf16.msra.mxu0 %v894
        %936 = vmatprep.subr.bf16.mxu0 0
        %937 = vmatpush1.bf16.msra.mxu0 %v893
        %938 = vmatprep.subr.bf16.mxu0 0
        %939 = vmatpush1.bf16.msra.mxu0 %v892
        %940 = vmatprep.subr.bf16.mxu0 0
        %941 = vmatpush2.bf16.msra.mxu0 %v907
        %942 = vmatprep.subr.bf16.mxu0 0
        %943 = vmatpush2.bf16.msra.mxu0 %v906
        %944 = vmatprep.subr.bf16.mxu0 0
        %945 = vmatpush2.bf16.msra.mxu0 %v905
        %946 = vmatprep.subr.bf16.mxu0 0
        %947 = vmatpush2.bf16.msra.mxu0 %v904
        %948 = vmatprep.subr.bf16.mxu0 0
        %949 = vmatpush2.bf16.msra.mxu0 %v903
        %950 = vmatprep.subr.bf16.mxu0 0
        %951 = vmatpush2.bf16.msra.mxu0 %v902
        %952 = vmatprep.subr.bf16.mxu0 0
        %953 = vmatpush2.bf16.msra.mxu0 %v901
        %954 = vmatprep.subr.bf16.mxu0 0
        %955 = vmatpush2.bf16.msra.mxu0 %v900
        %956 = vmatprep.mubr.bf16.mxu0 %v825
        %957 = vmatmul.mubr.bf16.gmra.mxu0 %v824
        %v958 = vpop.f32.mrf.mxu0
        %v959 = vadd.f32 0.0, %v958
        %v960 = vpop.f32.mrf.mxu0
        %v961 = vpop.f32.mrf.mxu0
        %v962 = vpop.f32.mrf.mxu0
        %963 = vdwg.mxu0
        %v964 = vadd.f32 %v787, %v959
        %v965 = vld [vmem:[#allocation3] sm:$0xee]
        %v966 = vld [vmem:[#allocation3 + $0x8] sm:$0x11]
        %s967 = scalar_lea.vmem [#allocation4], 128
        %v968 = vld [vmem:[%s967] sm:$0xf]
        %v969 = vld [vmem:[%s967 + $0x4] sm:$0xf]
        %v970 = vld [vmem:[%s967 + $0x8] sm:$0xf]
        %v971 = vld [vmem:[%s967 + $0xc] sm:$0xf]
        %v972 = vld [vmem:[%s967 + $0x10] sm:$0xf]
        %v973 = vld [vmem:[%s967 + $0x14] sm:$0xf]
        %v974 = vld [vmem:[%s967 + $0x18] sm:$0xf]
        %v975 = vld [vmem:[%s967 + $0x1c] sm:$0xf]
        %v976 = vld [vmem:[%s967 + $0x20] sm:$0xf]
        %v977 = vld [vmem:[%s967 + $0x24] sm:$0xf]
        %v978 = vld [vmem:[%s967 + $0x28] sm:$0xf]
        %v979 = vld [vmem:[%s967 + $0x2c] sm:$0xf]
        %v980 = vld [vmem:[%s967 + $0x30] sm:$0xf]
        %v981 = vld [vmem:[%s967 + $0x34] sm:$0xf]
        %v982 = vld [vmem:[%s967 + $0x38] sm:$0xf]
        %v983 = vld [vmem:[%s967 + $0x3c] sm:$0xf]
        %v984 = vld [vmem:[%s967 + $0x40] sm:$0xf]
        %v985 = vld [vmem:[%s967 + $0x44] sm:$0xf]
        %v986 = vld [vmem:[%s967 + $0x48] sm:$0xf]
        %v987 = vld [vmem:[%s967 + $0x4c] sm:$0xf]
        %v988 = vld [vmem:[%s967 + $0x50] sm:$0xf]
        %v989 = vld [vmem:[%s967 + $0x54] sm:$0xf]
        %v990 = vld [vmem:[%s967 + $0x58] sm:$0xf]
        %v991 = vld [vmem:[%s967 + $0x5c] sm:$0xf]
        %v992 = vld [vmem:[%s967 + $0x60] sm:$0xf]
        %v993 = vld [vmem:[%s967 + $0x64] sm:$0xf]
        %v994 = vld [vmem:[%s967 + $0x68] sm:$0xf]
        %v995 = vld [vmem:[%s967 + $0x6c] sm:$0xf]
        %v996 = vld [vmem:[%s967 + $0x70] sm:$0xf]
        %v997 = vld [vmem:[%s967 + $0x74] sm:$0xf]
        %v998 = vld [vmem:[%s967 + $0x78] sm:$0xf]
        %v999 = vld [vmem:[%s967 + $0x7c] sm:$0xf]
        %v1002 = vunpack.c.l.b16 %v965
        %v1003 = vunpack.c.h.b16 %v965
        %v1004 = vunpack.c.l.b16 %v966
        %v1005 = vunpack.c.h.b16 %v966
        %v1006 = vpack.c.b16 %v1004, %v1002
        %v1007 = vpack.c.b16 %v1005, %v1003
        %v1008 = vrot.slane %v1006, 1
        %v1009 = vrot.slane %v1007, 1
        %v1044 = vunpack.c.l.b16 %v968
        %v1045 = vunpack.c.l.b16 %v969
        %v1046 = vunpack.c.l.b16 %v970
        %v1047 = vunpack.c.l.b16 %v971
        %v1048 = vunpack.c.l.b16 %v972
        %v1049 = vunpack.c.l.b16 %v973
        %v1050 = vunpack.c.l.b16 %v974
        %v1051 = vunpack.c.l.b16 %v975
        %v1052 = vunpack.c.l.b16 %v976
        %v1053 = vunpack.c.l.b16 %v977
        %v1054 = vunpack.c.l.b16 %v978
        %v1055 = vunpack.c.l.b16 %v979
        %v1056 = vunpack.c.l.b16 %v980
        %v1057 = vunpack.c.l.b16 %v981
        %v1058 = vunpack.c.l.b16 %v982
        %v1059 = vunpack.c.l.b16 %v983
        %v1060 = vunpack.c.l.b16 %v984
        %v1061 = vunpack.c.l.b16 %v985
        %v1062 = vunpack.c.l.b16 %v986
        %v1063 = vunpack.c.l.b16 %v987
        %v1064 = vunpack.c.l.b16 %v988
        %v1065 = vunpack.c.l.b16 %v989
        %v1066 = vunpack.c.l.b16 %v990
        %v1067 = vunpack.c.l.b16 %v991
        %v1068 = vunpack.c.l.b16 %v992
        %v1069 = vunpack.c.l.b16 %v993
        %v1070 = vunpack.c.l.b16 %v994
        %v1071 = vunpack.c.l.b16 %v995
        %v1072 = vunpack.c.l.b16 %v996
        %v1073 = vunpack.c.l.b16 %v997
        %v1074 = vunpack.c.l.b16 %v998
        %v1075 = vunpack.c.l.b16 %v999
        %v1076 = vpack.c.b16 %v1045, %v1044
        %v1077 = vpack.c.b16 %v1047, %v1046
        %v1078 = vpack.c.b16 %v1049, %v1048
        %v1079 = vpack.c.b16 %v1051, %v1050
        %v1080 = vpack.c.b16 %v1053, %v1052
        %v1081 = vpack.c.b16 %v1055, %v1054
        %v1082 = vpack.c.b16 %v1057, %v1056
        %v1083 = vpack.c.b16 %v1059, %v1058
        %v1084 = vpack.c.b16 %v1061, %v1060
        %v1085 = vpack.c.b16 %v1063, %v1062
        %v1086 = vpack.c.b16 %v1065, %v1064
        %v1087 = vpack.c.b16 %v1067, %v1066
        %v1088 = vpack.c.b16 %v1069, %v1068
        %v1089 = vpack.c.b16 %v1071, %v1070
        %v1090 = vpack.c.b16 %v1073, %v1072
        %v1091 = vpack.c.b16 %v1075, %v1074
        %1108 = vmatprep.subr.bf16.mxu0 0
        %1109 = vmatpush1.bf16.msra.mxu0 %v1083
        %1110 = vmatprep.subr.bf16.mxu0 0
        %1111 = vmatpush1.bf16.msra.mxu0 %v1082
        %1112 = vmatprep.subr.bf16.mxu0 0
        %1113 = vmatpush1.bf16.msra.mxu0 %v1081
        %1114 = vmatprep.subr.bf16.mxu0 0
        %1115 = vmatpush1.bf16.msra.mxu0 %v1080
        %1116 = vmatprep.subr.bf16.mxu0 0
        %1117 = vmatpush1.bf16.msra.mxu0 %v1079
        %1118 = vmatprep.subr.bf16.mxu0 0
        %1119 = vmatpush1.bf16.msra.mxu0 %v1078
        %1120 = vmatprep.subr.bf16.mxu0 0
        %1121 = vmatpush1.bf16.msra.mxu0 %v1077
        %1122 = vmatprep.subr.bf16.mxu0 0
        %1123 = vmatpush1.bf16.msra.mxu0 %v1076
        %1124 = vmatprep.subr.bf16.mxu0 0
        %1125 = vmatpush2.bf16.msra.mxu0 %v1091
        %1126 = vmatprep.subr.bf16.mxu0 0
        %1127 = vmatpush2.bf16.msra.mxu0 %v1090
        %1128 = vmatprep.subr.bf16.mxu0 0
        %1129 = vmatpush2.bf16.msra.mxu0 %v1089
        %1130 = vmatprep.subr.bf16.mxu0 0
        %1131 = vmatpush2.bf16.msra.mxu0 %v1088
        %1132 = vmatprep.subr.bf16.mxu0 0
        %1133 = vmatpush2.bf16.msra.mxu0 %v1087
        %1134 = vmatprep.subr.bf16.mxu0 0
        %1135 = vmatpush2.bf16.msra.mxu0 %v1086
        %1136 = vmatprep.subr.bf16.mxu0 0
        %1137 = vmatpush2.bf16.msra.mxu0 %v1085
        %1138 = vmatprep.subr.bf16.mxu0 0
        %1139 = vmatpush2.bf16.msra.mxu0 %v1084
        %1140 = vmatprep.mubr.bf16.mxu0 %v1009
        %1141 = vmatmul.mubr.bf16.gmra.mxu0 %v1008
        %v1142 = vpop.f32.mrf.mxu0
        %v1143 = vadd.f32 0.0, %v1142
        %v1144 = vpop.f32.mrf.mxu0
        %v1145 = vpop.f32.mrf.mxu0
        %v1146 = vpop.f32.mrf.mxu0
        %1147 = vdwg.mxu0
        %v1148 = vadd.f32 %v964, %v1143
        %v1149 = vld [vmem:[#allocation3] sm:$0xcc]
        %v1150 = vld [vmem:[#allocation3 + $0x8] sm:$0x33]
        %s1151 = scalar_lea.vmem [#allocation4], 256
        %v1152 = vld [vmem:[%s1151] sm:$0xf]
        %v1153 = vld [vmem:[%s1151 + $0x4] sm:$0xf]
        %v1154 = vld [vmem:[%s1151 + $0x8] sm:$0xf]
        %v1155 = vld [vmem:[%s1151 + $0xc] sm:$0xf]
        %v1156 = vld [vmem:[%s1151 + $0x10] sm:$0xf]
        %v1157 = vld [vmem:[%s1151 + $0x14] sm:$0xf]
        %v1158 = vld [vmem:[%s1151 + $0x18] sm:$0xf]
        %v1159 = vld [vmem:[%s1151 + $0x1c] sm:$0xf]
        %v1160 = vld [vmem:[%s1151 + $0x20] sm:$0xf]
        %v1161 = vld [vmem:[%s1151 + $0x24] sm:$0xf]
        %v1162 = vld [vmem:[%s1151 + $0x28] sm:$0xf]
        %v1163 = vld [vmem:[%s1151 + $0x2c] sm:$0xf]
        %v1164 = vld [vmem:[%s1151 + $0x30] sm:$0xf]
        %v1165 = vld [vmem:[%s1151 + $0x34] sm:$0xf]
        %v1166 = vld [vmem:[%s1151 + $0x38] sm:$0xf]
        %v1167 = vld [vmem:[%s1151 + $0x3c] sm:$0xf]
        %v1168 = vld [vmem:[%s1151 + $0x40] sm:$0xf]
        %v1169 = vld [vmem:[%s1151 + $0x44] sm:$0xf]
        %v1170 = vld [vmem:[%s1151 + $0x48] sm:$0xf]
        %v1171 = vld [vmem:[%s1151 + $0x4c] sm:$0xf]
        %v1172 = vld [vmem:[%s1151 + $0x50] sm:$0xf]
        %v1173 = vld [vmem:[%s1151 + $0x54] sm:$0xf]
        %v1174 = vld [vmem:[%s1151 + $0x58] sm:$0xf]
        %v1175 = vld [vmem:[%s1151 + $0x5c] sm:$0xf]
        %v1176 = vld [vmem:[%s1151 + $0x60] sm:$0xf]
        %v1177 = vld [vmem:[%s1151 + $0x64] sm:$0xf]
        %v1178 = vld [vmem:[%s1151 + $0x68] sm:$0xf]
        %v1179 = vld [vmem:[%s1151 + $0x6c] sm:$0xf]
        %v1180 = vld [vmem:[%s1151 + $0x70] sm:$0xf]
        %v1181 = vld [vmem:[%s1151 + $0x74] sm:$0xf]
        %v1182 = vld [vmem:[%s1151 + $0x78] sm:$0xf]
        %v1183 = vld [vmem:[%s1151 + $0x7c] sm:$0xf]
        %v1186 = vunpack.c.l.b16 %v1149
        %v1187 = vunpack.c.h.b16 %v1149
        %v1188 = vunpack.c.l.b16 %v1150
        %v1189 = vunpack.c.h.b16 %v1150
        %v1190 = vpack.c.b16 %v1188, %v1186
        %v1191 = vpack.c.b16 %v1189, %v1187
        %v1192 = vrot.slane %v1190, 2
        %v1193 = vrot.slane %v1191, 2
        %v1228 = vunpack.c.l.b16 %v1152
        %v1229 = vunpack.c.l.b16 %v1153
        %v1230 = vunpack.c.l.b16 %v1154
        %v1231 = vunpack.c.l.b16 %v1155
        %v1232 = vunpack.c.l.b16 %v1156
        %v1233 = vunpack.c.l.b16 %v1157
        %v1234 = vunpack.c.l.b16 %v1158
        %v1235 = vunpack.c.l.b16 %v1159
        %v1236 = vunpack.c.l.b16 %v1160
        %v1237 = vunpack.c.l.b16 %v1161
        %v1238 = vunpack.c.l.b16 %v1162
        %v1239 = vunpack.c.l.b16 %v1163
        %v1240 = vunpack.c.l.b16 %v1164
        %v1241 = vunpack.c.l.b16 %v1165
        %v1242 = vunpack.c.l.b16 %v1166
        %v1243 = vunpack.c.l.b16 %v1167
        %v1244 = vunpack.c.l.b16 %v1168
        %v1245 = vunpack.c.l.b16 %v1169
        %v1246 = vunpack.c.l.b16 %v1170
        %v1247 = vunpack.c.l.b16 %v1171
        %v1248 = vunpack.c.l.b16 %v1172
        %v1249 = vunpack.c.l.b16 %v1173
        %v1250 = vunpack.c.l.b16 %v1174
        %v1251 = vunpack.c.l.b16 %v1175
        %v1252 = vunpack.c.l.b16 %v1176
        %v1253 = vunpack.c.l.b16 %v1177
        %v1254 = vunpack.c.l.b16 %v1178
        %v1255 = vunpack.c.l.b16 %v1179
        %v1256 = vunpack.c.l.b16 %v1180
        %v1257 = vunpack.c.l.b16 %v1181
        %v1258 = vunpack.c.l.b16 %v1182
        %v1259 = vunpack.c.l.b16 %v1183
        %v1260 = vpack.c.b16 %v1229, %v1228
        %v1261 = vpack.c.b16 %v1231, %v1230
        %v1262 = vpack.c.b16 %v1233, %v1232
        %v1263 = vpack.c.b16 %v1235, %v1234
        %v1264 = vpack.c.b16 %v1237, %v1236
        %v1265 = vpack.c.b16 %v1239, %v1238
        %v1266 = vpack.c.b16 %v1241, %v1240
        %v1267 = vpack.c.b16 %v1243, %v1242
        %v1268 = vpack.c.b16 %v1245, %v1244
        %v1269 = vpack.c.b16 %v1247, %v1246
        %v1270 = vpack.c.b16 %v1249, %v1248
        %v1271 = vpack.c.b16 %v1251, %v1250
        %v1272 = vpack.c.b16 %v1253, %v1252
        %v1273 = vpack.c.b16 %v1255, %v1254
        %v1274 = vpack.c.b16 %v1257, %v1256
        %v1275 = vpack.c.b16 %v1259, %v1258
        %1292 = vmatprep.subr.bf16.mxu0 0
        %1293 = vmatpush1.bf16.msra.mxu0 %v1267
        %1294 = vmatprep.subr.bf16.mxu0 0
        %1295 = vmatpush1.bf16.msra.mxu0 %v1266
        %1296 = vmatprep.subr.bf16.mxu0 0
        %1297 = vmatpush1.bf16.msra.mxu0 %v1265
        %1298 = vmatprep.subr.bf16.mxu0 0
        %1299 = vmatpush1.bf16.msra.mxu0 %v1264
        %1300 = vmatprep.subr.bf16.mxu0 0
        %1301 = vmatpush1.bf16.msra.mxu0 %v1263
        %1302 = vmatprep.subr.bf16.mxu0 0
        %1303 = vmatpush1.bf16.msra.mxu0 %v1262
        %1304 = vmatprep.subr.bf16.mxu0 0
        %1305 = vmatpush1.bf16.msra.mxu0 %v1261
        %1306 = vmatprep.subr.bf16.mxu0 0
        %1307 = vmatpush1.bf16.msra.mxu0 %v1260
        %1308 = vmatprep.subr.bf16.mxu0 0
        %1309 = vmatpush2.bf16.msra.mxu0 %v1275
        %1310 = vmatprep.subr.bf16.mxu0 0
        %1311 = vmatpush2.bf16.msra.mxu0 %v1274
        %1312 = vmatprep.subr.bf16.mxu0 0
        %1313 = vmatpush2.bf16.msra.mxu0 %v1273
        %1314 = vmatprep.subr.bf16.mxu0 0
        %1315 = vmatpush2.bf16.msra.mxu0 %v1272
        %1316 = vmatprep.subr.bf16.mxu0 0
        %1317 = vmatpush2.bf16.msra.mxu0 %v1271
        %1318 = vmatprep.subr.bf16.mxu0 0
        %1319 = vmatpush2.bf16.msra.mxu0 %v1270
        %1320 = vmatprep.subr.bf16.mxu0 0
        %1321 = vmatpush2.bf16.msra.mxu0 %v1269
        %1322 = vmatprep.subr.bf16.mxu0 0
        %1323 = vmatpush2.bf16.msra.mxu0 %v1268
        %1324 = vmatprep.mubr.bf16.mxu0 %v1193
        %1325 = vmatmul.mubr.bf16.gmra.mxu0 %v1192
        %v1326 = vpop.f32.mrf.mxu0
        %v1327 = vadd.f32 0.0, %v1326
        %v1328 = vpop.f32.mrf.mxu0
        %v1329 = vpop.f32.mrf.mxu0
        %v1330 = vpop.f32.mrf.mxu0
        %1331 = vdwg.mxu0
        %v1332 = vadd.f32 %v1148, %v1327
        %v1333 = vadd.f32 %v290, %v1332
        %1334 = vadd.xlane.f32.xlu0 %v1333
        %v1335 = vpop.xlane.xlu0 %1334
        %v1336 = vrcp.pop 128.0
        %v1337 = vmul.f32 %v1335, %v1336
        %v1338 = vsub.f32 %v1333, %v1337
        %v1339 = vmul.f32 %v1338, %v1338
        %1340 = vadd.xlane.f32.xlu0 %v1339
        %v1341 = vpop.xlane.xlu0 %1340
        %v1342 = vmul.f32 %v1341, %v1336
        %v1343 = vadd.f32 %v1342, 1e-05
        %v1344 = vrsqrt.pop %v1343
        %v1345 = vmul.f32 %v1338, %v1344
        %v1346 = vld [vmem:[%s5] sm:$0x1]
        %v1348 = vlaneseq
        %v1349 = vshrl.u32 %v1348, 7
        %v1350 = vsub.s32 0, %v1349
        %v1351 = vrot.slane %v1346, %v1350
        %v1353 = vmul.f32 %v1345, %v1351
        %v1354 = vld [vmem:[%s6] sm:$0x1]
        %v1356 = vlaneseq
        %v1357 = vshrl.u32 %v1356, 7
        %v1358 = vsub.s32 0, %v1357
        %v1359 = vrot.slane %v1354, %v1358
        %v1361 = vadd.f32 %v1353, %v1359
        %1362 = vst [vmem:[%s284] sm:$0xff] %v1361
        %s1363 = sand.u32 %s182, 1
        %s1364 = scalar_lea.sflag [#allocation6], %s1363
        %s1365 = sand.u32 %s182, 1
        %s1366 = smul.addr %s1365, 8
        %s1367 = scalar_lea.vmem [#allocation7], %s1366
        // Predicated region
        $region53: #{decoder_layer.5} parent=47 // pred_check
          %p1368 = pneg %p192
        $region54: #{decoder_layer.5} parent=47 // pred_check_branch
          %1370 = sbr.rel (%p1368) target = $region56
        $region55: #{decoder_layer.5} parent=47 // pred_region
          %s1372 = ssub.s32 128, 128
          %1373 = vsyncadd %s1364, %s1372
          %s1374 = smul.addr %s22, 128
          %s1375 = scalar_lea.hbm %s7, %s1374
          %s1377 = sshll.u32 %s1367, 4
          %s1378 = int_to_ptr.vmem [resolvable:$true] %s1377
          %1380 = dma.vmem_to_hbm [thread:$0]  %s1378, 128, %s1375, %s1364
        $region56: #{decoder_layer.5} parent=47 // pred_fallthru
          _
      $region48: #{decoder_layer.5} parent=5 // pred_fallthru
        _
      %p1381 = scmp.le.s32.totalorder 2, %s17
      // Predicated region
      $region57: #{decoder_layer.5} parent=5 // pred_check
        %p1382 = pneg %p1381
      $region58: #{decoder_layer.5} parent=5 // pred_check_branch
        %1384 = sbr.rel (%p1382) target = $region60
      $region59: #{decoder_layer.5} parent=5 // pred_region
        %s1385 = ssub.s32 %s17, 2
        // Predicated region
        $region61: #{decoder_layer.5} parent=59 // pred_check
          %p1386 = pneg %p198
        $region62: #{decoder_layer.5} parent=59 // pred_check_branch
          %1388 = sbr.rel (%p1386) target = $region64
        $region63: #{decoder_layer.5} parent=59 // pred_region
          %s1389 = sand.u32 %s183, 1
          %s1390 = scalar_lea.sflag [#allocation6], %s1389
          %s1391 = sand.u32 %s183, 1
          %s1392 = smul.addr %s1391, 8
          %s1393 = scalar_lea.vmem [#allocation7], %s1392
          %1394 = dma.done %s1390, 128
        $region64: #{decoder_layer.5} parent=59 // pred_fallthru
          _
      $region60: #{decoder_layer.5} parent=5 // pred_fallthru
        _
    $region6: #{decoder_layer.5} parent=1 // loop_footer
      %s21 = sadd.s32 1, %s17
    $region7: #{decoder_layer.5} parent=1 // loop_footer_branch
      %16 = sbr.rel target = $region3
    $region8: #{decoder_layer.5} parent=1 // loop_exit
      _
    %1395 = vsyncpa [#allocation5], 1
    %s1396 = scalar_lea.sflag [#allocation5], 1
    %1397 = vsyncpa %s1396, 1
    %1398 = vsyncpa [#allocation6], 1
    %s1399 = scalar_lea.sflag [#allocation6], 1
    %1400 = vsyncpa %s1399, 1

// kernel: decoder_layer.4
$region0: #{decoder_layer.4}
  #allocation0 [shape = 'u32[]', space=smem, size = 0x4, offset = 0x4, fixed_abs, tag = 'smem constant byte address 0x4 - core index']
  #allocation1 [shape = 'u32[144,128]{1,0:T(1,128)}', space=vmem, size = 0x12000, scoped, tag = 'internal scratch']
  #allocation2 [shape = 'f32[8,128]{1,0:T(8,128)}', space=vmem, size = 0x1000, scoped, tag = 'scratch operand']
  %s0 = inlined_call_operand.vmem [shape: f32[2,8,128], index: 0, kind: input, shape index: {}]
  %s1 = inlined_call_operand.hbm [shape: f32[2,16,128], index: 1, kind: input, shape index: {}]
  %s2 = inlined_call_operand.hbm [shape: bf16[128,128], index: 2, kind: input, shape index: {}]
  %s3 = inlined_call_operand.hbm [shape: f32[1,128], index: 3, kind: input, shape index: {}]
  %s4 = inlined_call_operand.hbm [shape: bf16[128,256], index: 4, kind: input, shape index: {}]
  %s5 = inlined_call_operand.hbm [shape: f32[1,256], index: 5, kind: input, shape index: {}]
  %s6 = inlined_call_operand.hbm [shape: bf16[128,128], index: 6, kind: input, shape index: {}]
  %s7 = inlined_call_operand.hbm [shape: f32[1,128], index: 7, kind: input, shape index: {}]
  %s8 = inlined_call_operand.hbm [shape: f32[1,128], index: 8, kind: input, shape index: {}]
  %s9 = inlined_call_operand.hbm [shape: f32[1,128], index: 9, kind: input, shape index: {}]
  %s10 = inlined_call_operand.vmem [shape: f32[2,8,128], index: 10, kind: output, shape index: {0}]
  %s11 = inlined_call_operand.hbm [shape: f32[2,8,16], index: 11, kind: output, shape index: {1}]
  %12 = xla_tuple %s10, %s11
  %s13 = sld [smem:[#allocation0]]
  $region117: #{decoder_layer.4} parent=0
    _
  %s15 = ssub.s32 1, %s13
  %s16 = scalar_select 0, %s15, %s13
  $region1: #{decoder_layer.4} parent=0
    #allocation3 [shape = 'u8[16384]{0}', space=vmem, size = 0x4000, scoped, tag = 'input window, operand 1']
    #allocation4 [shape = 's32[2]{0}', space=sflag, size = 0x8, scoped, tag = 'scoped memory for decoder_layer.4']
    #allocation5 [shape = 's32[2]{0}', space=sflag, size = 0x8, scoped, tag = 'scoped memory for decoder_layer.4']
    #allocation6 [shape = 'u8[32768]{0}', space=vmem, size = 0x8000, scoped, tag = 'input window, operand 2, single buffered']
    #allocation7 [shape = 's32[1]{0}', space=sflag, size = 0x4, scoped, tag = 'scoped memory for decoder_layer.4']
    #allocation8 [shape = 'u8[512]{0}', space=vmem, size = 0x400, scoped, tag = 'input window, operand 3, single buffered']
    #allocation9 [shape = 'u8[65536]{0}', space=vmem, size = 0x10000, scoped, tag = 'input window, operand 4, single buffered']
    #allocation10 [shape = 's32[1]{0}', space=sflag, size = 0x4, scoped, tag = 'scoped memory for decoder_layer.4']
    #allocation11 [shape = 'u8[1024]{0}', space=vmem, size = 0x400, scoped, tag = 'input window, operand 5, single buffered']
    #allocation12 [shape = 'u8[32768]{0}', space=vmem, size = 0x8000, scoped, tag = 'input window, operand 6, single buffered']
    #allocation13 [shape = 's32[1]{0}', space=sflag, size = 0x4, scoped, tag = 'scoped memory for decoder_layer.4']
    #allocation14 [shape = 'u8[512]{0}', space=vmem, size = 0x400, scoped, tag = 'input window, operand 7, single buffered']
    #allocation15 [shape = 'u8[512]{0}', space=vmem, size = 0x400, scoped, tag = 'input window, operand 8, single buffered']
    #allocation16 [shape = 's32[1]{0}', space=sflag, size = 0x4, scoped, tag = 'scoped memory for decoder_layer.4']
    #allocation17 [shape = 'u8[512]{0}', space=vmem, size = 0x400, scoped, tag = 'input window, operand 9, single buffered']
    #allocation18 [shape = 'u8[8192]{0}', space=vmem, size = 0x2000, scoped, tag = 'output window, operand 1']
    %17 = vsyncpa [#allocation4], 0
    %s18 = scalar_lea.sflag [#allocation4], 1
    %19 = vsyncpa %s18, 0
    %20 = vsyncpa [#allocation7], 0
    %21 = vsyncpa [#allocation10], 0
    %22 = vsyncpa [#allocation13], 0
    %23 = vsyncpa [#allocation16], 0
    %24 = vsyncpa [#allocation5], 0
    %s25 = scalar_lea.sflag [#allocation5], 1
    %26 = vsyncpa %s25, 0
    loop: start=0, step=1, limit=4
    $region2: #{decoder_layer.4} parent=1 // loop_pre_header
      _
    $region3: #{decoder_layer.4} parent=1 // loop_header
      %s28 = sphi 0, %s32
      %p29 = scmp.ge.s32.totalorder %s28, 4
      %s38 = sphi 0, %s40
      %s41 = sphi 0, %s38
      %s42 = sphi 0, %s41
      %s58 = sphi 0, %s42
      %s64 = sphi 0, %s66
      %s67 = sphi 0, %s64
      %s68 = sphi 0, %s67
      %s84 = sphi 0, %s68
      %s88 = sphi 0, %s88
      %s90 = sphi 0, %s88
      %s91 = sphi 0, %s90
      %s105 = sphi 0, %s91
      %s109 = sphi 0, %s109
      %s111 = sphi 0, %s109
      %s112 = sphi 0, %s111
      %s126 = sphi 0, %s112
      %s130 = sphi 0, %s130
      %s132 = sphi 0, %s130
      %s133 = sphi 0, %s132
      %s147 = sphi 0, %s133
      %s151 = sphi 0, %s151
      %s153 = sphi 0, %s151
      %s154 = sphi 0, %s153
      %s168 = sphi 0, %s154
      %s172 = sphi 0, %s172
      %s174 = sphi 0, %s172
      %s175 = sphi 0, %s174
      %s189 = sphi 0, %s175
      %s193 = sphi 0, %s193
      %s195 = sphi 0, %s193
      %s196 = sphi 0, %s195
      %s210 = sphi 0, %s196
      %s214 = sphi 0, %s214
      %s216 = sphi 0, %s214
      %s217 = sphi 0, %s216
      %s231 = sphi 0, %s217
      %s235 = sphi 0, %s235
      %s237 = sphi 0, %s235
      %s238 = sphi 0, %s237
      %s252 = sphi 0, %s238
      %s258 = sphi 0, %s260
      %s261 = sphi 0, %s258
      %s262 = sphi 0, %s261
      %s278 = sphi 0, %s262
      %s284 = sphi 0, %s286
      %s287 = sphi 0, %s284
      %s288 = sphi 0, %s287
      %s304 = sphi 0, %s288
    $region4: #{decoder_layer.4} parent=1 // loop_header_branch
      %31 = sbr.rel (%p29) target = $region8
    $region5: #{decoder_layer.4} parent=1 // loop_body
      %s33 = ssub.s32 %s28, 1
      %s34 = ssub.s32 %s28, 2
      %s35 = sadd.s32 %s28, 1
      %s36 = ssub.s32 %s28, %s35
      %p37 = scmp.eq.s32.totalorder %s36, 0
      %s39 = sadd.s32 %s38, 1
      %s40 = scalar_select %p37, %s38, %s39
      %p43 = pneg %p37
      %p44 = scmp.eq.s32.totalorder %s28, 1
      %p45 = por %p43, %p44
      %p46 = scmp.ne.s32.totalorder %s38, %s41
      %p47 = scmp.eq.s32.totalorder %s28, 0
      %p48 = por %p46, %p47
      %p49 = scmp.ne.s32.totalorder %s38, %s41
      %p50 = scmp.eq.s32.totalorder %s33, 1
      %p51 = por %p49, %p50
      %p52 = scmp.ne.s32.totalorder %s41, %s42
      %p53 = scmp.eq.s32.totalorder %s33, 0
      %p54 = por %p52, %p53
      %p55 = scmp.ne.s32.totalorder %s41, %s42
      %p56 = scmp.eq.s32.totalorder %s34, 1
      %p57 = por %p55, %p56
      %p59 = scmp.ne.s32.totalorder %s42, %s58
      %p60 = scmp.eq.s32.totalorder %s34, 0
      %p61 = por %p59, %p60
      %s62 = ssub.s32 %s28, %s35
      %p63 = scmp.eq.s32.totalorder %s62, 0
      %s65 = sadd.s32 %s64, 1
      %s66 = scalar_select %p63, %s64, %s65
      %p69 = pneg %p63
      %p70 = scmp.eq.s32.totalorder %s28, 1
      %p71 = por %p69, %p70
      %p72 = scmp.ne.s32.totalorder %s64, %s67
      %p73 = scmp.eq.s32.totalorder %s28, 0
      %p74 = por %p72, %p73
      %p75 = scmp.ne.s32.totalorder %s64, %s67
      %p76 = scmp.eq.s32.totalorder %s33, 1
      %p77 = por %p75, %p76
      %p78 = scmp.ne.s32.totalorder %s67, %s68
      %p79 = scmp.eq.s32.totalorder %s33, 0
      %p80 = por %p78, %p79
      %p81 = scmp.ne.s32.totalorder %s67, %s68
      %p82 = scmp.eq.s32.totalorder %s34, 1
      %p83 = por %p81, %p82
      %p85 = scmp.ne.s32.totalorder %s68, %s84
      %p86 = scmp.eq.s32.totalorder %s34, 0
      %p87 = por %p85, %p86
      %s89 = sadd.s32 %s88, 1
      %p92 = scmp.eq.s32.totalorder %s28, 1
      %p93 = scmp.ne.s32.totalorder %s88, %s90
      %p94 = scmp.eq.s32.totalorder %s28, 0
      %p95 = por %p93, %p94
      %p96 = scmp.ne.s32.totalorder %s88, %s90
      %p97 = scmp.eq.s32.totalorder %s33, 1
      %p98 = por %p96, %p97
      %p99 = scmp.ne.s32.totalorder %s90, %s91
      %p100 = scmp.eq.s32.totalorder %s33, 0
      %p101 = por %p99, %p100
      %p102 = scmp.ne.s32.totalorder %s90, %s91
      %p103 = scmp.eq.s32.totalorder %s34, 1
      %p104 = por %p102, %p103
      %p106 = scmp.ne.s32.totalorder %s91, %s105
      %p107 = scmp.eq.s32.totalorder %s34, 0
      %p108 = por %p106, %p107
      %s110 = sadd.s32 %s109, 1
      %p113 = scmp.eq.s32.totalorder %s28, 1
      %p114 = scmp.ne.s32.totalorder %s109, %s111
      %p115 = scmp.eq.s32.totalorder %s28, 0
      %p116 = por %p114, %p115
      %p117 = scmp.ne.s32.totalorder %s109, %s111
      %p118 = scmp.eq.s32.totalorder %s33, 1
      %p119 = por %p117, %p118
      %p120 = scmp.ne.s32.totalorder %s111, %s112
      %p121 = scmp.eq.s32.totalorder %s33, 0
      %p122 = por %p120, %p121
      %p123 = scmp.ne.s32.totalorder %s111, %s112
      %p124 = scmp.eq.s32.totalorder %s34, 1
      %p125 = por %p123, %p124
      %p127 = scmp.ne.s32.totalorder %s112, %s126
      %p128 = scmp.eq.s32.totalorder %s34, 0
      %p129 = por %p127, %p128
      %s131 = sadd.s32 %s130, 1
      %p134 = scmp.eq.s32.totalorder %s28, 1
      %p135 = scmp.ne.s32.totalorder %s130, %s132
      %p136 = scmp.eq.s32.totalorder %s28, 0
      %p137 = por %p135, %p136
      %p138 = scmp.ne.s32.totalorder %s130, %s132
      %p139 = scmp.eq.s32.totalorder %s33, 1
      %p140 = por %p138, %p139
      %p141 = scmp.ne.s32.totalorder %s132, %s133
      %p142 = scmp.eq.s32.totalorder %s33, 0
      %p143 = por %p141, %p142
      %p144 = scmp.ne.s32.totalorder %s132, %s133
      %p145 = scmp.eq.s32.totalorder %s34, 1
      %p146 = por %p144, %p145
      %p148 = scmp.ne.s32.totalorder %s133, %s147
      %p149 = scmp.eq.s32.totalorder %s34, 0
      %p150 = por %p148, %p149
      %s152 = sadd.s32 %s151, 1
      %p155 = scmp.eq.s32.totalorder %s28, 1
      %p156 = scmp.ne.s32.totalorder %s151, %s153
      %p157 = scmp.eq.s32.totalorder %s28, 0
      %p158 = por %p156, %p157
      %p159 = scmp.ne.s32.totalorder %s151, %s153
      %p160 = scmp.eq.s32.totalorder %s33, 1
      %p161 = por %p159, %p160
      %p162 = scmp.ne.s32.totalorder %s153, %s154
      %p163 = scmp.eq.s32.totalorder %s33, 0
      %p164 = por %p162, %p163
      %p165 = scmp.ne.s32.totalorder %s153, %s154
      %p166 = scmp.eq.s32.totalorder %s34, 1
      %p167 = por %p165, %p166
      %p169 = scmp.ne.s32.totalorder %s154, %s168
      %p170 = scmp.eq.s32.totalorder %s34, 0
      %p171 = por %p169, %p170
      %s173 = sadd.s32 %s172, 1
      %p176 = scmp.eq.s32.totalorder %s28, 1
      %p177 = scmp.ne.s32.totalorder %s172, %s174
      %p178 = scmp.eq.s32.totalorder %s28, 0
      %p179 = por %p177, %p178
      %p180 = scmp.ne.s32.totalorder %s172, %s174
      %p181 = scmp.eq.s32.totalorder %s33, 1
      %p182 = por %p180, %p181
      %p183 = scmp.ne.s32.totalorder %s174, %s175
      %p184 = scmp.eq.s32.totalorder %s33, 0
      %p185 = por %p183, %p184
      %p186 = scmp.ne.s32.totalorder %s174, %s175
      %p187 = scmp.eq.s32.totalorder %s34, 1
      %p188 = por %p186, %p187
      %p190 = scmp.ne.s32.totalorder %s175, %s189
      %p191 = scmp.eq.s32.totalorder %s34, 0
      %p192 = por %p190, %p191
      %s194 = sadd.s32 %s193, 1
      %p197 = scmp.eq.s32.totalorder %s28, 1
      %p198 = scmp.ne.s32.totalorder %s193, %s195
      %p199 = scmp.eq.s32.totalorder %s28, 0
      %p200 = por %p198, %p199
      %p201 = scmp.ne.s32.totalorder %s193, %s195
      %p202 = scmp.eq.s32.totalorder %s33, 1
      %p203 = por %p201, %p202
      %p204 = scmp.ne.s32.totalorder %s195, %s196
      %p205 = scmp.eq.s32.totalorder %s33, 0
      %p206 = por %p204, %p205
      %p207 = scmp.ne.s32.totalorder %s195, %s196
      %p208 = scmp.eq.s32.totalorder %s34, 1
      %p209 = por %p207, %p208
      %p211 = scmp.ne.s32.totalorder %s196, %s210
      %p212 = scmp.eq.s32.totalorder %s34, 0
      %p213 = por %p211, %p212
      %s215 = sadd.s32 %s214, 1
      %p218 = scmp.eq.s32.totalorder %s28, 1
      %p219 = scmp.ne.s32.totalorder %s214, %s216
      %p220 = scmp.eq.s32.totalorder %s28, 0
      %p221 = por %p219, %p220
      %p222 = scmp.ne.s32.totalorder %s214, %s216
      %p223 = scmp.eq.s32.totalorder %s33, 1
      %p224 = por %p222, %p223
      %p225 = scmp.ne.s32.totalorder %s216, %s217
      %p226 = scmp.eq.s32.totalorder %s33, 0
      %p227 = por %p225, %p226
      %p228 = scmp.ne.s32.totalorder %s216, %s217
      %p229 = scmp.eq.s32.totalorder %s34, 1
      %p230 = por %p228, %p229
      %p232 = scmp.ne.s32.totalorder %s217, %s231
      %p233 = scmp.eq.s32.totalorder %s34, 0
      %p234 = por %p232, %p233
      %s236 = sadd.s32 %s235, 1
      %p239 = scmp.eq.s32.totalorder %s28, 1
      %p240 = scmp.ne.s32.totalorder %s235, %s237
      %p241 = scmp.eq.s32.totalorder %s28, 0
      %p242 = por %p240, %p241
      %p243 = scmp.ne.s32.totalorder %s235, %s237
      %p244 = scmp.eq.s32.totalorder %s33, 1
      %p245 = por %p243, %p244
      %p246 = scmp.ne.s32.totalorder %s237, %s238
      %p247 = scmp.eq.s32.totalorder %s33, 0
      %p248 = por %p246, %p247
      %p249 = scmp.ne.s32.totalorder %s237, %s238
      %p250 = scmp.eq.s32.totalorder %s34, 1
      %p251 = por %p249, %p250
      %p253 = scmp.ne.s32.totalorder %s238, %s252
      %p254 = scmp.eq.s32.totalorder %s34, 0
      %p255 = por %p253, %p254
      %s256 = ssub.s32 %s28, %s35
      %p257 = scmp.eq.s32.totalorder %s256, 0
      %s259 = sadd.s32 %s258, 1
      %s260 = scalar_select %p257, %s258, %s259
      %p263 = pneg %p257
      %p264 = scmp.eq.s32.totalorder %s28, 1
      %p265 = por %p263, %p264
      %p266 = scmp.ne.s32.totalorder %s258, %s261
      %p267 = scmp.eq.s32.totalorder %s28, 0
      %p268 = por %p266, %p267
      %p269 = scmp.ne.s32.totalorder %s258, %s261
      %p270 = scmp.eq.s32.totalorder %s33, 1
      %p271 = por %p269, %p270
      %p272 = scmp.ne.s32.totalorder %s261, %s262
      %p273 = scmp.eq.s32.totalorder %s33, 0
      %p274 = por %p272, %p273
      %p275 = scmp.ne.s32.totalorder %s261, %s262
      %p276 = scmp.eq.s32.totalorder %s34, 1
      %p277 = por %p275, %p276
      %p279 = scmp.ne.s32.totalorder %s262, %s278
      %p280 = scmp.eq.s32.totalorder %s34, 0
      %p281 = por %p279, %p280
      %s282 = ssub.s32 %s28, %s35
      %p283 = scmp.eq.s32.totalorder %s282, 0
      %s285 = sadd.s32 %s284, 1
      %s286 = scalar_select %p283, %s284, %s285
      %p289 = pneg %p283
      %p290 = scmp.eq.s32.totalorder %s28, 1
      %p291 = por %p289, %p290
      %p292 = scmp.ne.s32.totalorder %s284, %s287
      %p293 = scmp.eq.s32.totalorder %s28, 0
      %p294 = por %p292, %p293
      %p295 = scmp.ne.s32.totalorder %s284, %s287
      %p296 = scmp.eq.s32.totalorder %s33, 1
      %p297 = por %p295, %p296
      %p298 = scmp.ne.s32.totalorder %s287, %s288
      %p299 = scmp.eq.s32.totalorder %s33, 0
      %p300 = por %p298, %p299
      %p301 = scmp.ne.s32.totalorder %s287, %s288
      %p302 = scmp.eq.s32.totalorder %s34, 1
      %p303 = por %p301, %p302
      %p305 = scmp.ne.s32.totalorder %s288, %s304
      %p306 = scmp.eq.s32.totalorder %s34, 0
      %p307 = por %p305, %p306
      %p308 = scmp.le.s32.totalorder 1, %s28
      %p309 = scmp.lt.s32.totalorder %s28, 3
      %p310 = pnand %p308, %p309
      %p311 = pneg %p310
      // Predicated region
      $region9: #{decoder_layer.4} parent=5 // pred_check
        _
      $region10: #{decoder_layer.4} parent=5 // pred_check_branch
        %313 = sbr.rel (%p310) target = $region12
      $region11: #{decoder_layer.4} parent=5 // pred_region
        %s314 = ssub.s32 %s28, 1
        // Predicated region
        $region13: #{decoder_layer.4} parent=11 // pred_check
          %p315 = pneg %p101
        $region14: #{decoder_layer.4} parent=11 // pred_check_branch
          %317 = sbr.rel (%p315) target = $region16
        $region15: #{decoder_layer.4} parent=11 // pred_region
          %s319 = ssub.s32 1024, 1024
          %320 = vsyncadd [#allocation7], %s319
          %s321 = sshll.u32 [#allocation6], 4
          %s322 = int_to_ptr.vmem [resolvable:$true] %s321
          %327 = dma.hbm_to_vmem [thread:$0]  %s2, 1024, %s322, [#allocation7], 64, 64, 4
        $region16: #{decoder_layer.4} parent=11 // pred_fallthru
          _
        // Predicated region
        $region17: #{decoder_layer.4} parent=11 // pred_check
          %p328 = pneg %p122
        $region18: #{decoder_layer.4} parent=11 // pred_check_branch
          %330 = sbr.rel (%p328) target = $region20
        $region19: #{decoder_layer.4} parent=11 // pred_region
          %s332 = ssub.s32 16, 16
          %333 = vsyncadd [#allocation7], %s332
          %s335 = sshll.u32 [#allocation8], 4
          %s336 = int_to_ptr.vmem [resolvable:$true] %s335
          %338 = dma.hbm_to_vmem [thread:$0]  %s3, 16, %s336, [#allocation7]
        $region20: #{decoder_layer.4} parent=11 // pred_fallthru
          _
        // Predicated region
        $region21: #{decoder_layer.4} parent=11 // pred_check
          %p339 = pneg %p143
        $region22: #{decoder_layer.4} parent=11 // pred_check_branch
          %341 = sbr.rel (%p339) target = $region24
        $region23: #{decoder_layer.4} parent=11 // pred_region
          %s343 = ssub.s32 2048, 2048
          %344 = vsyncadd [#allocation10], %s343
          %s345 = sshll.u32 [#allocation9], 4
          %s346 = int_to_ptr.vmem [resolvable:$true] %s345
          %351 = dma.hbm_to_vmem [thread:$0]  %s4, 2048, %s346, [#allocation10], 128, 128, 8
        $region24: #{decoder_layer.4} parent=11 // pred_fallthru
          _
        // Predicated region
        $region25: #{decoder_layer.4} parent=11 // pred_check
          %p352 = pneg %p164
        $region26: #{decoder_layer.4} parent=11 // pred_check_branch
          %354 = sbr.rel (%p352) target = $region28
        $region27: #{decoder_layer.4} parent=11 // pred_region
          %s356 = ssub.s32 32, 32
          %357 = vsyncadd [#allocation10], %s356
          %s359 = sshll.u32 [#allocation11], 4
          %s360 = int_to_ptr.vmem [resolvable:$true] %s359
          %362 = dma.hbm_to_vmem [thread:$0]  %s5, 32, %s360, [#allocation10]
        $region28: #{decoder_layer.4} parent=11 // pred_fallthru
          _
        // Predicated region
        $region29: #{decoder_layer.4} parent=11 // pred_check
          %p363 = pneg %p185
        $region30: #{decoder_layer.4} parent=11 // pred_check_branch
          %365 = sbr.rel (%p363) target = $region32
        $region31: #{decoder_layer.4} parent=11 // pred_region
          %s367 = ssub.s32 1024, 1024
          %368 = vsyncadd [#allocation13], %s367
          %s369 = sshll.u32 [#allocation12], 4
          %s370 = int_to_ptr.vmem [resolvable:$true] %s369
          %375 = dma.hbm_to_vmem [thread:$0]  %s6, 1024, %s370, [#allocation13], 64, 64, 4
        $region32: #{decoder_layer.4} parent=11 // pred_fallthru
          _
        // Predicated region
        $region33: #{decoder_layer.4} parent=11 // pred_check
          %p376 = pneg %p206
        $region34: #{decoder_layer.4} parent=11 // pred_check_branch
          %378 = sbr.rel (%p376) target = $region36
        $region35: #{decoder_layer.4} parent=11 // pred_region
          %s380 = ssub.s32 16, 16
          %381 = vsyncadd [#allocation13], %s380
          %s383 = sshll.u32 [#allocation14], 4
          %s384 = int_to_ptr.vmem [resolvable:$true] %s383
          %386 = dma.hbm_to_vmem [thread:$0]  %s7, 16, %s384, [#allocation13]
        $region36: #{decoder_layer.4} parent=11 // pred_fallthru
          _
        // Predicated region
        $region37: #{decoder_layer.4} parent=11 // pred_check
          %p387 = pneg %p227
        $region38: #{decoder_layer.4} parent=11 // pred_check_branch
          %389 = sbr.rel (%p387) target = $region40
        $region39: #{decoder_layer.4} parent=11 // pred_region
          %s391 = ssub.s32 16, 16
          %392 = vsyncadd [#allocation16], %s391
          %s394 = sshll.u32 [#allocation15], 4
          %s395 = int_to_ptr.vmem [resolvable:$true] %s394
          %397 = dma.hbm_to_vmem [thread:$0]  %s8, 16, %s395, [#allocation16]
        $region40: #{decoder_layer.4} parent=11 // pred_fallthru
          _
        // Predicated region
        $region41: #{decoder_layer.4} parent=11 // pred_check
          %p398 = pneg %p248
        $region42: #{decoder_layer.4} parent=11 // pred_check_branch
          %400 = sbr.rel (%p398) target = $region44
        $region43: #{decoder_layer.4} parent=11 // pred_region
          %s402 = ssub.s32 16, 16
          %403 = vsyncadd [#allocation16], %s402
          %s405 = sshll.u32 [#allocation17], 4
          %s406 = int_to_ptr.vmem [resolvable:$true] %s405
          %408 = dma.hbm_to_vmem [thread:$0]  %s9, 16, %s406, [#allocation16]
        $region44: #{decoder_layer.4} parent=11 // pred_fallthru
          _
      $region12: #{decoder_layer.4} parent=5 // pred_fallthru
        _
      %p409 = scmp.lt.s32.totalorder %s28, 2
      // Predicated region
      $region45: #{decoder_layer.4} parent=5 // pred_check
        %p410 = pneg %p409
      $region46: #{decoder_layer.4} parent=5 // pred_check_branch
        %412 = sbr.rel (%p410) target = $region48
      $region47: #{decoder_layer.4} parent=5 // pred_region
        // Predicated region
        $region49: #{decoder_layer.4} parent=47 // pred_check
          %p413 = pneg %p48
        $region50: #{decoder_layer.4} parent=47 // pred_check_branch
          %415 = sbr.rel (%p413) target = $region52
        $region51: #{decoder_layer.4} parent=47 // pred_region
          %p416 = scmp.lt.s32.totalorder %s28, 1
          %s417 = scalar_select %p416, %s28, 1
          %s418 = smul.addr %s417, 8
          %s419 = scalar_lea.vmem %s0, %s418
        $region52: #{decoder_layer.4} parent=47 // pred_fallthru
          _
        // Predicated region
        $region53: #{decoder_layer.4} parent=47 // pred_check
          %p420 = pneg %p74
        $region54: #{decoder_layer.4} parent=47 // pred_check_branch
          %422 = sbr.rel (%p420) target = $region56
        $region55: #{decoder_layer.4} parent=47 // pred_region
          %s423 = sand.u32 %s64, 1
          %s424 = scalar_lea.sflag [#allocation4], %s423
          %s425 = sand.u32 %s64, 1
          %s426 = smul.addr %s425, 16
          %s427 = scalar_lea.vmem [#allocation3], %s426
          %s429 = ssub.s32 256, 256
          %430 = vsyncadd %s424, %s429
          %s431 = smul.addr %s28, 2
          %s432 = smul.addr %s431, 128
          %s433 = scalar_lea.hbm %s1, %s432
          %s434 = sshll.u32 %s427, 4
          %s435 = int_to_ptr.vmem [resolvable:$true] %s434
          %440 = dma.hbm_to_vmem [thread:$0]  %s433, 256, %s435, %s424, 128, 128, 8
        $region56: #{decoder_layer.4} parent=47 // pred_fallthru
          _
      $region48: #{decoder_layer.4} parent=5 // pred_fallthru
        _
      %p441 = scmp.le.s32.totalorder 1, %s28
      %p442 = scmp.lt.s32.totalorder %s28, 3
      %p443 = pnand %p441, %p442
      %p444 = pneg %p443
      // Predicated region
      $region57: #{decoder_layer.4} parent=5 // pred_check
        _
      $region58: #{decoder_layer.4} parent=5 // pred_check_branch
        %446 = sbr.rel (%p443) target = $region60
      $region59: #{decoder_layer.4} parent=5 // pred_region
        %s447 = ssub.s32 %s28, 1
        %s448 = sand.u32 %s67, 1
        %s449 = scalar_lea.sflag [#allocation4], %s448
        %s450 = sand.u32 %s67, 1
        %s451 = smul.addr %s450, 16
        %s452 = scalar_lea.vmem [#allocation3], %s451
        // Predicated region
        $region61: #{decoder_layer.4} parent=59 // pred_check
          %p453 = pneg %p80
        $region62: #{decoder_layer.4} parent=59 // pred_check_branch
          %455 = sbr.rel (%p453) target = $region64
        $region63: #{decoder_layer.4} parent=59 // pred_region
          %456 = dma.done %s449, 256
        $region64: #{decoder_layer.4} parent=59 // pred_fallthru
          _
        // Predicated region
        $region65: #{decoder_layer.4} parent=59 // pred_check
          %p457 = pneg %p101
        $region66: #{decoder_layer.4} parent=59 // pred_check_branch
          %459 = sbr.rel (%p457) target = $region68
        $region67: #{decoder_layer.4} parent=59 // pred_region
          %460 = dma.done [#allocation7], 1024
        $region68: #{decoder_layer.4} parent=59 // pred_fallthru
          _
        // Predicated region
        $region69: #{decoder_layer.4} parent=59 // pred_check
          %p461 = pneg %p122
        $region70: #{decoder_layer.4} parent=59 // pred_check_branch
          %463 = sbr.rel (%p461) target = $region72
        $region71: #{decoder_layer.4} parent=59 // pred_region
          %464 = dma.done [#allocation7], 16
        $region72: #{decoder_layer.4} parent=59 // pred_fallthru
          _
        // Predicated region
        $region73: #{decoder_layer.4} parent=59 // pred_check
          %p465 = pneg %p143
        $region74: #{decoder_layer.4} parent=59 // pred_check_branch
          %467 = sbr.rel (%p465) target = $region76
        $region75: #{decoder_layer.4} parent=59 // pred_region
          %468 = dma.done [#allocation10], 2048
        $region76: #{decoder_layer.4} parent=59 // pred_fallthru
          _
        // Predicated region
        $region77: #{decoder_layer.4} parent=59 // pred_check
          %p469 = pneg %p164
        $region78: #{decoder_layer.4} parent=59 // pred_check_branch
          %471 = sbr.rel (%p469) target = $region80
        $region79: #{decoder_layer.4} parent=59 // pred_region
          %472 = dma.done [#allocation10], 32
        $region80: #{decoder_layer.4} parent=59 // pred_fallthru
          _
        // Predicated region
        $region81: #{decoder_layer.4} parent=59 // pred_check
          %p473 = pneg %p185
        $region82: #{decoder_layer.4} parent=59 // pred_check_branch
          %475 = sbr.rel (%p473) target = $region84
        $region83: #{decoder_layer.4} parent=59 // pred_region
          %476 = dma.done [#allocation13], 1024
        $region84: #{decoder_layer.4} parent=59 // pred_fallthru
          _
        // Predicated region
        $region85: #{decoder_layer.4} parent=59 // pred_check
          %p477 = pneg %p206
        $region86: #{decoder_layer.4} parent=59 // pred_check_branch
          %479 = sbr.rel (%p477) target = $region88
        $region87: #{decoder_layer.4} parent=59 // pred_region
          %480 = dma.done [#allocation13], 16
        $region88: #{decoder_layer.4} parent=59 // pred_fallthru
          _
        // Predicated region
        $region89: #{decoder_layer.4} parent=59 // pred_check
          %p481 = pneg %p227
        $region90: #{decoder_layer.4} parent=59 // pred_check_branch
          %483 = sbr.rel (%p481) target = $region92
        $region91: #{decoder_layer.4} parent=59 // pred_region
          %484 = dma.done [#allocation16], 16
        $region92: #{decoder_layer.4} parent=59 // pred_fallthru
          _
        // Predicated region
        $region93: #{decoder_layer.4} parent=59 // pred_check
          %p485 = pneg %p248
        $region94: #{decoder_layer.4} parent=59 // pred_check_branch
          %487 = sbr.rel (%p485) target = $region96
        $region95: #{decoder_layer.4} parent=59 // pred_region
          %488 = dma.done [#allocation16], 16
        $region96: #{decoder_layer.4} parent=59 // pred_fallthru
          _
        %p489 = scmp.lt.s32.totalorder %s33, 1
        %s490 = scalar_select %p489, %s33, 1
        %s491 = smul.addr %s490, 8
        %s492 = scalar_lea.vmem %s0, %s491
        %p493 = pneg %p54
        %p494 = pneg %p51
        %s495 = sand.u32 %s67, 1
        %s496 = scalar_lea.sflag [#allocation4], %s495
        %s497 = sand.u32 %s67, 1
        %s498 = smul.addr %s497, 16
        %s499 = scalar_lea.vmem [#allocation3], %s498
        %p500 = pneg %p80
        %p501 = pneg %p77
        %p502 = pneg %p101
        %p503 = pneg %p98
        %p504 = pneg %p122
        %p505 = pneg %p119
        %p506 = pneg %p143
        %p507 = pneg %p140
        %p508 = pneg %p164
        %p509 = pneg %p161
        %p510 = pneg %p185
        %p511 = pneg %p182
        %p512 = pneg %p206
        %p513 = pneg %p203
        %p514 = pneg %p227
        %p515 = pneg %p224
        %p516 = pneg %p248
        %p517 = pneg %p245
        %p518 = pneg %p274
        %p519 = pneg %p271
        %p520 = scmp.lt.s32.totalorder %s33, 1
        %s521 = scalar_select %p520, %s33, 1
        %s522 = smul.addr %s521, 8
        %s523 = scalar_lea.vmem %s10, %s522
        %p524 = pneg %p300
        %p525 = pneg %p297
        %s526 = sand.u32 %s287, 1
        %s527 = scalar_lea.sflag [#allocation5], %s526
        %s528 = sand.u32 %s287, 1
        %s529 = smul.addr %s528, 8
        %s530 = scalar_lea.vmem [#allocation18], %s529
        %p531 = scmp.lt.s32.totalorder %s33, 1
        %s532 = scalar_select %p531, %s33, 1
        %s533 = smul.addr %s532, 8
        %s534 = scalar_lea.vmem %s0, %s533
        %p535 = scmp.lt.s32.totalorder %s33, 1
        %s536 = scalar_select %p535, %s33, 1
        %s537 = smul.addr %s536, 8
        %s538 = scalar_lea.vmem %s10, %s537
        %v540 = vld [vmem:[%s534] sm:$0xff]
        %v541 = vpack.c.bf16 %v540, %v540
        %v542 = vld [vmem:[#allocation6] sm:$0xf]
        %v543 = vld [vmem:[#allocation6 + $0x4] sm:$0xf]
        %v544 = vld [vmem:[#allocation6 + $0x8] sm:$0xf]
        %v545 = vld [vmem:[#allocation6 + $0xc] sm:$0xf]
        %v546 = vld [vmem:[#allocation6 + $0x10] sm:$0xf]
        %v547 = vld [vmem:[#allocation6 + $0x14] sm:$0xf]
        %v548 = vld [vmem:[#allocation6 + $0x18] sm:$0xf]
        %v549 = vld [vmem:[#allocation6 + $0x1c] sm:$0xf]
        %v550 = vld [vmem:[#allocation6 + $0x20] sm:$0xf]
        %v551 = vld [vmem:[#allocation6 + $0x24] sm:$0xf]
        %v552 = vld [vmem:[#allocation6 + $0x28] sm:$0xf]
        %v553 = vld [vmem:[#allocation6 + $0x2c] sm:$0xf]
        %v554 = vld [vmem:[#allocation6 + $0x30] sm:$0xf]
        %v555 = vld [vmem:[#allocation6 + $0x34] sm:$0xf]
        %v556 = vld [vmem:[#allocation6 + $0x38] sm:$0xf]
        %v557 = vld [vmem:[#allocation6 + $0x3c] sm:$0xf]
        %v558 = vld [vmem:[#allocation8] sm:$0x1]
        %v560 = vlaneseq
        %v561 = vshrl.u32 %v560, 7
        %v562 = vsub.s32 0, %v561
        %v563 = vrot.slane %v558, %v562
        %v581 = vunpack.c.l.b16 %v542
        %v582 = vunpack.c.l.b16 %v543
        %v583 = vunpack.c.l.b16 %v544
        %v584 = vunpack.c.l.b16 %v545
        %v585 = vunpack.c.l.b16 %v546
        %v586 = vunpack.c.l.b16 %v547
        %v587 = vunpack.c.l.b16 %v548
        %v588 = vunpack.c.l.b16 %v549
        %v589 = vunpack.c.l.b16 %v550
        %v590 = vunpack.c.l.b16 %v551
        %v591 = vunpack.c.l.b16 %v552
        %v592 = vunpack.c.l.b16 %v553
        %v593 = vunpack.c.l.b16 %v554
        %v594 = vunpack.c.l.b16 %v555
        %v595 = vunpack.c.l.b16 %v556
        %v596 = vunpack.c.l.b16 %v557
        %v597 = vpack.c.b16 %v582, %v581
        %v598 = vpack.c.b16 %v584, %v583
        %v599 = vpack.c.b16 %v586, %v585
        %v600 = vpack.c.b16 %v588, %v587
        %v601 = vpack.c.b16 %v590, %v589
        %v602 = vpack.c.b16 %v592, %v591
        %v603 = vpack.c.b16 %v594, %v593
        %v604 = vpack.c.b16 %v596, %v595
        %613 = vmatprep.subr.bf16.mxu0 0
        %614 = vmatpush1.bf16.msra.mxu0 %v604
        %615 = vmatprep.subr.bf16.mxu0 0
        %616 = vmatpush1.bf16.msra.mxu0 %v603
        %617 = vmatprep.subr.bf16.mxu0 0
        %618 = vmatpush1.bf16.msra.mxu0 %v602
        %619 = vmatprep.subr.bf16.mxu0 0
        %620 = vmatpush1.bf16.msra.mxu0 %v601
        %621 = vmatprep.subr.bf16.mxu0 0
        %622 = vmatpush1.bf16.msra.mxu0 %v600
        %623 = vmatprep.subr.bf16.mxu0 0
        %624 = vmatpush1.bf16.msra.mxu0 %v599
        %625 = vmatprep.subr.bf16.mxu0 0
        %626 = vmatpush1.bf16.msra.mxu0 %v598
        %627 = vmatprep.subr.bf16.mxu0 0
        %628 = vmatpush1.bf16.msra.mxu0 %v597
        %629 = vmatprep.subr.bf16.mxu0 0
        %630 = vmatpush2.bf16.msra.mxu0 0
        %631 = vmatprep.subr.bf16.mxu0 0
        %632 = vmatpush2.bf16.msra.mxu0 0
        %633 = vmatprep.subr.bf16.mxu0 0
        %634 = vmatpush2.bf16.msra.mxu0 0
        %635 = vmatprep.subr.bf16.mxu0 0
        %636 = vmatpush2.bf16.msra.mxu0 0
        %637 = vmatprep.subr.bf16.mxu0 0
        %638 = vmatpush2.bf16.msra.mxu0 0
        %639 = vmatprep.subr.bf16.mxu0 0
        %640 = vmatpush2.bf16.msra.mxu0 0
        %641 = vmatprep.subr.bf16.mxu0 0
        %642 = vmatpush2.bf16.msra.mxu0 0
        %643 = vmatprep.subr.bf16.mxu0 0
        %644 = vmatpush2.bf16.msra.mxu0 0
        %645 = vmatprep.mubr.bf16.mxu0 0
        %646 = vmatmul.mubr.bf16.gmra.mxu0 %v541
        %v647 = vpop.f32.mrf.mxu0
        %v648 = vadd.f32 %v563, %v647
        %v649 = vpop.f32.mrf.mxu0
        %v650 = vpop.f32.mrf.mxu0
        %v651 = vpop.f32.mrf.mxu0
        %652 = vdwg.mxu0
        %v653 = vld [vmem:[%s452] sm:$0xff]
        %v654 = vld [vmem:[%s452 + $0x8] sm:$0xff]
        %v655 = vpack.c.bf16 %v654, %v653
        %v656 = vld [vmem:[#allocation9] sm:$0xff]
        %v657 = vld [vmem:[#allocation9 + $0x8] sm:$0xff]
        %v658 = vld [vmem:[#allocation9 + $0x10] sm:$0xff]
        %v659 = vld [vmem:[#allocation9 + $0x18] sm:$0xff]
        %v660 = vld [vmem:[#allocation9 + $0x20] sm:$0xff]
        %v661 = vld [vmem:[#allocation9 + $0x28] sm:$0xff]
        %v662 = vld [vmem:[#allocation9 + $0x30] sm:$0xff]
        %v663 = vld [vmem:[#allocation9 + $0x38] sm:$0xff]
        %v664 = vld [vmem:[#allocation9 + $0x40] sm:$0xff]
        %v665 = vld [vmem:[#allocation9 + $0x48] sm:$0xff]
        %v666 = vld [vmem:[#allocation9 + $0x50] sm:$0xff]
        %v667 = vld [vmem:[#allocation9 + $0x58] sm:$0xff]
        %v668 = vld [vmem:[#allocation9 + $0x60] sm:$0xff]
        %v669 = vld [vmem:[#allocation9 + $0x68] sm:$0xff]
        %v670 = vld [vmem:[#allocation9 + $0x70] sm:$0xff]
        %v671 = vld [vmem:[#allocation9 + $0x78] sm:$0xff]
        %v672 = vld [vmem:[#allocation11] sm:$0x3]
        %v674 = vlaneseq
        %v675 = vshrl.u32 %v674, 7
        %v676 = vsub.s32 0, %v675
        %v677 = vrot.slane %v672, %v676
        %v678 = vlaneseq
        %v679 = vshrl.u32 %v678, 7
        %v680 = vsub.s32 1, %v679
        %v681 = vrot.slane %v672, %v680
        %v700 = vunpack.c.l.b16 %v656
        %v701 = vunpack.c.h.b16 %v656
        %v702 = vunpack.c.l.b16 %v657
        %v703 = vunpack.c.h.b16 %v657
        %v704 = vunpack.c.l.b16 %v658
        %v705 = vunpack.c.h.b16 %v658
        %v706 = vunpack.c.l.b16 %v659
        %v707 = vunpack.c.h.b16 %v659
        %v708 = vunpack.c.l.b16 %v660
        %v709 = vunpack.c.h.b16 %v660
        %v710 = vunpack.c.l.b16 %v661
        %v711 = vunpack.c.h.b16 %v661
        %v712 = vunpack.c.l.b16 %v662
        %v713 = vunpack.c.h.b16 %v662
        %v714 = vunpack.c.l.b16 %v663
        %v715 = vunpack.c.h.b16 %v663
        %v716 = vunpack.c.l.b16 %v664
        %v717 = vunpack.c.h.b16 %v664
        %v718 = vunpack.c.l.b16 %v665
        %v719 = vunpack.c.h.b16 %v665
        %v720 = vunpack.c.l.b16 %v666
        %v721 = vunpack.c.h.b16 %v666
        %v722 = vunpack.c.l.b16 %v667
        %v723 = vunpack.c.h.b16 %v667
        %v724 = vunpack.c.l.b16 %v668
        %v725 = vunpack.c.h.b16 %v668
        %v726 = vunpack.c.l.b16 %v669
        %v727 = vunpack.c.h.b16 %v669
        %v728 = vunpack.c.l.b16 %v670
        %v729 = vunpack.c.h.b16 %v670
        %v730 = vunpack.c.l.b16 %v671
        %v731 = vunpack.c.h.b16 %v671
        %v732 = vpack.c.b16 %v702, %v700
        %v733 = vpack.c.b16 %v703, %v701
        %v734 = vpack.c.b16 %v706, %v704
        %v735 = vpack.c.b16 %v707, %v705
        %v736 = vpack.c.b16 %v710, %v708
        %v737 = vpack.c.b16 %v711, %v709
        %v738 = vpack.c.b16 %v714, %v712
        %v739 = vpack.c.b16 %v715, %v713
        %v740 = vpack.c.b16 %v718, %v716
        %v741 = vpack.c.b16 %v719, %v717
        %v742 = vpack.c.b16 %v722, %v720
        %v743 = vpack.c.b16 %v723, %v721
        %v744 = vpack.c.b16 %v726, %v724
        %v745 = vpack.c.b16 %v727, %v725
        %v746 = vpack.c.b16 %v730, %v728
        %v747 = vpack.c.b16 %v731, %v729
        %764 = vmatprep.subr.bf16.mxu0 %v747
        %765 = vmatpush1.bf16.msra.mxu0 %v746
        %766 = vmatprep.subr.bf16.mxu0 %v745
        %767 = vmatpush1.bf16.msra.mxu0 %v744
        %768 = vmatprep.subr.bf16.mxu0 %v743
        %769 = vmatpush1.bf16.msra.mxu0 %v742
        %770 = vmatprep.subr.bf16.mxu0 %v741
        %771 = vmatpush1.bf16.msra.mxu0 %v740
        %772 = vmatprep.subr.bf16.mxu0 %v739
        %773 = vmatpush1.bf16.msra.mxu0 %v738
        %774 = vmatprep.subr.bf16.mxu0 %v737
        %775 = vmatpush1.bf16.msra.mxu0 %v736
        %776 = vmatprep.subr.bf16.mxu0 %v735
        %777 = vmatpush1.bf16.msra.mxu0 %v734
        %778 = vmatprep.subr.bf16.mxu0 %v733
        %779 = vmatpush1.bf16.msra.mxu0 %v732
        %780 = vmatprep.subr.bf16.mxu0 0
        %781 = vmatpush2.bf16.msra.mxu0 0
        %782 = vmatprep.subr.bf16.mxu0 0
        %783 = vmatpush2.bf16.msra.mxu0 0
        %784 = vmatprep.subr.bf16.mxu0 0
        %785 = vmatpush2.bf16.msra.mxu0 0
        %786 = vmatprep.subr.bf16.mxu0 0
        %787 = vmatpush2.bf16.msra.mxu0 0
        %788 = vmatprep.subr.bf16.mxu0 0
        %789 = vmatpush2.bf16.msra.mxu0 0
        %790 = vmatprep.subr.bf16.mxu0 0
        %791 = vmatpush2.bf16.msra.mxu0 0
        %792 = vmatprep.subr.bf16.mxu0 0
        %793 = vmatpush2.bf16.msra.mxu0 0
        %794 = vmatprep.subr.bf16.mxu0 0
        %795 = vmatpush2.bf16.msra.mxu0 0
        %796 = vmatprep.mubr.bf16.mxu0 0
        %797 = vmatmul.mubr.bf16.gmra.mxu0 %v655
        %v798 = vpop.f32.mrf.mxu0
        %v799 = vadd.f32 %v677, %v798
        %v800 = vpop.f32.mrf.mxu0
        %v801 = vadd.f32 %v681, %v800
        %v802 = vpop.f32.mrf.mxu0
        %v803 = vadd.f32 %v677, %v802
        %v804 = vpop.f32.mrf.mxu0
        %v805 = vadd.f32 %v681, %v804
        %806 = vdwg.mxu0
        %vm807 = vcmask 130048
        %808 = vst.msk [vmem:[%s530] sm:$0xff] %vm807, 0.0
        %809 = vst [vmem:[#allocation2] sm:$0xff] 0.0
        %v810 = vpack.c.bf16 %v648, %v648
        %v811 = vpack.c.bf16 %v803, %v799
        %vm812 = vcmask 261120
        %v814 = vsel %vm812, %v810, 0
        %v817 = vsel %vm812, %v811, 0
        %819 = vmatprep.subr.bf16.mxu0 0
        %820 = vmatpush1.bf16.xpose.msra.mxu0 0
        %821 = vmatprep.subr.bf16.mxu0 0
        %822 = vmatpush1.bf16.xpose.msra.mxu0 0
        %823 = vmatprep.subr.bf16.mxu0 0
        %824 = vmatpush1.bf16.xpose.msra.mxu0 0
        %825 = vmatprep.subr.bf16.mxu0 0
        %826 = vmatpush1.bf16.xpose.msra.mxu0 0
        %827 = vmatprep.subr.bf16.mxu0 0
        %828 = vmatpush1.bf16.xpose.msra.mxu0 0
        %829 = vmatprep.subr.bf16.mxu0 0
        %830 = vmatpush1.bf16.xpose.msra.mxu0 0
        %831 = vmatprep.subr.bf16.mxu0 0
        %832 = vmatpush1.bf16.xpose.msra.mxu0 0
        %833 = vmatprep.subr.bf16.mxu0 0
        %834 = vmatpush1.bf16.xpose.msra.mxu0 %v817
        %835 = vmatprep.subr.bf16.mxu0 0
        %836 = vmatpush2.bf16.xpose.msra.mxu0 0
        %837 = vmatprep.subr.bf16.mxu0 0
        %838 = vmatpush2.bf16.xpose.msra.mxu0 0
        %839 = vmatprep.subr.bf16.mxu0 0
        %840 = vmatpush2.bf16.xpose.msra.mxu0 0
        %841 = vmatprep.subr.bf16.mxu0 0
        %842 = vmatpush2.bf16.xpose.msra.mxu0 0
        %843 = vmatprep.subr.bf16.mxu0 0
        %844 = vmatpush2.bf16.xpose.msra.mxu0 0
        %845 = vmatprep.subr.bf16.mxu0 0
        %846 = vmatpush2.bf16.xpose.msra.mxu0 0
        %847 = vmatprep.subr.bf16.mxu0 0
        %848 = vmatpush2.bf16.xpose.msra.mxu0 0
        %849 = vmatprep.subr.bf16.mxu0 0
        %850 = vmatpush2.bf16.xpose.msra.mxu0 0
        %851 = vmatprep.mubr.bf16.mxu0 0
        %852 = vmatmul.mubr.bf16.gmra.mxu0 %v814
        %v853 = vpop.f32.mrf.mxu0
        %v854 = vadd.f32 0.0, %v853
        %v855 = vpop.f32.mrf.mxu0
        %v856 = vpop.f32.mrf.mxu0
        %v857 = vpop.f32.mrf.mxu0
        %858 = vdwg.mxu0
        %v859 = vmul.f32 %v854, 0.17677669
        %v860 = vsel %vm807, %v859, -inf
        %861 = vmax.xlane.f32.xlu0 %v860
        %v862 = vpop.xlane.xlu0 %861
        %v863 = vsub.f32 %v859, %v862
        %v864 = vmul.f32 %v863, 1.442695
        %v865 = vpow.pop %v864
        %v866 = vsel %vm807, %v865, 0.0
        %867 = vadd.xlane.f32.xlu0 %v866
        %v868 = vpop.xlane.xlu0 %867
        %v869 = vrcp.pop %v868
        %v870 = vmul.f32 %v865, %v869
        %v871 = vld [vmem:[%s530] sm:$0xff]
        %v872 = vmul.f32 %v870, 0.25
        %v873 = vadd.f32 %v871, %v872
        %874 = vst.msk [vmem:[%s530] sm:$0xff] %vm807, %v873
        %v875 = vpack.c.bf16 %v870, %v870
        %v876 = vpack.c.bf16 %v805, %v801
        %v878 = vsel %vm807, %v875, 0
        %880 = vmatprep.subr.bf16.mxu0 0
        %881 = vmatpush1.bf16.msra.mxu0 0
        %882 = vmatprep.subr.bf16.mxu0 0
        %883 = vmatpush1.bf16.msra.mxu0 0
        %884 = vmatprep.subr.bf16.mxu0 0
        %885 = vmatpush1.bf16.msra.mxu0 0
        %886 = vmatprep.subr.bf16.mxu0 0
        %887 = vmatpush1.bf16.msra.mxu0 0
        %888 = vmatprep.subr.bf16.mxu0 0
        %889 = vmatpush1.bf16.msra.mxu0 0
        %890 = vmatprep.subr.bf16.mxu0 0
        %891 = vmatpush1.bf16.msra.mxu0 0
        %892 = vmatprep.subr.bf16.mxu0 0
        %893 = vmatpush1.bf16.msra.mxu0 0
        %894 = vmatprep.subr.bf16.mxu0 0
        %895 = vmatpush1.bf16.msra.mxu0 %v876
        %896 = vmatprep.subr.bf16.mxu0 0
        %897 = vmatpush2.bf16.msra.mxu0 0
        %898 = vmatprep.subr.bf16.mxu0 0
        %899 = vmatpush2.bf16.msra.mxu0 0
        %900 = vmatprep.subr.bf16.mxu0 0
        %901 = vmatpush2.bf16.msra.mxu0 0
        %902 = vmatprep.subr.bf16.mxu0 0
        %903 = vmatpush2.bf16.msra.mxu0 0
        %904 = vmatprep.subr.bf16.mxu0 0
        %905 = vmatpush2.bf16.msra.mxu0 0
        %906 = vmatprep.subr.bf16.mxu0 0
        %907 = vmatpush2.bf16.msra.mxu0 0
        %908 = vmatprep.subr.bf16.mxu0 0
        %909 = vmatpush2.bf16.msra.mxu0 0
        %910 = vmatprep.subr.bf16.mxu0 0
        %911 = vmatpush2.bf16.msra.mxu0 0
        %912 = vmatprep.mubr.bf16.mxu0 0
        %913 = vmatmul.mubr.bf16.gmra.mxu0 %v878
        %v914 = vpop.f32.mrf.mxu0
        %v915 = vadd.f32 0.0, %v914
        %v916 = vpop.f32.mrf.mxu0
        %v917 = vpop.f32.mrf.mxu0
        %v918 = vpop.f32.mrf.mxu0
        %919 = vdwg.mxu0
        %v920 = vld [vmem:[#allocation2] sm:$0xff]
        %v921 = vpack.c.bf16 %v915, %v915
        %v922 = vld [vmem:[#allocation12] sm:$0xf]
        %v923 = vld [vmem:[#allocation12 + $0x4] sm:$0xf]
        %v924 = vld [vmem:[#allocation12 + $0x8] sm:$0xf]
        %v925 = vld [vmem:[#allocation12 + $0xc] sm:$0xf]
        %v930 = vunpack.c.l.b16 %v922
        %v931 = vunpack.c.l.b16 %v923
        %v932 = vunpack.c.l.b16 %v924
        %v933 = vunpack.c.l.b16 %v925
        %v934 = vpack.c.b16 %v931, %v930
        %v935 = vpack.c.b16 %v933, %v932
        %v939 = vsel %vm812, %v921, 0
        %941 = vmatprep.subr.bf16.mxu0 0
        %942 = vmatpush1.bf16.msra.mxu0 0
        %943 = vmatprep.subr.bf16.mxu0 0
        %944 = vmatpush1.bf16.msra.mxu0 0
        %945 = vmatprep.subr.bf16.mxu0 0
        %946 = vmatpush1.bf16.msra.mxu0 0
        %947 = vmatprep.subr.bf16.mxu0 0
        %948 = vmatpush1.bf16.msra.mxu0 0
        %949 = vmatprep.subr.bf16.mxu0 0
        %950 = vmatpush1.bf16.msra.mxu0 0
        %951 = vmatprep.subr.bf16.mxu0 0
        %952 = vmatpush1.bf16.msra.mxu0 0
        %953 = vmatprep.subr.bf16.mxu0 0
        %954 = vmatpush1.bf16.msra.mxu0 %v935
        %955 = vmatprep.subr.bf16.mxu0 0
        %956 = vmatpush1.bf16.msra.mxu0 %v934
        %957 = vmatprep.subr.bf16.mxu0 0
        %958 = vmatpush2.bf16.msra.mxu0 0
        %959 = vmatprep.subr.bf16.mxu0 0
        %960 = vmatpush2.bf16.msra.mxu0 0
        %961 = vmatprep.subr.bf16.mxu0 0
        %962 = vmatpush2.bf16.msra.mxu0 0
        %963 = vmatprep.subr.bf16.mxu0 0
        %964 = vmatpush2.bf16.msra.mxu0 0
        %965 = vmatprep.subr.bf16.mxu0 0
        %966 = vmatpush2.bf16.msra.mxu0 0
        %967 = vmatprep.subr.bf16.mxu0 0
        %968 = vmatpush2.bf16.msra.mxu0 0
        %969 = vmatprep.subr.bf16.mxu0 0
        %970 = vmatpush2.bf16.msra.mxu0 0
        %971 = vmatprep.subr.bf16.mxu0 0
        %972 = vmatpush2.bf16.msra.mxu0 0
        %973 = vmatprep.mubr.bf16.mxu0 0
        %974 = vmatmul.mubr.bf16.gmra.mxu0 %v939
        %v975 = vpop.f32.mrf.mxu0
        %v976 = vadd.f32 0.0, %v975
        %v977 = vpop.f32.mrf.mxu0
        %v978 = vpop.f32.mrf.mxu0
        %v979 = vpop.f32.mrf.mxu0
        %980 = vdwg.mxu0
        %v981 = vadd.f32 %v920, %v976
        %982 = vst [vmem:[#allocation2] sm:$0xff] %v981
        %984 = vrot.lane.b32.xlu0 %v810, 96
        %v985 = vpop.permute.xlu0 %984
        %987 = vrot.lane.b32.xlu0 %v811, 96
        %v988 = vpop.permute.xlu0 %987
        %v990 = vsel %vm812, %v985, 0
        %v993 = vsel %vm812, %v988, 0
        %995 = vmatprep.subr.bf16.mxu0 0
        %996 = vmatpush1.bf16.xpose.msra.mxu0 0
        %997 = vmatprep.subr.bf16.mxu0 0
        %998 = vmatpush1.bf16.xpose.msra.mxu0 0
        %999 = vmatprep.subr.bf16.mxu0 0
        %1000 = vmatpush1.bf16.xpose.msra.mxu0 0
        %1001 = vmatprep.subr.bf16.mxu0 0
        %1002 = vmatpush1.bf16.xpose.msra.mxu0 0
        %1003 = vmatprep.subr.bf16.mxu0 0
        %1004 = vmatpush1.bf16.xpose.msra.mxu0 0
        %1005 = vmatprep.subr.bf16.mxu0 0
        %1006 = vmatpush1.bf16.xpose.msra.mxu0 0
        %1007 = vmatprep.subr.bf16.mxu0 0
        %1008 = vmatpush1.bf16.xpose.msra.mxu0 0
        %1009 = vmatprep.subr.bf16.mxu0 0
        %1010 = vmatpush1.bf16.xpose.msra.mxu0 %v993
        %1011 = vmatprep.subr.bf16.mxu0 0
        %1012 = vmatpush2.bf16.xpose.msra.mxu0 0
        %1013 = vmatprep.subr.bf16.mxu0 0
        %1014 = vmatpush2.bf16.xpose.msra.mxu0 0
        %1015 = vmatprep.subr.bf16.mxu0 0
        %1016 = vmatpush2.bf16.xpose.msra.mxu0 0
        %1017 = vmatprep.subr.bf16.mxu0 0
        %1018 = vmatpush2.bf16.xpose.msra.mxu0 0
        %1019 = vmatprep.subr.bf16.mxu0 0
        %1020 = vmatpush2.bf16.xpose.msra.mxu0 0
        %1021 = vmatprep.subr.bf16.mxu0 0
        %1022 = vmatpush2.bf16.xpose.msra.mxu0 0
        %1023 = vmatprep.subr.bf16.mxu0 0
        %1024 = vmatpush2.bf16.xpose.msra.mxu0 0
        %1025 = vmatprep.subr.bf16.mxu0 0
        %1026 = vmatpush2.bf16.xpose.msra.mxu0 0
        %1027 = vmatprep.mubr.bf16.mxu0 0
        %1028 = vmatmul.mubr.bf16.gmra.mxu0 %v990
        %v1029 = vpop.f32.mrf.mxu0
        %v1030 = vadd.f32 0.0, %v1029
        %v1031 = vpop.f32.mrf.mxu0
        %v1032 = vpop.f32.mrf.mxu0
        %v1033 = vpop.f32.mrf.mxu0
        %1034 = vdwg.mxu0
        %v1035 = vmul.f32 %v1030, 0.17677669
        %v1036 = vsel %vm807, %v1035, -inf
        %1037 = vmax.xlane.f32.xlu0 %v1036
        %v1038 = vpop.xlane.xlu0 %1037
        %v1039 = vsub.f32 %v1035, %v1038
        %v1040 = vmul.f32 %v1039, 1.442695
        %v1041 = vpow.pop %v1040
        %v1042 = vsel %vm807, %v1041, 0.0
        %1043 = vadd.xlane.f32.xlu0 %v1042
        %v1044 = vpop.xlane.xlu0 %1043
        %v1045 = vrcp.pop %v1044
        %v1046 = vmul.f32 %v1041, %v1045
        %v1047 = vld [vmem:[%s530] sm:$0xff]
        %v1048 = vmul.f32 %v1046, 0.25
        %v1049 = vadd.f32 %v1047, %v1048
        %1050 = vst.msk [vmem:[%s530] sm:$0xff] %vm807, %v1049
        %v1051 = vpack.c.bf16 %v1046, %v1046
        %1053 = vrot.lane.b32.xlu0 %v876, 96
        %v1054 = vpop.permute.xlu0 %1053
        %v1057 = vsel %vm807, %v1051, 0
        %1059 = vmatprep.subr.bf16.mxu0 0
        %1060 = vmatpush1.bf16.msra.mxu0 0
        %1061 = vmatprep.subr.bf16.mxu0 0
        %1062 = vmatpush1.bf16.msra.mxu0 0
        %1063 = vmatprep.subr.bf16.mxu0 0
        %1064 = vmatpush1.bf16.msra.mxu0 0
        %1065 = vmatprep.subr.bf16.mxu0 0
        %1066 = vmatpush1.bf16.msra.mxu0 0
        %1067 = vmatprep.subr.bf16.mxu0 0
        %1068 = vmatpush1.bf16.msra.mxu0 0
        %1069 = vmatprep.subr.bf16.mxu0 0
        %1070 = vmatpush1.bf16.msra.mxu0 0
        %1071 = vmatprep.subr.bf16.mxu0 0
        %1072 = vmatpush1.bf16.msra.mxu0 0
        %1073 = vmatprep.subr.bf16.mxu0 0
        %1074 = vmatpush1.bf16.msra.mxu0 %v1054
        %1075 = vmatprep.subr.bf16.mxu0 0
        %1076 = vmatpush2.bf16.msra.mxu0 0
        %1077 = vmatprep.subr.bf16.mxu0 0
        %1078 = vmatpush2.bf16.msra.mxu0 0
        %1079 = vmatprep.subr.bf16.mxu0 0
        %1080 = vmatpush2.bf16.msra.mxu0 0
        %1081 = vmatprep.subr.bf16.mxu0 0
        %1082 = vmatpush2.bf16.msra.mxu0 0
        %1083 = vmatprep.subr.bf16.mxu0 0
        %1084 = vmatpush2.bf16.msra.mxu0 0
        %1085 = vmatprep.subr.bf16.mxu0 0
        %1086 = vmatpush2.bf16.msra.mxu0 0
        %1087 = vmatprep.subr.bf16.mxu0 0
        %1088 = vmatpush2.bf16.msra.mxu0 0
        %1089 = vmatprep.subr.bf16.mxu0 0
        %1090 = vmatpush2.bf16.msra.mxu0 0
        %1091 = vmatprep.mubr.bf16.mxu0 0
        %1092 = vmatmul.mubr.bf16.gmra.mxu0 %v1057
        %v1093 = vpop.f32.mrf.mxu0
        %v1094 = vadd.f32 0.0, %v1093
        %v1095 = vpop.f32.mrf.mxu0
        %v1096 = vpop.f32.mrf.mxu0
        %v1097 = vpop.f32.mrf.mxu0
        %1098 = vdwg.mxu0
        %v1099 = vld [vmem:[#allocation2] sm:$0xff]
        %v1100 = vpack.c.bf16 %v1094, %v1094
        %v1101 = vld [vmem:[#allocation12 + $0x10] sm:$0xf]
        %v1102 = vld [vmem:[#allocation12 + $0x14] sm:$0xf]
        %v1103 = vld [vmem:[#allocation12 + $0x18] sm:$0xf]
        %v1104 = vld [vmem:[#allocation12 + $0x1c] sm:$0xf]
        %v1109 = vunpack.c.l.b16 %v1101
        %v1110 = vunpack.c.l.b16 %v1102
        %v1111 = vunpack.c.l.b16 %v1103
        %v1112 = vunpack.c.l.b16 %v1104
        %v1113 = vpack.c.b16 %v1110, %v1109
        %v1114 = vpack.c.b16 %v1112, %v1111
        %v1118 = vsel %vm812, %v1100, 0
        %1120 = vmatprep.subr.bf16.mxu0 0
        %1121 = vmatpush1.bf16.msra.mxu0 0
        %1122 = vmatprep.subr.bf16.mxu0 0
        %1123 = vmatpush1.bf16.msra.mxu0 0
        %1124 = vmatprep.subr.bf16.mxu0 0
        %1125 = vmatpush1.bf16.msra.mxu0 0
        %1126 = vmatprep.subr.bf16.mxu0 0
        %1127 = vmatpush1.bf16.msra.mxu0 0
        %1128 = vmatprep.subr.bf16.mxu0 0
        %1129 = vmatpush1.bf16.msra.mxu0 0
        %1130 = vmatprep.subr.bf16.mxu0 0
        %1131 = vmatpush1.bf16.msra.mxu0 0
        %1132 = vmatprep.subr.bf16.mxu0 0
        %1133 = vmatpush1.bf16.msra.mxu0 %v1114
        %1134 = vmatprep.subr.bf16.mxu0 0
        %1135 = vmatpush1.bf16.msra.mxu0 %v1113
        %1136 = vmatprep.subr.bf16.mxu0 0
        %1137 = vmatpush2.bf16.msra.mxu0 0
        %1138 = vmatprep.subr.bf16.mxu0 0
        %1139 = vmatpush2.bf16.msra.mxu0 0
        %1140 = vmatprep.subr.bf16.mxu0 0
        %1141 = vmatpush2.bf16.msra.mxu0 0
        %1142 = vmatprep.subr.bf16.mxu0 0
        %1143 = vmatpush2.bf16.msra.mxu0 0
        %1144 = vmatprep.subr.bf16.mxu0 0
        %1145 = vmatpush2.bf16.msra.mxu0 0
        %1146 = vmatprep.subr.bf16.mxu0 0
        %1147 = vmatpush2.bf16.msra.mxu0 0
        %1148 = vmatprep.subr.bf16.mxu0 0
        %1149 = vmatpush2.bf16.msra.mxu0 0
        %1150 = vmatprep.subr.bf16.mxu0 0
        %1151 = vmatpush2.bf16.msra.mxu0 0
        %1152 = vmatprep.mubr.bf16.mxu0 0
        %1153 = vmatmul.mubr.bf16.gmra.mxu0 %v1118
        %v1154 = vpop.f32.mrf.mxu0
        %v1155 = vadd.f32 0.0, %v1154
        %v1156 = vpop.f32.mrf.mxu0
        %v1157 = vpop.f32.mrf.mxu0
        %v1158 = vpop.f32.mrf.mxu0
        %1159 = vdwg.mxu0
        %v1160 = vadd.f32 %v1099, %v1155
        %1161 = vst [vmem:[#allocation2] sm:$0xff] %v1160
        %1162 = vrot.lane.b32.xlu0 %v810, 64
        %v1163 = vpop.permute.xlu0 %1162
        %1164 = vrot.lane.b32.xlu0 %v811, 64
        %v1165 = vpop.permute.xlu0 %1164
        %v1167 = vsel %vm812, %v1163, 0
        %v1170 = vsel %vm812, %v1165, 0
        %1172 = vmatprep.subr.bf16.mxu0 0
        %1173 = vmatpush1.bf16.xpose.msra.mxu0 0
        %1174 = vmatprep.subr.bf16.mxu0 0
        %1175 = vmatpush1.bf16.xpose.msra.mxu0 0
        %1176 = vmatprep.subr.bf16.mxu0 0
        %1177 = vmatpush1.bf16.xpose.msra.mxu0 0
        %1178 = vmatprep.subr.bf16.mxu0 0
        %1179 = vmatpush1.bf16.xpose.msra.mxu0 0
        %1180 = vmatprep.subr.bf16.mxu0 0
        %1181 = vmatpush1.bf16.xpose.msra.mxu0 0
        %1182 = vmatprep.subr.bf16.mxu0 0
        %1183 = vmatpush1.bf16.xpose.msra.mxu0 0
        %1184 = vmatprep.subr.bf16.mxu0 0
        %1185 = vmatpush1.bf16.xpose.msra.mxu0 0
        %1186 = vmatprep.subr.bf16.mxu0 0
        %1187 = vmatpush1.bf16.xpose.msra.mxu0 %v1170
        %1188 = vmatprep.subr.bf16.mxu0 0
        %1189 = vmatpush2.bf16.xpose.msra.mxu0 0
        %1190 = vmatprep.subr.bf16.mxu0 0
        %1191 = vmatpush2.bf16.xpose.msra.mxu0 0
        %1192 = vmatprep.subr.bf16.mxu0 0
        %1193 = vmatpush2.bf16.xpose.msra.mxu0 0
        %1194 = vmatprep.subr.bf16.mxu0 0
        %1195 = vmatpush2.bf16.xpose.msra.mxu0 0
        %1196 = vmatprep.subr.bf16.mxu0 0
        %1197 = vmatpush2.bf16.xpose.msra.mxu0 0
        %1198 = vmatprep.subr.bf16.mxu0 0
        %1199 = vmatpush2.bf16.xpose.msra.mxu0 0
        %1200 = vmatprep.subr.bf16.mxu0 0
        %1201 = vmatpush2.bf16.xpose.msra.mxu0 0
        %1202 = vmatprep.subr.bf16.mxu0 0
        %1203 = vmatpush2.bf16.xpose.msra.mxu0 0
        %1204 = vmatprep.mubr.bf16.mxu0 0
        %1205 = vmatmul.mubr.bf16.gmra.mxu0 %v1167
        %v1206 = vpop.f32.mrf.mxu0
        %v1207 = vadd.f32 0.0, %v1206
        %v1208 = vpop.f32.mrf.mxu0
        %v1209 = vpop.f32.mrf.mxu0
        %v1210 = vpop.f32.mrf.mxu0
        %1211 = vdwg.mxu0
        %v1212 = vmul.f32 %v1207, 0.17677669
        %v1213 = vsel %vm807, %v1212, -inf
        %1214 = vmax.xlane.f32.xlu0 %v1213
        %v1215 = vpop.xlane.xlu0 %1214
        %v1216 = vsub.f32 %v1212, %v1215
        %v1217 = vmul.f32 %v1216, 1.442695
        %v1218 = vpow.pop %v1217
        %v1219 = vsel %vm807, %v1218, 0.0
        %1220 = vadd.xlane.f32.xlu0 %v1219
        %v1221 = vpop.xlane.xlu0 %1220
        %v1222 = vrcp.pop %v1221
        %v1223 = vmul.f32 %v1218, %v1222
        %v1224 = vld [vmem:[%s530] sm:$0xff]
        %v1225 = vmul.f32 %v1223, 0.25
        %v1226 = vadd.f32 %v1224, %v1225
        %1227 = vst.msk [vmem:[%s530] sm:$0xff] %vm807, %v1226
        %v1228 = vpack.c.bf16 %v1223, %v1223
        %1229 = vrot.lane.b32.xlu0 %v876, 64
        %v1230 = vpop.permute.xlu0 %1229
        %v1233 = vsel %vm807, %v1228, 0
        %1235 = vmatprep.subr.bf16.mxu0 0
        %1236 = vmatpush1.bf16.msra.mxu0 0
        %1237 = vmatprep.subr.bf16.mxu0 0
        %1238 = vmatpush1.bf16.msra.mxu0 0
        %1239 = vmatprep.subr.bf16.mxu0 0
        %1240 = vmatpush1.bf16.msra.mxu0 0
        %1241 = vmatprep.subr.bf16.mxu0 0
        %1242 = vmatpush1.bf16.msra.mxu0 0
        %1243 = vmatprep.subr.bf16.mxu0 0
        %1244 = vmatpush1.bf16.msra.mxu0 0
        %1245 = vmatprep.subr.bf16.mxu0 0
        %1246 = vmatpush1.bf16.msra.mxu0 0
        %1247 = vmatprep.subr.bf16.mxu0 0
        %1248 = vmatpush1.bf16.msra.mxu0 0
        %1249 = vmatprep.subr.bf16.mxu0 0
        %1250 = vmatpush1.bf16.msra.mxu0 %v1230
        %1251 = vmatprep.subr.bf16.mxu0 0
        %1252 = vmatpush2.bf16.msra.mxu0 0
        %1253 = vmatprep.subr.bf16.mxu0 0
        %1254 = vmatpush2.bf16.msra.mxu0 0
        %1255 = vmatprep.subr.bf16.mxu0 0
        %1256 = vmatpush2.bf16.msra.mxu0 0
        %1257 = vmatprep.subr.bf16.mxu0 0
        %1258 = vmatpush2.bf16.msra.mxu0 0
        %1259 = vmatprep.subr.bf16.mxu0 0
        %1260 = vmatpush2.bf16.msra.mxu0 0
        %1261 = vmatprep.subr.bf16.mxu0 0
        %1262 = vmatpush2.bf16.msra.mxu0 0
        %1263 = vmatprep.subr.bf16.mxu0 0
        %1264 = vmatpush2.bf16.msra.mxu0 0
        %1265 = vmatprep.subr.bf16.mxu0 0
        %1266 = vmatpush2.bf16.msra.mxu0 0
        %1267 = vmatprep.mubr.bf16.mxu0 0
        %1268 = vmatmul.mubr.bf16.gmra.mxu0 %v1233
        %v1269 = vpop.f32.mrf.mxu0
        %v1270 = vadd.f32 0.0, %v1269
        %v1271 = vpop.f32.mrf.mxu0
        %v1272 = vpop.f32.mrf.mxu0
        %v1273 = vpop.f32.mrf.mxu0
        %1274 = vdwg.mxu0
        %v1275 = vld [vmem:[#allocation2] sm:$0xff]
        %v1276 = vpack.c.bf16 %v1270, %v1270
        %v1277 = vld [vmem:[#allocation12 + $0x20] sm:$0xf]
        %v1278 = vld [vmem:[#allocation12 + $0x24] sm:$0xf]
        %v1279 = vld [vmem:[#allocation12 + $0x28] sm:$0xf]
        %v1280 = vld [vmem:[#allocation12 + $0x2c] sm:$0xf]
        %v1285 = vunpack.c.l.b16 %v1277
        %v1286 = vunpack.c.l.b16 %v1278
        %v1287 = vunpack.c.l.b16 %v1279
        %v1288 = vunpack.c.l.b16 %v1280
        %v1289 = vpack.c.b16 %v1286, %v1285
        %v1290 = vpack.c.b16 %v1288, %v1287
        %v1294 = vsel %vm812, %v1276, 0
        %1296 = vmatprep.subr.bf16.mxu0 0
        %1297 = vmatpush1.bf16.msra.mxu0 0
        %1298 = vmatprep.subr.bf16.mxu0 0
        %1299 = vmatpush1.bf16.msra.mxu0 0
        %1300 = vmatprep.subr.bf16.mxu0 0
        %1301 = vmatpush1.bf16.msra.mxu0 0
        %1302 = vmatprep.subr.bf16.mxu0 0
        %1303 = vmatpush1.bf16.msra.mxu0 0
        %1304 = vmatprep.subr.bf16.mxu0 0
        %1305 = vmatpush1.bf16.msra.mxu0 0
        %1306 = vmatprep.subr.bf16.mxu0 0
        %1307 = vmatpush1.bf16.msra.mxu0 0
        %1308 = vmatprep.subr.bf16.mxu0 0
        %1309 = vmatpush1.bf16.msra.mxu0 %v1290
        %1310 = vmatprep.subr.bf16.mxu0 0
        %1311 = vmatpush1.bf16.msra.mxu0 %v1289
        %1312 = vmatprep.subr.bf16.mxu0 0
        %1313 = vmatpush2.bf16.msra.mxu0 0
        %1314 = vmatprep.subr.bf16.mxu0 0
        %1315 = vmatpush2.bf16.msra.mxu0 0
        %1316 = vmatprep.subr.bf16.mxu0 0
        %1317 = vmatpush2.bf16.msra.mxu0 0
        %1318 = vmatprep.subr.bf16.mxu0 0
        %1319 = vmatpush2.bf16.msra.mxu0 0
        %1320 = vmatprep.subr.bf16.mxu0 0
        %1321 = vmatpush2.bf16.msra.mxu0 0
        %1322 = vmatprep.subr.bf16.mxu0 0
        %1323 = vmatpush2.bf16.msra.mxu0 0
        %1324 = vmatprep.subr.bf16.mxu0 0
        %1325 = vmatpush2.bf16.msra.mxu0 0
        %1326 = vmatprep.subr.bf16.mxu0 0
        %1327 = vmatpush2.bf16.msra.mxu0 0
        %1328 = vmatprep.mubr.bf16.mxu0 0
        %1329 = vmatmul.mubr.bf16.gmra.mxu0 %v1294
        %v1330 = vpop.f32.mrf.mxu0
        %v1331 = vadd.f32 0.0, %v1330
        %v1332 = vpop.f32.mrf.mxu0
        %v1333 = vpop.f32.mrf.mxu0
        %v1334 = vpop.f32.mrf.mxu0
        %1335 = vdwg.mxu0
        %v1336 = vadd.f32 %v1275, %v1331
        %1337 = vst [vmem:[#allocation2] sm:$0xff] %v1336
        %1338 = vrot.lane.b32.xlu0 %v810, 32
        %v1339 = vpop.permute.xlu0 %1338
        %1340 = vrot.lane.b32.xlu0 %v811, 32
        %v1341 = vpop.permute.xlu0 %1340
        %v1343 = vsel %vm812, %v1339, 0
        %v1346 = vsel %vm812, %v1341, 0
        %1348 = vmatprep.subr.bf16.mxu0 0
        %1349 = vmatpush1.bf16.xpose.msra.mxu0 0
        %1350 = vmatprep.subr.bf16.mxu0 0
        %1351 = vmatpush1.bf16.xpose.msra.mxu0 0
        %1352 = vmatprep.subr.bf16.mxu0 0
        %1353 = vmatpush1.bf16.xpose.msra.mxu0 0
        %1354 = vmatprep.subr.bf16.mxu0 0
        %1355 = vmatpush1.bf16.xpose.msra.mxu0 0
        %1356 = vmatprep.subr.bf16.mxu0 0
        %1357 = vmatpush1.bf16.xpose.msra.mxu0 0
        %1358 = vmatprep.subr.bf16.mxu0 0
        %1359 = vmatpush1.bf16.xpose.msra.mxu0 0
        %1360 = vmatprep.subr.bf16.mxu0 0
        %1361 = vmatpush1.bf16.xpose.msra.mxu0 0
        %1362 = vmatprep.subr.bf16.mxu0 0
        %1363 = vmatpush1.bf16.xpose.msra.mxu0 %v1346
        %1364 = vmatprep.subr.bf16.mxu0 0
        %1365 = vmatpush2.bf16.xpose.msra.mxu0 0
        %1366 = vmatprep.subr.bf16.mxu0 0
        %1367 = vmatpush2.bf16.xpose.msra.mxu0 0
        %1368 = vmatprep.subr.bf16.mxu0 0
        %1369 = vmatpush2.bf16.xpose.msra.mxu0 0
        %1370 = vmatprep.subr.bf16.mxu0 0
        %1371 = vmatpush2.bf16.xpose.msra.mxu0 0
        %1372 = vmatprep.subr.bf16.mxu0 0
        %1373 = vmatpush2.bf16.xpose.msra.mxu0 0
        %1374 = vmatprep.subr.bf16.mxu0 0
        %1375 = vmatpush2.bf16.xpose.msra.mxu0 0
        %1376 = vmatprep.subr.bf16.mxu0 0
        %1377 = vmatpush2.bf16.xpose.msra.mxu0 0
        %1378 = vmatprep.subr.bf16.mxu0 0
        %1379 = vmatpush2.bf16.xpose.msra.mxu0 0
        %1380 = vmatprep.mubr.bf16.mxu0 0
        %1381 = vmatmul.mubr.bf16.gmra.mxu0 %v1343
        %v1382 = vpop.f32.mrf.mxu0
        %v1383 = vadd.f32 0.0, %v1382
        %v1384 = vpop.f32.mrf.mxu0
        %v1385 = vpop.f32.mrf.mxu0
        %v1386 = vpop.f32.mrf.mxu0
        %1387 = vdwg.mxu0
        %v1388 = vmul.f32 %v1383, 0.17677669
        %v1389 = vsel %vm807, %v1388, -inf
        %1390 = vmax.xlane.f32.xlu0 %v1389
        %v1391 = vpop.xlane.xlu0 %1390
        %v1392 = vsub.f32 %v1388, %v1391
        %v1393 = vmul.f32 %v1392, 1.442695
        %v1394 = vpow.pop %v1393
        %v1395 = vsel %vm807, %v1394, 0.0
        %1396 = vadd.xlane.f32.xlu0 %v1395
        %v1397 = vpop.xlane.xlu0 %1396
        %v1398 = vrcp.pop %v1397
        %v1399 = vmul.f32 %v1394, %v1398
        %v1400 = vld [vmem:[%s530] sm:$0xff]
        %v1401 = vmul.f32 %v1399, 0.25
        %v1402 = vadd.f32 %v1400, %v1401
        %1403 = vst.msk [vmem:[%s530] sm:$0xff] %vm807, %v1402
        %v1404 = vpack.c.bf16 %v1399, %v1399
        %1405 = vrot.lane.b32.xlu0 %v876, 32
        %v1406 = vpop.permute.xlu0 %1405
        %v1409 = vsel %vm807, %v1404, 0
        %1411 = vmatprep.subr.bf16.mxu0 0
        %1412 = vmatpush1.bf16.msra.mxu0 0
        %1413 = vmatprep.subr.bf16.mxu0 0
        %1414 = vmatpush1.bf16.msra.mxu0 0
        %1415 = vmatprep.subr.bf16.mxu0 0
        %1416 = vmatpush1.bf16.msra.mxu0 0
        %1417 = vmatprep.subr.bf16.mxu0 0
        %1418 = vmatpush1.bf16.msra.mxu0 0
        %1419 = vmatprep.subr.bf16.mxu0 0
        %1420 = vmatpush1.bf16.msra.mxu0 0
        %1421 = vmatprep.subr.bf16.mxu0 0
        %1422 = vmatpush1.bf16.msra.mxu0 0
        %1423 = vmatprep.subr.bf16.mxu0 0
        %1424 = vmatpush1.bf16.msra.mxu0 0
        %1425 = vmatprep.subr.bf16.mxu0 0
        %1426 = vmatpush1.bf16.msra.mxu0 %v1406
        %1427 = vmatprep.subr.bf16.mxu0 0
        %1428 = vmatpush2.bf16.msra.mxu0 0
        %1429 = vmatprep.subr.bf16.mxu0 0
        %1430 = vmatpush2.bf16.msra.mxu0 0
        %1431 = vmatprep.subr.bf16.mxu0 0
        %1432 = vmatpush2.bf16.msra.mxu0 0
        %1433 = vmatprep.subr.bf16.mxu0 0
        %1434 = vmatpush2.bf16.msra.mxu0 0
        %1435 = vmatprep.subr.bf16.mxu0 0
        %1436 = vmatpush2.bf16.msra.mxu0 0
        %1437 = vmatprep.subr.bf16.mxu0 0
        %1438 = vmatpush2.bf16.msra.mxu0 0
        %1439 = vmatprep.subr.bf16.mxu0 0
        %1440 = vmatpush2.bf16.msra.mxu0 0
        %1441 = vmatprep.subr.bf16.mxu0 0
        %1442 = vmatpush2.bf16.msra.mxu0 0
        %1443 = vmatprep.mubr.bf16.mxu0 0
        %1444 = vmatmul.mubr.bf16.gmra.mxu0 %v1409
        %v1445 = vpop.f32.mrf.mxu0
        %v1446 = vadd.f32 0.0, %v1445
        %v1447 = vpop.f32.mrf.mxu0
        %v1448 = vpop.f32.mrf.mxu0
        %v1449 = vpop.f32.mrf.mxu0
        %1450 = vdwg.mxu0
        %v1451 = vld [vmem:[#allocation2] sm:$0xff]
        %v1452 = vpack.c.bf16 %v1446, %v1446
        %v1453 = vld [vmem:[#allocation12 + $0x30] sm:$0xf]
        %v1454 = vld [vmem:[#allocation12 + $0x34] sm:$0xf]
        %v1455 = vld [vmem:[#allocation12 + $0x38] sm:$0xf]
        %v1456 = vld [vmem:[#allocation12 + $0x3c] sm:$0xf]
        %v1461 = vunpack.c.l.b16 %v1453
        %v1462 = vunpack.c.l.b16 %v1454
        %v1463 = vunpack.c.l.b16 %v1455
        %v1464 = vunpack.c.l.b16 %v1456
        %v1465 = vpack.c.b16 %v1462, %v1461
        %v1466 = vpack.c.b16 %v1464, %v1463
        %v1470 = vsel %vm812, %v1452, 0
        %1472 = vmatprep.subr.bf16.mxu0 0
        %1473 = vmatpush1.bf16.msra.mxu0 0
        %1474 = vmatprep.subr.bf16.mxu0 0
        %1475 = vmatpush1.bf16.msra.mxu0 0
        %1476 = vmatprep.subr.bf16.mxu0 0
        %1477 = vmatpush1.bf16.msra.mxu0 0
        %1478 = vmatprep.subr.bf16.mxu0 0
        %1479 = vmatpush1.bf16.msra.mxu0 0
        %1480 = vmatprep.subr.bf16.mxu0 0
        %1481 = vmatpush1.bf16.msra.mxu0 0
        %1482 = vmatprep.subr.bf16.mxu0 0
        %1483 = vmatpush1.bf16.msra.mxu0 0
        %1484 = vmatprep.subr.bf16.mxu0 0
        %1485 = vmatpush1.bf16.msra.mxu0 %v1466
        %1486 = vmatprep.subr.bf16.mxu0 0
        %1487 = vmatpush1.bf16.msra.mxu0 %v1465
        %1488 = vmatprep.subr.bf16.mxu0 0
        %1489 = vmatpush2.bf16.msra.mxu0 0
        %1490 = vmatprep.subr.bf16.mxu0 0
        %1491 = vmatpush2.bf16.msra.mxu0 0
        %1492 = vmatprep.subr.bf16.mxu0 0
        %1493 = vmatpush2.bf16.msra.mxu0 0
        %1494 = vmatprep.subr.bf16.mxu0 0
        %1495 = vmatpush2.bf16.msra.mxu0 0
        %1496 = vmatprep.subr.bf16.mxu0 0
        %1497 = vmatpush2.bf16.msra.mxu0 0
        %1498 = vmatprep.subr.bf16.mxu0 0
        %1499 = vmatpush2.bf16.msra.mxu0 0
        %1500 = vmatprep.subr.bf16.mxu0 0
        %1501 = vmatpush2.bf16.msra.mxu0 0
        %1502 = vmatprep.subr.bf16.mxu0 0
        %1503 = vmatpush2.bf16.msra.mxu0 0
        %1504 = vmatprep.mubr.bf16.mxu0 0
        %1505 = vmatmul.mubr.bf16.gmra.mxu0 %v1470
        %v1506 = vpop.f32.mrf.mxu0
        %v1507 = vadd.f32 0.0, %v1506
        %v1508 = vpop.f32.mrf.mxu0
        %v1509 = vpop.f32.mrf.mxu0
        %v1510 = vpop.f32.mrf.mxu0
        %1511 = vdwg.mxu0
        %v1512 = vadd.f32 %v1451, %v1507
        %1513 = vst [vmem:[#allocation2] sm:$0xff] %v1512
        %v1514 = vld [vmem:[#allocation2] sm:$0xff]
        %v1515 = vld [vmem:[#allocation14] sm:$0x1]
        %v1517 = vlaneseq
        %v1518 = vshrl.u32 %v1517, 7
        %v1519 = vsub.s32 0, %v1518
        %v1520 = vrot.slane %v1515, %v1519
        %v1522 = vadd.f32 %v1514, %v1520
        %v1523 = vadd.f32 %v540, %v1522
        %1524 = vadd.xlane.f32.xlu0 %v1523
        %v1525 = vpop.xlane.xlu0 %1524
        %v1526 = vrcp.pop 128.0
        %v1527 = vmul.f32 %v1525, %v1526
        %v1528 = vsub.f32 %v1523, %v1527
        %v1529 = vmul.f32 %v1528, %v1528
        %1530 = vadd.xlane.f32.xlu0 %v1529
        %v1531 = vpop.xlane.xlu0 %1530
        %v1532 = vmul.f32 %v1531, %v1526
        %v1533 = vadd.f32 %v1532, 1e-05
        %v1534 = vrsqrt.pop %v1533
        %v1535 = vmul.f32 %v1528, %v1534
        %v1536 = vld [vmem:[#allocation15] sm:$0x1]
        %v1538 = vlaneseq
        %v1539 = vshrl.u32 %v1538, 7
        %v1540 = vsub.s32 0, %v1539
        %v1541 = vrot.slane %v1536, %v1540
        %v1543 = vmul.f32 %v1535, %v1541
        %v1544 = vld [vmem:[#allocation17] sm:$0x1]
        %v1546 = vlaneseq
        %v1547 = vshrl.u32 %v1546, 7
        %v1548 = vsub.s32 0, %v1547
        %v1549 = vrot.slane %v1544, %v1548
        %v1551 = vadd.f32 %v1543, %v1549
        %1552 = vst [vmem:[%s538] sm:$0xff] %v1551
        %p1553 = scmp.lt.s32.totalorder %s33, 1
        %s1554 = scalar_select %p1553, %s33, 1
        %s1555 = smul.addr %s1554, 8
        %s1556 = scalar_lea.vmem %s10, %s1555
        %s1557 = sand.u32 %s287, 1
        %s1558 = scalar_lea.sflag [#allocation5], %s1557
        %s1559 = sand.u32 %s287, 1
        %s1560 = smul.addr %s1559, 8
        %s1561 = scalar_lea.vmem [#allocation18], %s1560
        // Predicated region
        $region97: #{decoder_layer.4} parent=59 // pred_check
          %p1562 = pneg %p271
        $region98: #{decoder_layer.4} parent=59 // pred_check_branch
          %1564 = sbr.rel (%p1562) target = $region100
        $region99: #{decoder_layer.4} parent=59 // pred_region
          _
        $region100: #{decoder_layer.4} parent=59 // pred_fallthru
          _
        // Predicated region
        $region101: #{decoder_layer.4} parent=59 // pred_check
          %p1565 = pneg %p297
        $region102: #{decoder_layer.4} parent=59 // pred_check_branch
          %1567 = sbr.rel (%p1565) target = $region104
        $region103: #{decoder_layer.4} parent=59 // pred_region
          %s1569 = ssub.s32 128, 128
          %1570 = vsyncadd %s1558, %s1569
          %s1571 = smul.addr %s33, 128
          %s1572 = scalar_lea.hbm %s11, %s1571
          %s1574 = sshll.u32 %s1561, 4
          %s1575 = int_to_ptr.vmem [resolvable:$true] %s1574
          %1577 = dma.vmem_to_hbm [thread:$0]  %s1575, 128, %s1572, %s1558
        $region104: #{decoder_layer.4} parent=59 // pred_fallthru
          _
      $region60: #{decoder_layer.4} parent=5 // pred_fallthru
        _
      %p1578 = scmp.le.s32.totalorder 2, %s28
      // Predicated region
      $region105: #{decoder_layer.4} parent=5 // pred_check
        %p1579 = pneg %p1578
      $region106: #{decoder_layer.4} parent=5 // pred_check_branch
        %1581 = sbr.rel (%p1579) target = $region108
      $region107: #{decoder_layer.4} parent=5 // pred_region
        %s1582 = ssub.s32 %s28, 2
        // Predicated region
        $region109: #{decoder_layer.4} parent=107 // pred_check
          %p1583 = pneg %p277
        $region110: #{decoder_layer.4} parent=107 // pred_check_branch
          %1585 = sbr.rel (%p1583) target = $region112
        $region111: #{decoder_layer.4} parent=107 // pred_region
          %p1586 = scmp.lt.s32.totalorder %s34, 1
          %s1587 = scalar_select %p1586, %s34, 1
          %s1588 = smul.addr %s1587, 8
          %s1589 = scalar_lea.vmem %s10, %s1588
        $region112: #{decoder_layer.4} parent=107 // pred_fallthru
          _
        // Predicated region
        $region113: #{decoder_layer.4} parent=107 // pred_check
          %p1590 = pneg %p303
        $region114: #{decoder_layer.4} parent=107 // pred_check_branch
          %1592 = sbr.rel (%p1590) target = $region116
        $region115: #{decoder_layer.4} parent=107 // pred_region
          %s1593 = sand.u32 %s288, 1
          %s1594 = scalar_lea.sflag [#allocation5], %s1593
          %s1595 = sand.u32 %s288, 1
          %s1596 = smul.addr %s1595, 8
          %s1597 = scalar_lea.vmem [#allocation18], %s1596
          %1598 = dma.done %s1594, 128
        $region116: #{decoder_layer.4} parent=107 // pred_fallthru
          _
      $region108: #{decoder_layer.4} parent=5 // pred_fallthru
        _
    $region6: #{decoder_layer.4} parent=1 // loop_footer
      %s32 = sadd.s32 1, %s28
    $region7: #{decoder_layer.4} parent=1 // loop_footer_branch
      %27 = sbr.rel target = $region3
    $region8: #{decoder_layer.4} parent=1 // loop_exit
      _
    %1599 = vsyncpa [#allocation4], 1
    %s1600 = scalar_lea.sflag [#allocation4], 1
    %1601 = vsyncpa %s1600, 1
    %1602 = vsyncpa [#allocation7], 1
    %1603 = vsyncpa [#allocation10], 1
    %1604 = vsyncpa [#allocation13], 1
    %1605 = vsyncpa [#allocation16], 1
    %1606 = vsyncpa [#allocation5], 1
    %s1607 = scalar_lea.sflag [#allocation5], 1
    %1608 = vsyncpa %s1607, 1

</llo_original>
